<compile_context>
chip_gen: v5e
topology: v5e:2x2
jax: 0.10.0
libtpu: 0.0.40
codegen_flags: <defaults>
</compile_context>

<pallas_src>
import functools
import math

import jax
import jax.numpy as jnp
import numpy as np
from jax.experimental import pallas as pl
from jax.experimental.pallas import tpu as pltpu  # noqa: F401  (TPU backend)

# ----------------------- config (small synthetic shapes) --------------------
BATCH = 8
NUM_CAT_COLS = 6           # categorical columns == transformer sequence length
NUM_NUM_COLS = 4           # numerical columns
CHANNELS = 32              # per-column embedding width
ENCODER_PAD = 8            # positional pad width -> cat embedding dim = 24
NUM_LAYERS = 2
NUM_HEADS = 4
OUT_CHANNELS = 8
NUM_CATEGORIES = 10        # categories per categorical column (synthetic)
LN_EPS = 1e-5
BN_EPS = 1e-5

_SELU_ALPHA = 1.6732632423543772
_SELU_SCALE = 1.0507009873554805
_GELU_C = 0.7978845608028654       # sqrt(2/pi)
_HI = jax.lax.Precision.HIGHEST


def _round_up(n, m):
    return ((n + m - 1) // m) * m


# ----------------- slab row layout (static, baked into the kernel) -----------
_C = CHANNELS
_H = NUM_HEADS
# conv32 slab (f32, width C), per-layer block:
OFF_QK = 0                       # H x [C,C]  : Wq_h Wk_h^T / sqrt(D)
OFF_VO = _H * _C                 # H x [C,C]  : Wv_h Wo_h
OFF_WF2 = 2 * _H * _C            # [2C, C]
OFF_VEC = OFF_WF2 + 2 * _C       # single-row vectors:
OFF_LN1G = OFF_VEC + 0
OFF_LN1B = OFF_VEC + 1
OFF_LN2G = OFF_VEC + 2
OFF_LN2B = OFF_VEC + 3
OFF_BO = OFF_VEC + 4             # bo + bv @ Wo
OFF_BF2 = OFF_VEC + 5
OFF_MB = OFF_VEC + 6             # H x [1,C] : bq_h Wk_h^T / sqrt(D)
PER32 = _round_up(OFF_MB + _H, 8)            # 336 rows / layer (8-aligned)

# conv64 slab (f32, width 2C), per-layer block: wf1 [C,2C], bf1 [1,2C]
PER64 = _round_up(_C + 1, 8)                 # 40 rows / layer

# decoder slab (bf16, width H2P)
D_IN = NUM_CAT_COLS * CHANNELS + NUM_NUM_COLS   # 196
K1 = NUM_CAT_COLS * CHANNELS + CHANNELS         # flatten width incl. padded numericals (224)
H1 = 2 * D_IN                                   # 392
H2 = 4 * D_IN                                   # 784
H1P = _round_up(H1, 128)                        # 512
H2P = _round_up(H2, 128)                        # 896
R_W1 = 0                                        # [K1,  H2P] (cols 0:H1 live)
R_W2 = K1                                       # [H1P, H2P]
R_W3 = R_W2 + H1P                               # [OUT, H2P] == w3^T
R_B1 = R_W3 + OUT_CHANNELS
R_B2 = R_B1 + 1
R_B3 = R_B2 + 1
DEC_ROWS = _round_up(R_B3 + 1, 8)               # 752


# ----------------------------- kernel math helpers ---------------------------
def _gelu_tanh(x):
    # tanh-approximate GELU: one EUP tanh instead of exp + ~10 VPU fmas.
    return 0.5 * x * (1.0 + jnp.tanh(_GELU_C * (x + 0.044715 * x * x * x)))


def _selu(x):              # matches torch.nn.SELU()
    return _SELU_SCALE * jnp.where(x > 0, x, _SELU_ALPHA * (jnp.exp(x) - 1.0))


def _layernorm(x, gamma, beta):
    mu = jnp.mean(x, axis=-1, keepdims=True)
    var = jnp.mean((x - mu) ** 2, axis=-1, keepdims=True)
    return (x - mu) * jax.lax.rsqrt(var + LN_EPS) * gamma + beta


# --------------- Pallas kernel: full conv stack + decoder MLP ----------------
def _fused_tab_kernel(act_ref, c32_ref, c64_ref, dec_ref, o_ref, *,
                      num_layers, num_heads, seq, batch, channels):
    C = channels
    SB = seq * batch
    x = act_ref[0:SB, :]                                 # [S*B, C], row = s*B + b

    # Block-diagonal additive attention mask: rows attend iff same batch elem.
    # Built in-kernel (a handful of VPU ops on ~6 vregs) -- cheaper than
    # another operand DMA.  BATCH is a power of two -> use & instead of %.
    row = jax.lax.broadcasted_iota(jnp.int32, (SB, SB), 0)
    col = jax.lax.broadcasted_iota(jnp.int32, (SB, SB), 1)
    if (batch & (batch - 1)) == 0:
        same = (row & (batch - 1)) == (col & (batch - 1))
    else:
        same = (row % batch) == (col % batch)
    attn_bias = jnp.where(same, 0.0, -1e30)

    # ---------------- TabTransformerConv layers (static unroll) --------------
    for l in range(num_layers):
        b32 = l * PER32
        b64 = l * PER64
        ln1g = c32_ref[b32 + OFF_LN1G:b32 + OFF_LN1G + 1, :]
        ln1b = c32_ref[b32 + OFF_LN1B:b32 + OFF_LN1B + 1, :]

        # norm_1 (torch_frame uses the *normalized* x as the residual base)
        xn = _layernorm(x, ln1g, ln1b)

        proj = jnp.zeros((SB, C), jnp.float32)
        for h in range(num_heads):                       # static unroll (4 heads)
            mqk = c32_ref[b32 + OFF_QK + h * C:b32 + OFF_QK + (h + 1) * C, :]
            mvo = c32_ref[b32 + OFF_VO + h * C:b32 + OFF_VO + (h + 1) * C, :]
            mb = c32_ref[b32 + OFF_MB + h:b32 + OFF_MB + h + 1, :]
            # scores_h = (xn @ M_qk + m_b) @ xn^T   (scale + q-bias folded in)
            a = jnp.dot(xn, mqk, preferred_element_type=jnp.float32) + mb
            sc = jax.lax.dot_general(a, xn, (((1,), (1,)), ((), ())),
                                     preferred_element_type=jnp.float32)  # [SB,SB]
            sc = sc + attn_bias
            sc = sc - jnp.max(sc, axis=-1, keepdims=True)
            e = jnp.exp(sc)
            p = e * pl.reciprocal(jnp.sum(e, axis=-1, keepdims=True), approx=True)
            # per-head V, already projected through Wo rows of this head
            v = jnp.dot(xn, mvo, preferred_element_type=jnp.float32)      # [SB, C]
            proj = proj + jnp.dot(p, v, preferred_element_type=jnp.float32)

        bo = c32_ref[b32 + OFF_BO:b32 + OFF_BO + 1, :]   # bo + bv @ Wo (folded)
        x1 = xn + proj + bo                              # residual 1

        ln2g = c32_ref[b32 + OFF_LN2G:b32 + OFF_LN2G + 1, :]
        ln2b = c32_ref[b32 + OFF_LN2B:b32 + OFF_LN2B + 1, :]
        y = _layernorm(x1, ln2g, ln2b)                   # norm_2
        wf1 = c64_ref[b64:b64 + C, :]                    # [C, 2C]
        bf1 = c64_ref[b64 + C:b64 + C + 1, :]            # [1, 2C]
        hf = _gelu_tanh(jnp.dot(y, wf1, preferred_element_type=jnp.float32) + bf1)
        wf2 = c32_ref[b32 + OFF_WF2:b32 + OFF_WF2 + 2 * C, :]   # [2C, C]
        bf2 = c32_ref[b32 + OFF_BF2:b32 + OFF_BF2 + 1, :]
        hf = jnp.dot(hf, wf2, preferred_element_type=jnp.float32) + bf2
        x = x1 + hf                                      # residual 2

    # --------------------------- decoder MLP ---------------------------------
    # Flatten [B,S,C] + numericals via one lane-concat of 8-row-aligned slices
    # (row = s*B + b layout), then a single K=224 matmul.  Eval-mode BatchNorm
    # is already folded into w1/b1 and w2/b2; hidden dims are zero-padded to
    # 128-lane multiples, extra w1 rows (padded numerical cols) are zero.
    pieces = [x[s * batch:(s + 1) * batch, :] for s in range(seq)]
    pieces.append(act_ref[SB:SB + batch, :])             # zero-padded numericals
    xflat = jnp.concatenate(pieces, axis=1).astype(jnp.bfloat16)   # [B, K1]

    w1 = dec_ref[R_W1:R_W1 + K1, 0:H1P]                  # bf16 [224, 512]
    b1 = dec_ref[R_B1:R_B1 + 1, 0:H1P].astype(jnp.float32)
    h1 = _selu(jnp.dot(xflat, w1, preferred_element_type=jnp.float32) + b1)

    w2 = dec_ref[R_W2:R_W2 + H1P, :]                     # bf16 [512, 896]
    b2 = dec_ref[R_B2:R_B2 + 1, :].astype(jnp.float32)
    h2 = _selu(jnp.dot(h1.astype(jnp.bfloat16), w2,
                       preferred_element_type=jnp.float32) + b2)

    w3t = dec_ref[R_W3:R_W3 + OUT_CHANNELS, :]           # bf16 [OUT, 896] == w3^T
    b3 = dec_ref[R_B3:R_B3 + 1, 0:OUT_CHANNELS].astype(jnp.float32)
    out = jax.lax.dot_general(h2.astype(jnp.bfloat16), w3t,
                              (((1,), (1,)), ((), ())),
                              preferred_element_type=jnp.float32) + b3
    o_ref[...] = out


def _prepare_kernel_args(params):
    """Trace-time folds + packing into 3 weight slabs.

    - per-head QK / VO weight folds (scale + biases included),
    - eval-mode BatchNorm folded into the decoder Linears,
    - decoder hidden dims zero-padded to 128-lane multiples,
    - decoder slab cast to bf16 (it dominates HBM->VMEM traffic).
    """
    C, H = CHANNELS, NUM_HEADS
    D = C // H
    scale = 1.0 / math.sqrt(D)

    conv32_blocks, conv64_blocks = [], []
    for c in params["convs"]:
        mqk, mvo, mb = [], [], []
        for h in range(H):
            lo = h * D
            wq_h = c["wq"][:, lo:lo + D]
            wk_h = c["wk"][:, lo:lo + D]
            wv_h = c["wv"][:, lo:lo + D]
            wo_h = c["wo"][lo:lo + D, :]
            mqk.append(wq_h @ wk_h.T * scale)                       # [C, C]
            mvo.append(wv_h @ wo_h)                                 # [C, C]
            mb.append(c["bq"][:, lo:lo + D] @ wk_h.T * scale)       # [1, C]
        bo_fold = c["bo"] + c["bv"] @ c["wo"]                       # [1, C]
        vec_rows = [c["ln1_g"], c["ln1_b"], c["ln2_g"], c["ln2_b"],
                    bo_fold, c["bf2"]]
        block32 = jnp.concatenate(mqk + mvo + [c["wf2"]] + vec_rows + mb, axis=0)
        block32 = jnp.pad(block32, ((0, PER32 - block32.shape[0]), (0, 0)))
        conv32_blocks.append(block32)

        block64 = jnp.concatenate([c["wf1"], c["bf1"]], axis=0)
        block64 = jnp.pad(block64, ((0, PER64 - block64.shape[0]), (0, 0)))
        conv64_blocks.append(block64)

    conv32 = jnp.concatenate(conv32_blocks, axis=0).astype(jnp.float32)
    conv64 = jnp.concatenate(conv64_blocks, axis=0).astype(jnp.float32)

    # ----- decoder: BN fold + lane padding + one bf16 slab -------------------
    d = params["dec"]
    inv1 = d["bn1_g"] / jnp.sqrt(d["bn1_v"] + BN_EPS)
    w1f = d["w1"] * inv1                                   # [D_IN, H1]
    b1f = (d["b1"] - d["bn1_m"]) * inv1 + d["bn1_b"]
    inv2 = d["bn2_g"] / jnp.sqrt(d["bn2_v"] + BN_EPS)
    w2f = d["w2"] * inv2                                   # [H1, H2]
    b2f = (d["b2"] - d["bn2_m"]) * inv2 + d["bn2_b"]

    w1_blk = jnp.pad(w1f, ((0, K1 - D_IN), (0, H2P - H1)))          # [K1,  H2P]
    w2_blk = jnp.pad(w2f, ((0, H1P - H1), (0, H2P - H2)))           # [H1P, H2P]
    w3_blk = jnp.pad(d["w3"].T, ((0, 0), (0, H2P - H2)))            # [OUT, H2P]
    b1_blk = jnp.pad(b1f, ((0, 0), (0, H2P - H1)))
    b2_blk = jnp.pad(b2f, ((0, 0), (0, H2P - H2)))
    b3_blk = jnp.pad(d["b3"], ((0, 0), (0, H2P - OUT_CHANNELS)))
    dec = jnp.concatenate([w1_blk, w2_blk, w3_blk, b1_blk, b2_blk, b3_blk], axis=0)
    dec = jnp.pad(dec, ((0, DEC_ROWS - dec.shape[0]), (0, 0))).astype(jnp.bfloat16)

    return conv32, conv64, dec


def _fused_call(act, conv32, conv64, dec):
    B = act.shape[0] // (NUM_CAT_COLS + 1)
    return pl.pallas_call(
        functools.partial(_fused_tab_kernel, num_layers=NUM_LAYERS,
                          num_heads=NUM_HEADS, seq=NUM_CAT_COLS, batch=B,
                          channels=CHANNELS),
        out_shape=jax.ShapeDtypeStruct((B, OUT_CHANNELS), jnp.float32),
    )(act, conv32, conv64, dec)


# ------------------------------- parameters ---------------------------------
def init_params(key):
    keys = iter(jax.random.split(key, 128))

    def nrm(shape, std):
        return std * jax.random.normal(next(keys), shape, dtype=jnp.float32)

    C = CHANNELS
    params = {
        # EmbeddingEncoder: one embedding table per categorical column
        "cat_emb": nrm((NUM_CAT_COLS, NUM_CATEGORIES, C - ENCODER_PAD), 0.3),
        # pad_embedding (init std=0.01 as in the module)
        "pad_emb": nrm((NUM_CAT_COLS, ENCODER_PAD), 0.01),
    }

    layers = []
    for _ in range(NUM_LAYERS):
        layers.append({
            "ln1_g": jnp.ones((1, C), jnp.float32), "ln1_b": jnp.zeros((1, C), jnp.float32),
            "wq": nrm((C, C), 1.0 / math.sqrt(C)), "bq": jnp.zeros((1, C), jnp.float32),
            "wk": nrm((C, C), 1.0 / math.sqrt(C)), "bk": jnp.zeros((1, C), jnp.float32),
            "wv": nrm((C, C), 1.0 / math.sqrt(C)), "bv": jnp.zeros((1, C), jnp.float32),
            "wo": nrm((C, C), 1.0 / math.sqrt(C)), "bo": jnp.zeros((1, C), jnp.float32),
            "ln2_g": jnp.ones((1, C), jnp.float32), "ln2_b": jnp.zeros((1, C), jnp.float32),
            "wf1": nrm((C, 2 * C), 1.0 / math.sqrt(C)), "bf1": nrm((1, 2 * C), 0.01),
            "wf2": nrm((2 * C, C), 1.0 / math.sqrt(2 * C)), "bf2": nrm((1, C), 0.01),
        })
    params["convs"] = layers

    # StackEncoder column stats + LayerNorm(num_numerical)
    params["num_mean"] = nrm((NUM_NUM_COLS,), 1.0)
    params["num_std"] = jnp.abs(nrm((NUM_NUM_COLS,), 1.0)) + 0.5
    params["num_ln_g"] = jnp.ones((NUM_NUM_COLS,), jnp.float32)
    params["num_ln_b"] = jnp.zeros((NUM_NUM_COLS,), jnp.float32)

    d_in = NUM_CAT_COLS * CHANNELS + NUM_NUM_COLS
    h1, h2 = 2 * d_in, 4 * d_in
    params["dec"] = {
        "w1": nrm((d_in, h1), 1.0 / math.sqrt(d_in)), "b1": nrm((1, h1), 0.01),
        "bn1_g": jnp.ones((1, h1), jnp.float32), "bn1_b": jnp.zeros((1, h1), jnp.float32),
        "bn1_m": jnp.zeros((1, h1), jnp.float32), "bn1_v": jnp.ones((1, h1), jnp.float32),
        "w2": nrm((h1, h2), 1.0 / math.sqrt(h1)), "b2": nrm((1, h2), 0.01),
        "bn2_g": jnp.ones((1, h2), jnp.float32), "bn2_b": jnp.zeros((1, h2), jnp.float32),
        "bn2_m": jnp.zeros((1, h2), jnp.float32), "bn2_v": jnp.ones((1, h2), jnp.float32),
        "w3": nrm((h2, OUT_CHANNELS), 1.0 / math.sqrt(h2)), "b3": nrm((1, OUT_CHANNELS), 0.01),
    }
    return params


# --------------------------- full forward (Pallas) ---------------------------
def _encode(feat_cat, feat_num, params):
    B = feat_cat.shape[0]
    # categorical: per-column embedding lookup + positional pad (JAX glue)
    cols = [params["cat_emb"][c][feat_cat[:, c]] for c in range(NUM_CAT_COLS)]
    x_cat = jnp.stack(cols, axis=1)                                     # [B, ncat, C-pad]
    pad = jnp.broadcast_to(params["pad_emb"][None], (B, NUM_CAT_COLS, ENCODER_PAD))
    x_cat = jnp.concatenate([x_cat, pad], axis=-1)                      # [B, ncat, C]
    # numerical: StackEncoder normalization + LayerNorm (tiny; JAX glue)
    x_num = (feat_num - params["num_mean"]) / params["num_std"]
    mu = jnp.mean(x_num, axis=-1, keepdims=True)
    var = jnp.mean((x_num - mu) ** 2, axis=-1, keepdims=True)
    x_num = (x_num - mu) / jnp.sqrt(var + LN_EPS) * params["num_ln_g"] + params["num_ln_b"]
    return x_cat, x_num


def tab_transformer_forward(feat_cat, feat_num, params):
    B = feat_cat.shape[0]
    x_cat, x_num = _encode(feat_cat, feat_num, params)
    # [B, S, C] -> [S*B, C] (row = s*B + b): every per-column batch slab stays
    # 8-sublane aligned in the kernel.  The numerical features (zero-padded to
    # C lanes) ride in the same activation slab as rows SB..SB+B-1 so the
    # kernel has a single activation operand.
    x_sb = jnp.transpose(x_cat, (1, 0, 2)).reshape(NUM_CAT_COLS * B, CHANNELS)
    num_pad = jnp.pad(x_num.astype(jnp.float32),
                      ((0, 0), (0, CHANNELS - NUM_NUM_COLS)))
    act = jnp.concatenate([x_sb, num_pad], axis=0)                      # [(S+1)*B, C]
    conv32, conv64, dec = _prepare_kernel_args(params)
    return _fused_call(act, conv32, conv64, dec)


# ------------------------ pure-JAX reference (checking) ----------------------
def _conv_ref(x, p):
    B, S, C = x.shape
    H, D = NUM_HEADS, CHANNELS // NUM_HEADS

    def ln(z, g, b):
        mu = z.mean(-1, keepdims=True)
        var = ((z - mu) ** 2).mean(-1, keepdims=True)
        return (z - mu) / jnp.sqrt(var + LN_EPS) * g[0] + b[0]

    xn = ln(x, p["ln1_g"], p["ln1_b"])
    q = jnp.dot(xn, p["wq"], precision=_HI) + p["bq"][0]
    k = jnp.dot(xn, p["wk"], precision=_HI) + p["bk"][0]
    v = jnp.dot(xn, p["wv"], precision=_HI) + p["bv"][0]
    q = q.reshape(B, S, H, D).transpose(0, 2, 1, 3) / math.sqrt(D)
    k = k.reshape(B, S, H, D).transpose(0, 2, 1, 3)
    v = v.reshape(B, S, H, D).transpose(0, 2, 1, 3)
    s = jnp.einsum("bhqd,bhkd->bhqk", q, k, precision=_HI)
    pattn = jax.nn.softmax(s, axis=-1)
    o = jnp.einsum("bhqk,bhkd->bhqd", pattn, v, precision=_HI)
    o = o.transpose(0, 2, 1, 3).reshape(B, S, C)
    attn_out = jnp.dot(o, p["wo"], precision=_HI) + p["bo"][0]
    x1 = xn + attn_out
    y = ln(x1, p["ln2_g"], p["ln2_b"])
    h = jax.nn.gelu(jnp.dot(y, p["wf1"], precision=_HI) + p["bf1"][0], approximate=False)
    h = jnp.dot(h, p["wf2"], precision=_HI) + p["bf2"][0]
    return x1 + h


def _decoder_ref(x, p):
    def bn(z, g, b, m, v):
        return (z - m[0]) / jnp.sqrt(v[0] + BN_EPS) * g[0] + b[0]

    h = bn(jnp.dot(x, p["w1"], precision=_HI) + p["b1"][0],
           p["bn1_g"], p["bn1_b"], p["bn1_m"], p["bn1_v"])
    h = jax.nn.selu(h)
    h = bn(jnp.dot(h, p["w2"], precision=_HI) + p["b2"][0],
           p["bn2_g"], p["bn2_b"], p["bn2_m"], p["bn2_v"])
    h = jax.nn.selu(h)
    return jnp.dot(h, p["w3"], precision=_HI) + p["b3"][0]


def tab_transformer_ref(feat_cat, feat_num, params):
    B = feat_cat.shape[0]
    x_cat, x_num = _encode(feat_cat, feat_num, params)
    for lp in params["convs"]:
        x_cat = _conv_ref(x_cat, lp)
    x = jnp.concatenate([x_cat.reshape(B, -1), x_num], axis=1)
    return _decoder_ref(x, params["dec"])


# ------------------------------------ main -----------------------------------
if __name__ == "__main__":
    key = jax.random.PRNGKey(0)
    k_param, k_cat, k_num = jax.random.split(key, 3)
    params = init_params(k_param)

    feat_cat = jax.random.randint(k_cat, (BATCH, NUM_CAT_COLS), 0, NUM_CATEGORIES)
    feat_num = jax.random.normal(k_num, (BATCH, NUM_NUM_COLS), dtype=jnp.float32)

    out = jax.block_until_ready(tab_transformer_forward(feat_cat, feat_num, params))
    assert out.shape == (BATCH, OUT_CHANNELS), out.shape
    assert bool(jnp.all(jnp.isfinite(out)))

    ref = jax.block_until_ready(tab_transformer_ref(feat_cat, feat_num, params))
    np.testing.assert_allclose(np.asarray(out), np.asarray(ref), rtol=5e-2, atol=5e-2)

    print("KERNEL_OK")
</pallas_src>

<mosaic_0001>
module attributes {stable_mosaic.version = 11 : i64} {
  func.func @_fused_tab_kernel(%arg0: memref<56x32xf32, #tpu.memory_space<vmem>>, %arg1: memref<672x32xf32, #tpu.memory_space<vmem>>, %arg2: memref<80x64xf32, #tpu.memory_space<vmem>>, %arg3: memref<752x896xbf16, #tpu.memory_space<vmem>>, %arg4: memref<8x8xf32, #tpu.memory_space<vmem>>) attributes {dimension_semantics = [], scalar_prefetch = 0 : i64, scratch_operands = 0 : i64, tpu.core_type = #tpu.core_type<tc>} {
    %c0 = arith.constant 0 : index
    %c0_0 = arith.constant 0 : index
    %0 = vector.load %arg0[%c0, %c0_0] : memref<56x32xf32, #tpu.memory_space<vmem>>, vector<48x32xf32>
    %1 = tpu.iota {dimensions = array<i32: 0>} : vector<48x48xi32>
    %2 = tpu.iota {dimensions = array<i32: 1>} : vector<48x48xi32>
    %c7_i32 = arith.constant 7 : i32
    %3 = vector.broadcast %c7_i32 : i32 to vector<48x48xi32>
    %4 = arith.andi %1, %3 : vector<48x48xi32>
    %c7_i32_1 = arith.constant 7 : i32
    %5 = vector.broadcast %c7_i32_1 : i32 to vector<48x48xi32>
    %6 = arith.andi %2, %5 : vector<48x48xi32>
    %7 = arith.cmpi eq, %4, %6 : vector<48x48xi32>
    %cst = arith.constant 0.000000e+00 : f32
    %cst_2 = arith.constant -1.000000e+30 : f32
    %8 = vector.broadcast %cst : f32 to vector<48x48xf32>
    %9 = vector.broadcast %cst_2 : f32 to vector<48x48xf32>
    %10 = arith.select %7, %8, %9 : vector<48x48xi1>, vector<48x48xf32>
    %c320 = arith.constant 320 : index
    %c0_3 = arith.constant 0 : index
    %11 = vector.load %arg1[%c320, %c0_3] : memref<672x32xf32, #tpu.memory_space<vmem>>, vector<1x32xf32>
    %c321 = arith.constant 321 : index
    %c0_4 = arith.constant 0 : index
    %12 = vector.load %arg1[%c321, %c0_4] : memref<672x32xf32, #tpu.memory_space<vmem>>, vector<1x32xf32>
    %cst_5 = arith.constant dense<0.000000e+00> : vector<48xf32>
    %13 = vector.multi_reduction <add>, %0, %cst_5 [1] : vector<48x32xf32> to vector<48xf32>
    %14 = vector.shape_cast %13 : vector<48xf32> to vector<48x1xf32>
    %cst_6 = arith.constant 3.200000e+01 : f32
    %15 = vector.broadcast %cst_6 : f32 to vector<48x1xf32>
    %16 = arith.divf %14, %15 : vector<48x1xf32>
    %17 = vector.broadcast %16 : vector<48x1xf32> to vector<48x32xf32>
    %18 = arith.subf %0, %17 : vector<48x32xf32>
    %19 = arith.mulf %18, %18 : vector<48x32xf32>
    %cst_7 = arith.constant dense<0.000000e+00> : vector<48xf32>
    %20 = vector.multi_reduction <add>, %19, %cst_7 [1] : vector<48x32xf32> to vector<48xf32>
    %21 = vector.shape_cast %20 : vector<48xf32> to vector<48x1xf32>
    %cst_8 = arith.constant 3.200000e+01 : f32
    %22 = vector.broadcast %cst_8 : f32 to vector<48x1xf32>
    %23 = arith.divf %21, %22 : vector<48x1xf32>
    %24 = vector.broadcast %16 : vector<48x1xf32> to vector<48x32xf32>
    %25 = arith.subf %0, %24 : vector<48x32xf32>
    %cst_9 = arith.constant 9.99999974E-6 : f32
    %26 = vector.broadcast %cst_9 : f32 to vector<48x1xf32>
    %27 = arith.addf %23, %26 : vector<48x1xf32>
    %28 = math.rsqrt %27 : vector<48x1xf32>
    %29 = vector.broadcast %28 : vector<48x1xf32> to vector<48x32xf32>
    %30 = arith.mulf %25, %29 : vector<48x32xf32>
    %31 = vector.broadcast %11 : vector<1x32xf32> to vector<48x32xf32>
    %32 = arith.mulf %30, %31 : vector<48x32xf32>
    %33 = vector.broadcast %12 : vector<1x32xf32> to vector<48x32xf32>
    %34 = arith.addf %32, %33 : vector<48x32xf32>
    %cst_10 = arith.constant 0.000000e+00 : f32
    %35 = vector.broadcast %cst_10 : f32 to vector<48x32xf32>
    %c0_11 = arith.constant 0 : index
    %c0_12 = arith.constant 0 : index
    %36 = vector.load %arg1[%c0_11, %c0_12] : memref<672x32xf32, #tpu.memory_space<vmem>>, vector<32x32xf32>
    %c128 = arith.constant 128 : index
    %c0_13 = arith.constant 0 : index
    %37 = vector.load %arg1[%c128, %c0_13] : memref<672x32xf32, #tpu.memory_space<vmem>>, vector<32x32xf32>
    %c326 = arith.constant 326 : index
    %c0_14 = arith.constant 0 : index
    %38 = vector.load %arg1[%c326, %c0_14] : memref<672x32xf32, #tpu.memory_space<vmem>>, vector<1x32xf32>
    %cst_15 = arith.constant dense<0.000000e+00> : vector<48x32xf32>
    %39 = tpu.matmul %34, %36, %cst_15 {dimension_numbers = #tpu.dot_dimension_numbers<[1], [0], [0], [1], [0, 0, 1, 1], [], []>} : vector<48x32xf32>, vector<32x32xf32>, vector<48x32xf32> -> vector<48x32xf32>
    %40 = vector.broadcast %38 : vector<1x32xf32> to vector<48x32xf32>
    %41 = arith.addf %39, %40 : vector<48x32xf32>
    %cst_16 = arith.constant dense<0.000000e+00> : vector<48x48xf32>
    %42 = tpu.matmul %41, %34, %cst_16 {dimension_numbers = #tpu.dot_dimension_numbers<[1], [1], [0], [0], [0, 0, 1, 0], [], []>} : vector<48x32xf32>, vector<48x32xf32>, vector<48x48xf32> -> vector<48x48xf32>
    %43 = arith.addf %42, %10 : vector<48x48xf32>
    %cst_17 = arith.constant dense<0xFF800000> : vector<48xf32>
    %44 = vector.multi_reduction <maximumf>, %43, %cst_17 [1] : vector<48x48xf32> to vector<48xf32>
    %45 = vector.shape_cast %44 : vector<48xf32> to vector<48x1xf32>
    %46 = vector.broadcast %45 : vector<48x1xf32> to vector<48x48xf32>
    %47 = arith.subf %43, %46 : vector<48x48xf32>
    %48 = math.exp %47 : vector<48x48xf32>
    %cst_18 = arith.constant dense<0.000000e+00> : vector<48xf32>
    %49 = vector.multi_reduction <add>, %48, %cst_18 [1] : vector<48x48xf32> to vector<48xf32>
    %50 = vector.shape_cast %49 : vector<48xf32> to vector<48x1xf32>
    %51 = tpu.reciprocal %50 {approx = true} : vector<48x1xf32> -> vector<48x1xf32>
    %52 = vector.broadcast %51 : vector<48x1xf32> to vector<48x48xf32>
    %53 = arith.mulf %48, %52 : vector<48x48xf32>
    %cst_19 = arith.constant dense<0.000000e+00> : vector<48x32xf32>
    %54 = tpu.matmul %34, %37, %cst_19 {dimension_numbers = #tpu.dot_dimension_numbers<[1], [0], [0], [1], [0, 0, 1, 1], [], []>} : vector<48x32xf32>, vector<32x32xf32>, vector<48x32xf32> -> vector<48x32xf32>
    %cst_20 = arith.constant dense<0.000000e+00> : vector<48x32xf32>
    %55 = tpu.matmul %53, %54, %cst_20 {dimension_numbers = #tpu.dot_dimension_numbers<[1], [0], [0], [1], [0, 0, 1, 1], [], []>} : vector<48x48xf32>, vector<48x32xf32>, vector<48x32xf32> -> vector<48x32xf32>
    %56 = arith.addf %35, %55 : vector<48x32xf32>
    %c32 = arith.constant 32 : index
    %c0_21 = arith.constant 0 : index
    %57 = vector.load %arg1[%c32, %c0_21] : memref<672x32xf32, #tpu.memory_space<vmem>>, vector<32x32xf32>
    %c160 = arith.constant 160 : index
    %c0_22 = arith.constant 0 : index
    %58 = vector.load %arg1[%c160, %c0_22] : memref<672x32xf32, #tpu.memory_space<vmem>>, vector<32x32xf32>
    %c327 = arith.constant 327 : index
    %c0_23 = arith.constant 0 : index
    %59 = vector.load %arg1[%c327, %c0_23] : memref<672x32xf32, #tpu.memory_space<vmem>>, vector<1x32xf32>
    %cst_24 = arith.constant dense<0.000000e+00> : vector<48x32xf32>
    %60 = tpu.matmul %34, %57, %cst_24 {dimension_numbers = #tpu.dot_dimension_numbers<[1], [0], [0], [1], [0, 0, 1, 1], [], []>} : vector<48x32xf32>, vector<32x32xf32>, vector<48x32xf32> -> vector<48x32xf32>
    %61 = vector.broadcast %59 : vector<1x32xf32> to vector<48x32xf32>
    %62 = arith.addf %60, %61 : vector<48x32xf32>
    %cst_25 = arith.constant dense<0.000000e+00> : vector<48x48xf32>
    %63 = tpu.matmul %62, %34, %cst_25 {dimension_numbers = #tpu.dot_dimension_numbers<[1], [1], [0], [0], [0, 0, 1, 0], [], []>} : vector<48x32xf32>, vector<48x32xf32>, vector<48x48xf32> -> vector<48x48xf32>
    %64 = arith.addf %63, %10 : vector<48x48xf32>
    %cst_26 = arith.constant dense<0xFF800000> : vector<48xf32>
    %65 = vector.multi_reduction <maximumf>, %64, %cst_26 [1] : vector<48x48xf32> to vector<48xf32>
    %66 = vector.shape_cast %65 : vector<48xf32> to vector<48x1xf32>
    %67 = vector.broadcast %66 : vector<48x1xf32> to vector<48x48xf32>
    %68 = arith.subf %64, %67 : vector<48x48xf32>
    %69 = math.exp %68 : vector<48x48xf32>
    %cst_27 = arith.constant dense<0.000000e+00> : vector<48xf32>
    %70 = vector.multi_reduction <add>, %69, %cst_27 [1] : vector<48x48xf32> to vector<48xf32>
    %71 = vector.shape_cast %70 : vector<48xf32> to vector<48x1xf32>
    %72 = tpu.reciprocal %71 {approx = true} : vector<48x1xf32> -> vector<48x1xf32>
    %73 = vector.broadcast %72 : vector<48x1xf32> to vector<48x48xf32>
    %74 = arith.mulf %69, %73 : vector<48x48xf32>
    %cst_28 = arith.constant dense<0.000000e+00> : vector<48x32xf32>
    %75 = tpu.matmul %34, %58, %cst_28 {dimension_numbers = #tpu.dot_dimension_numbers<[1], [0], [0], [1], [0, 0, 1, 1], [], []>} : vector<48x32xf32>, vector<32x32xf32>, vector<48x32xf32> -> vector<48x32xf32>
    %cst_29 = arith.constant dense<0.000000e+00> : vector<48x32xf32>
    %76 = tpu.matmul %74, %75, %cst_29 {dimension_numbers = #tpu.dot_dimension_numbers<[1], [0], [0], [1], [0, 0, 1, 1], [], []>} : vector<48x48xf32>, vector<48x32xf32>, vector<48x32xf32> -> vector<48x32xf32>
    %77 = arith.addf %56, %76 : vector<48x32xf32>
    %c64 = arith.constant 64 : index
    %c0_30 = arith.constant 0 : index
    %78 = vector.load %arg1[%c64, %c0_30] : memref<672x32xf32, #tpu.memory_space<vmem>>, vector<32x32xf32>
    %c192 = arith.constant 192 : index
    %c0_31 = arith.constant 0 : index
    %79 = vector.load %arg1[%c192, %c0_31] : memref<672x32xf32, #tpu.memory_space<vmem>>, vector<32x32xf32>
    %c328 = arith.constant 328 : index
    %c0_32 = arith.constant 0 : index
    %80 = vector.load %arg1[%c328, %c0_32] : memref<672x32xf32, #tpu.memory_space<vmem>>, vector<1x32xf32>
    %cst_33 = arith.constant dense<0.000000e+00> : vector<48x32xf32>
    %81 = tpu.matmul %34, %78, %cst_33 {dimension_numbers = #tpu.dot_dimension_numbers<[1], [0], [0], [1], [0, 0, 1, 1], [], []>} : vector<48x32xf32>, vector<32x32xf32>, vector<48x32xf32> -> vector<48x32xf32>
    %82 = vector.broadcast %80 : vector<1x32xf32> to vector<48x32xf32>
    %83 = arith.addf %81, %82 : vector<48x32xf32>
    %cst_34 = arith.constant dense<0.000000e+00> : vector<48x48xf32>
    %84 = tpu.matmul %83, %34, %cst_34 {dimension_numbers = #tpu.dot_dimension_numbers<[1], [1], [0], [0], [0, 0, 1, 0], [], []>} : vector<48x32xf32>, vector<48x32xf32>, vector<48x48xf32> -> vector<48x48xf32>
    %85 = arith.addf %84, %10 : vector<48x48xf32>
    %cst_35 = arith.constant dense<0xFF800000> : vector<48xf32>
    %86 = vector.multi_reduction <maximumf>, %85, %cst_35 [1] : vector<48x48xf32> to vector<48xf32>
    %87 = vector.shape_cast %86 : vector<48xf32> to vector<48x1xf32>
    %88 = vector.broadcast %87 : vector<48x1xf32> to vector<48x48xf32>
    %89 = arith.subf %85, %88 : vector<48x48xf32>
    %90 = math.exp %89 : vector<48x48xf32>
    %cst_36 = arith.constant dense<0.000000e+00> : vector<48xf32>
    %91 = vector.multi_reduction <add>, %90, %cst_36 [1] : vector<48x48xf32> to vector<48xf32>
    %92 = vector.shape_cast %91 : vector<48xf32> to vector<48x1xf32>
    %93 = tpu.reciprocal %92 {approx = true} : vector<48x1xf32> -> vector<48x1xf32>
    %94 = vector.broadcast %93 : vector<48x1xf32> to vector<48x48xf32>
    %95 = arith.mulf %90, %94 : vector<48x48xf32>
    %cst_37 = arith.constant dense<0.000000e+00> : vector<48x32xf32>
    %96 = tpu.matmul %34, %79, %cst_37 {dimension_numbers = #tpu.dot_dimension_numbers<[1], [0], [0], [1], [0, 0, 1, 1], [], []>} : vector<48x32xf32>, vector<32x32xf32>, vector<48x32xf32> -> vector<48x32xf32>
    %cst_38 = arith.constant dense<0.000000e+00> : vector<48x32xf32>
    %97 = tpu.matmul %95, %96, %cst_38 {dimension_numbers = #tpu.dot_dimension_numbers<[1], [0], [0], [1], [0, 0, 1, 1], [], []>} : vector<48x48xf32>, vector<48x32xf32>, vector<48x32xf32> -> vector<48x32xf32>
    %98 = arith.addf %77, %97 : vector<48x32xf32>
    %c96 = arith.constant 96 : index
    %c0_39 = arith.constant 0 : index
    %99 = vector.load %arg1[%c96, %c0_39] : memref<672x32xf32, #tpu.memory_space<vmem>>, vector<32x32xf32>
    %c224 = arith.constant 224 : index
    %c0_40 = arith.constant 0 : index
    %100 = vector.load %arg1[%c224, %c0_40] : memref<672x32xf32, #tpu.memory_space<vmem>>, vector<32x32xf32>
    %c329 = arith.constant 329 : index
    %c0_41 = arith.constant 0 : index
    %101 = vector.load %arg1[%c329, %c0_41] : memref<672x32xf32, #tpu.memory_space<vmem>>, vector<1x32xf32>
    %cst_42 = arith.constant dense<0.000000e+00> : vector<48x32xf32>
    %102 = tpu.matmul %34, %99, %cst_42 {dimension_numbers = #tpu.dot_dimension_numbers<[1], [0], [0], [1], [0, 0, 1, 1], [], []>} : vector<48x32xf32>, vector<32x32xf32>, vector<48x32xf32> -> vector<48x32xf32>
    %103 = vector.broadcast %101 : vector<1x32xf32> to vector<48x32xf32>
    %104 = arith.addf %102, %103 : vector<48x32xf32>
    %cst_43 = arith.constant dense<0.000000e+00> : vector<48x48xf32>
    %105 = tpu.matmul %104, %34, %cst_43 {dimension_numbers = #tpu.dot_dimension_numbers<[1], [1], [0], [0], [0, 0, 1, 0], [], []>} : vector<48x32xf32>, vector<48x32xf32>, vector<48x48xf32> -> vector<48x48xf32>
    %106 = arith.addf %105, %10 : vector<48x48xf32>
    %cst_44 = arith.constant dense<0xFF800000> : vector<48xf32>
    %107 = vector.multi_reduction <maximumf>, %106, %cst_44 [1] : vector<48x48xf32> to vector<48xf32>
    %108 = vector.shape_cast %107 : vector<48xf32> to vector<48x1xf32>
    %109 = vector.broadcast %108 : vector<48x1xf32> to vector<48x48xf32>
    %110 = arith.subf %106, %109 : vector<48x48xf32>
    %111 = math.exp %110 : vector<48x48xf32>
    %cst_45 = arith.constant dense<0.000000e+00> : vector<48xf32>
    %112 = vector.multi_reduction <add>, %111, %cst_45 [1] : vector<48x48xf32> to vector<48xf32>
    %113 = vector.shape_cast %112 : vector<48xf32> to vector<48x1xf32>
    %114 = tpu.reciprocal %113 {approx = true} : vector<48x1xf32> -> vector<48x1xf32>
    %115 = vector.broadcast %114 : vector<48x1xf32> to vector<48x48xf32>
    %116 = arith.mulf %111, %115 : vector<48x48xf32>
    %cst_46 = arith.constant dense<0.000000e+00> : vector<48x32xf32>
    %117 = tpu.matmul %34, %100, %cst_46 {dimension_numbers = #tpu.dot_dimension_numbers<[1], [0], [0], [1], [0, 0, 1, 1], [], []>} : vector<48x32xf32>, vector<32x32xf32>, vector<48x32xf32> -> vector<48x32xf32>
    %cst_47 = arith.constant dense<0.000000e+00> : vector<48x32xf32>
    %118 = tpu.matmul %116, %117, %cst_47 {dimension_numbers = #tpu.dot_dimension_numbers<[1], [0], [0], [1], [0, 0, 1, 1], [], []>} : vector<48x48xf32>, vector<48x32xf32>, vector<48x32xf32> -> vector<48x32xf32>
    %119 = arith.addf %98, %118 : vector<48x32xf32>
    %c324 = arith.constant 324 : index
    %c0_48 = arith.constant 0 : index
    %120 = vector.load %arg1[%c324, %c0_48] : memref<672x32xf32, #tpu.memory_space<vmem>>, vector<1x32xf32>
    %121 = arith.addf %34, %119 : vector<48x32xf32>
    %122 = vector.broadcast %120 : vector<1x32xf32> to vector<48x32xf32>
    %123 = arith.addf %121, %122 : vector<48x32xf32>
    %c322 = arith.constant 322 : index
    %c0_49 = arith.constant 0 : index
    %124 = vector.load %arg1[%c322, %c0_49] : memref<672x32xf32, #tpu.memory_space<vmem>>, vector<1x32xf32>
    %c323 = arith.constant 323 : index
    %c0_50 = arith.constant 0 : index
    %125 = vector.load %arg1[%c323, %c0_50] : memref<672x32xf32, #tpu.memory_space<vmem>>, vector<1x32xf32>
    %cst_51 = arith.constant dense<0.000000e+00> : vector<48xf32>
    %126 = vector.multi_reduction <add>, %123, %cst_51 [1] : vector<48x32xf32> to vector<48xf32>
    %127 = vector.shape_cast %126 : vector<48xf32> to vector<48x1xf32>
    %cst_52 = arith.constant 3.200000e+01 : f32
    %128 = vector.broadcast %cst_52 : f32 to vector<48x1xf32>
    %129 = arith.divf %127, %128 : vector<48x1xf32>
    %130 = vector.broadcast %129 : vector<48x1xf32> to vector<48x32xf32>
    %131 = arith.subf %123, %130 : vector<48x32xf32>
    %132 = arith.mulf %131, %131 : vector<48x32xf32>
    %cst_53 = arith.constant dense<0.000000e+00> : vector<48xf32>
    %133 = vector.multi_reduction <add>, %132, %cst_53 [1] : vector<48x32xf32> to vector<48xf32>
    %134 = vector.shape_cast %133 : vector<48xf32> to vector<48x1xf32>
    %cst_54 = arith.constant 3.200000e+01 : f32
    %135 = vector.broadcast %cst_54 : f32 to vector<48x1xf32>
    %136 = arith.divf %134, %135 : vector<48x1xf32>
    %137 = vector.broadcast %129 : vector<48x1xf32> to vector<48x32xf32>
    %138 = arith.subf %123, %137 : vector<48x32xf32>
    %cst_55 = arith.constant 9.99999974E-6 : f32
    %139 = vector.broadcast %cst_55 : f32 to vector<48x1xf32>
    %140 = arith.addf %136, %139 : vector<48x1xf32>
    %141 = math.rsqrt %140 : vector<48x1xf32>
    %142 = vector.broadcast %141 : vector<48x1xf32> to vector<48x32xf32>
    %143 = arith.mulf %138, %142 : vector<48x32xf32>
    %144 = vector.broadcast %124 : vector<1x32xf32> to vector<48x32xf32>
    %145 = arith.mulf %143, %144 : vector<48x32xf32>
    %146 = vector.broadcast %125 : vector<1x32xf32> to vector<48x32xf32>
    %147 = arith.addf %145, %146 : vector<48x32xf32>
    %c0_56 = arith.constant 0 : index
    %c0_57 = arith.constant 0 : index
    %148 = vector.load %arg2[%c0_56, %c0_57] : memref<80x64xf32, #tpu.memory_space<vmem>>, vector<32x64xf32>
    %c32_58 = arith.constant 32 : index
    %c0_59 = arith.constant 0 : index
    %149 = vector.load %arg2[%c32_58, %c0_59] : memref<80x64xf32, #tpu.memory_space<vmem>>, vector<1x64xf32>
    %cst_60 = arith.constant dense<0.000000e+00> : vector<48x64xf32>
    %150 = tpu.matmul %147, %148, %cst_60 {dimension_numbers = #tpu.dot_dimension_numbers<[1], [0], [0], [1], [0, 0, 1, 1], [], []>} : vector<48x32xf32>, vector<32x64xf32>, vector<48x64xf32> -> vector<48x64xf32>
    %151 = vector.broadcast %149 : vector<1x64xf32> to vector<48x64xf32>
    %152 = arith.addf %150, %151 : vector<48x64xf32>
    %cst_61 = arith.constant 5.000000e-01 : f32
    %153 = vector.broadcast %cst_61 : f32 to vector<48x64xf32>
    %154 = arith.mulf %153, %152 : vector<48x64xf32>
    %cst_62 = arith.constant 4.471500e-02 : f32
    %155 = vector.broadcast %cst_62 : f32 to vector<48x64xf32>
    %156 = arith.mulf %155, %152 : vector<48x64xf32>
    %157 = arith.mulf %156, %152 : vector<48x64xf32>
    %158 = arith.mulf %157, %152 : vector<48x64xf32>
    %159 = arith.addf %152, %158 : vector<48x64xf32>
    %cst_63 = arith.constant 0.797884583 : f32
    %160 = vector.broadcast %cst_63 : f32 to vector<48x64xf32>
    %161 = arith.mulf %160, %159 : vector<48x64xf32>
    %162 = math.tanh %161 : vector<48x64xf32>
    %cst_64 = arith.constant 1.000000e+00 : f32
    %163 = vector.broadcast %cst_64 : f32 to vector<48x64xf32>
    %164 = arith.addf %163, %162 : vector<48x64xf32>
    %165 = arith.mulf %154, %164 : vector<48x64xf32>
    %c256 = arith.constant 256 : index
    %c0_65 = arith.constant 0 : index
    %166 = vector.load %arg1[%c256, %c0_65] : memref<672x32xf32, #tpu.memory_space<vmem>>, vector<64x32xf32>
    %c325 = arith.constant 325 : index
    %c0_66 = arith.constant 0 : index
    %167 = vector.load %arg1[%c325, %c0_66] : memref<672x32xf32, #tpu.memory_space<vmem>>, vector<1x32xf32>
    %cst_67 = arith.constant dense<0.000000e+00> : vector<48x32xf32>
    %168 = tpu.matmul %165, %166, %cst_67 {dimension_numbers = #tpu.dot_dimension_numbers<[1], [0], [0], [1], [0, 0, 1, 1], [], []>} : vector<48x64xf32>, vector<64x32xf32>, vector<48x32xf32> -> vector<48x32xf32>
    %169 = vector.broadcast %167 : vector<1x32xf32> to vector<48x32xf32>
    %170 = arith.addf %168, %169 : vector<48x32xf32>
    %171 = arith.addf %123, %170 : vector<48x32xf32>
    %c656 = arith.constant 656 : index
    %c0_68 = arith.constant 0 : index
    %172 = vector.load %arg1[%c656, %c0_68] : memref<672x32xf32, #tpu.memory_space<vmem>>, vector<1x32xf32>
    %c657 = arith.constant 657 : index
    %c0_69 = arith.constant 0 : index
    %173 = vector.load %arg1[%c657, %c0_69] : memref<672x32xf32, #tpu.memory_space<vmem>>, vector<1x32xf32>
    %cst_70 = arith.constant dense<0.000000e+00> : vector<48xf32>
    %174 = vector.multi_reduction <add>, %171, %cst_70 [1] : vector<48x32xf32> to vector<48xf32>
    %175 = vector.shape_cast %174 : vector<48xf32> to vector<48x1xf32>
    %cst_71 = arith.constant 3.200000e+01 : f32
    %176 = vector.broadcast %cst_71 : f32 to vector<48x1xf32>
    %177 = arith.divf %175, %176 : vector<48x1xf32>
    %178 = vector.broadcast %177 : vector<48x1xf32> to vector<48x32xf32>
    %179 = arith.subf %171, %178 : vector<48x32xf32>
    %180 = arith.mulf %179, %179 : vector<48x32xf32>
    %cst_72 = arith.constant dense<0.000000e+00> : vector<48xf32>
    %181 = vector.multi_reduction <add>, %180, %cst_72 [1] : vector<48x32xf32> to vector<48xf32>
    %182 = vector.shape_cast %181 : vector<48xf32> to vector<48x1xf32>
    %cst_73 = arith.constant 3.200000e+01 : f32
    %183 = vector.broadcast %cst_73 : f32 to vector<48x1xf32>
    %184 = arith.divf %182, %183 : vector<48x1xf32>
    %185 = vector.broadcast %177 : vector<48x1xf32> to vector<48x32xf32>
    %186 = arith.subf %171, %185 : vector<48x32xf32>
    %cst_74 = arith.constant 9.99999974E-6 : f32
    %187 = vector.broadcast %cst_74 : f32 to vector<48x1xf32>
    %188 = arith.addf %184, %187 : vector<48x1xf32>
    %189 = math.rsqrt %188 : vector<48x1xf32>
    %190 = vector.broadcast %189 : vector<48x1xf32> to vector<48x32xf32>
    %191 = arith.mulf %186, %190 : vector<48x32xf32>
    %192 = vector.broadcast %172 : vector<1x32xf32> to vector<48x32xf32>
    %193 = arith.mulf %191, %192 : vector<48x32xf32>
    %194 = vector.broadcast %173 : vector<1x32xf32> to vector<48x32xf32>
    %195 = arith.addf %193, %194 : vector<48x32xf32>
    %cst_75 = arith.constant 0.000000e+00 : f32
    %196 = vector.broadcast %cst_75 : f32 to vector<48x32xf32>
    %c336 = arith.constant 336 : index
    %c0_76 = arith.constant 0 : index
    %197 = vector.load %arg1[%c336, %c0_76] : memref<672x32xf32, #tpu.memory_space<vmem>>, vector<32x32xf32>
    %c464 = arith.constant 464 : index
    %c0_77 = arith.constant 0 : index
    %198 = vector.load %arg1[%c464, %c0_77] : memref<672x32xf32, #tpu.memory_space<vmem>>, vector<32x32xf32>
    %c662 = arith.constant 662 : index
    %c0_78 = arith.constant 0 : index
    %199 = vector.load %arg1[%c662, %c0_78] : memref<672x32xf32, #tpu.memory_space<vmem>>, vector<1x32xf32>
    %cst_79 = arith.constant dense<0.000000e+00> : vector<48x32xf32>
    %200 = tpu.matmul %195, %197, %cst_79 {dimension_numbers = #tpu.dot_dimension_numbers<[1], [0], [0], [1], [0, 0, 1, 1], [], []>} : vector<48x32xf32>, vector<32x32xf32>, vector<48x32xf32> -> vector<48x32xf32>
    %201 = vector.broadcast %199 : vector<1x32xf32> to vector<48x32xf32>
    %202 = arith.addf %200, %201 : vector<48x32xf32>
    %cst_80 = arith.constant dense<0.000000e+00> : vector<48x48xf32>
    %203 = tpu.matmul %202, %195, %cst_80 {dimension_numbers = #tpu.dot_dimension_numbers<[1], [1], [0], [0], [0, 0, 1, 0], [], []>} : vector<48x32xf32>, vector<48x32xf32>, vector<48x48xf32> -> vector<48x48xf32>
    %204 = arith.addf %203, %10 : vector<48x48xf32>
    %cst_81 = arith.constant dense<0xFF800000> : vector<48xf32>
    %205 = vector.multi_reduction <maximumf>, %204, %cst_81 [1] : vector<48x48xf32> to vector<48xf32>
    %206 = vector.shape_cast %205 : vector<48xf32> to vector<48x1xf32>
    %207 = vector.broadcast %206 : vector<48x1xf32> to vector<48x48xf32>
    %208 = arith.subf %204, %207 : vector<48x48xf32>
    %209 = math.exp %208 : vector<48x48xf32>
    %cst_82 = arith.constant dense<0.000000e+00> : vector<48xf32>
    %210 = vector.multi_reduction <add>, %209, %cst_82 [1] : vector<48x48xf32> to vector<48xf32>
    %211 = vector.shape_cast %210 : vector<48xf32> to vector<48x1xf32>
    %212 = tpu.reciprocal %211 {approx = true} : vector<48x1xf32> -> vector<48x1xf32>
    %213 = vector.broadcast %212 : vector<48x1xf32> to vector<48x48xf32>
    %214 = arith.mulf %209, %213 : vector<48x48xf32>
    %cst_83 = arith.constant dense<0.000000e+00> : vector<48x32xf32>
    %215 = tpu.matmul %195, %198, %cst_83 {dimension_numbers = #tpu.dot_dimension_numbers<[1], [0], [0], [1], [0, 0, 1, 1], [], []>} : vector<48x32xf32>, vector<32x32xf32>, vector<48x32xf32> -> vector<48x32xf32>
    %cst_84 = arith.constant dense<0.000000e+00> : vector<48x32xf32>
    %216 = tpu.matmul %214, %215, %cst_84 {dimension_numbers = #tpu.dot_dimension_numbers<[1], [0], [0], [1], [0, 0, 1, 1], [], []>} : vector<48x48xf32>, vector<48x32xf32>, vector<48x32xf32> -> vector<48x32xf32>
    %217 = arith.addf %196, %216 : vector<48x32xf32>
    %c368 = arith.constant 368 : index
    %c0_85 = arith.constant 0 : index
    %218 = vector.load %arg1[%c368, %c0_85] : memref<672x32xf32, #tpu.memory_space<vmem>>, vector<32x32xf32>
    %c496 = arith.constant 496 : index
    %c0_86 = arith.constant 0 : index
    %219 = vector.load %arg1[%c496, %c0_86] : memref<672x32xf32, #tpu.memory_space<vmem>>, vector<32x32xf32>
    %c663 = arith.constant 663 : index
    %c0_87 = arith.constant 0 : index
    %220 = vector.load %arg1[%c663, %c0_87] : memref<672x32xf32, #tpu.memory_space<vmem>>, vector<1x32xf32>
    %cst_88 = arith.constant dense<0.000000e+00> : vector<48x32xf32>
    %221 = tpu.matmul %195, %218, %cst_88 {dimension_numbers = #tpu.dot_dimension_numbers<[1], [0], [0], [1], [0, 0, 1, 1], [], []>} : vector<48x32xf32>, vector<32x32xf32>, vector<48x32xf32> -> vector<48x32xf32>
    %222 = vector.broadcast %220 : vector<1x32xf32> to vector<48x32xf32>
    %223 = arith.addf %221, %222 : vector<48x32xf32>
    %cst_89 = arith.constant dense<0.000000e+00> : vector<48x48xf32>
    %224 = tpu.matmul %223, %195, %cst_89 {dimension_numbers = #tpu.dot_dimension_numbers<[1], [1], [0], [0], [0, 0, 1, 0], [], []>} : vector<48x32xf32>, vector<48x32xf32>, vector<48x48xf32> -> vector<48x48xf32>
    %225 = arith.addf %224, %10 : vector<48x48xf32>
    %cst_90 = arith.constant dense<0xFF800000> : vector<48xf32>
    %226 = vector.multi_reduction <maximumf>, %225, %cst_90 [1] : vector<48x48xf32> to vector<48xf32>
    %227 = vector.shape_cast %226 : vector<48xf32> to vector<48x1xf32>
    %228 = vector.broadcast %227 : vector<48x1xf32> to vector<48x48xf32>
    %229 = arith.subf %225, %228 : vector<48x48xf32>
    %230 = math.exp %229 : vector<48x48xf32>
    %cst_91 = arith.constant dense<0.000000e+00> : vector<48xf32>
    %231 = vector.multi_reduction <add>, %230, %cst_91 [1] : vector<48x48xf32> to vector<48xf32>
    %232 = vector.shape_cast %231 : vector<48xf32> to vector<48x1xf32>
    %233 = tpu.reciprocal %232 {approx = true} : vector<48x1xf32> -> vector<48x1xf32>
    %234 = vector.broadcast %233 : vector<48x1xf32> to vector<48x48xf32>
    %235 = arith.mulf %230, %234 : vector<48x48xf32>
    %cst_92 = arith.constant dense<0.000000e+00> : vector<48x32xf32>
    %236 = tpu.matmul %195, %219, %cst_92 {dimension_numbers = #tpu.dot_dimension_numbers<[1], [0], [0], [1], [0, 0, 1, 1], [], []>} : vector<48x32xf32>, vector<32x32xf32>, vector<48x32xf32> -> vector<48x32xf32>
    %cst_93 = arith.constant dense<0.000000e+00> : vector<48x32xf32>
    %237 = tpu.matmul %235, %236, %cst_93 {dimension_numbers = #tpu.dot_dimension_numbers<[1], [0], [0], [1], [0, 0, 1, 1], [], []>} : vector<48x48xf32>, vector<48x32xf32>, vector<48x32xf32> -> vector<48x32xf32>
    %238 = arith.addf %217, %237 : vector<48x32xf32>
    %c400 = arith.constant 400 : index
    %c0_94 = arith.constant 0 : index
    %239 = vector.load %arg1[%c400, %c0_94] : memref<672x32xf32, #tpu.memory_space<vmem>>, vector<32x32xf32>
    %c528 = arith.constant 528 : index
    %c0_95 = arith.constant 0 : index
    %240 = vector.load %arg1[%c528, %c0_95] : memref<672x32xf32, #tpu.memory_space<vmem>>, vector<32x32xf32>
    %c664 = arith.constant 664 : index
    %c0_96 = arith.constant 0 : index
    %241 = vector.load %arg1[%c664, %c0_96] : memref<672x32xf32, #tpu.memory_space<vmem>>, vector<1x32xf32>
    %cst_97 = arith.constant dense<0.000000e+00> : vector<48x32xf32>
    %242 = tpu.matmul %195, %239, %cst_97 {dimension_numbers = #tpu.dot_dimension_numbers<[1], [0], [0], [1], [0, 0, 1, 1], [], []>} : vector<48x32xf32>, vector<32x32xf32>, vector<48x32xf32> -> vector<48x32xf32>
    %243 = vector.broadcast %241 : vector<1x32xf32> to vector<48x32xf32>
    %244 = arith.addf %242, %243 : vector<48x32xf32>
    %cst_98 = arith.constant dense<0.000000e+00> : vector<48x48xf32>
    %245 = tpu.matmul %244, %195, %cst_98 {dimension_numbers = #tpu.dot_dimension_numbers<[1], [1], [0], [0], [0, 0, 1, 0], [], []>} : vector<48x32xf32>, vector<48x32xf32>, vector<48x48xf32> -> vector<48x48xf32>
    %246 = arith.addf %245, %10 : vector<48x48xf32>
    %cst_99 = arith.constant dense<0xFF800000> : vector<48xf32>
    %247 = vector.multi_reduction <maximumf>, %246, %cst_99 [1] : vector<48x48xf32> to vector<48xf32>
    %248 = vector.shape_cast %247 : vector<48xf32> to vector<48x1xf32>
    %249 = vector.broadcast %248 : vector<48x1xf32> to vector<48x48xf32>
    %250 = arith.subf %246, %249 : vector<48x48xf32>
    %251 = math.exp %250 : vector<48x48xf32>
    %cst_100 = arith.constant dense<0.000000e+00> : vector<48xf32>
    %252 = vector.multi_reduction <add>, %251, %cst_100 [1] : vector<48x48xf32> to vector<48xf32>
    %253 = vector.shape_cast %252 : vector<48xf32> to vector<48x1xf32>
    %254 = tpu.reciprocal %253 {approx = true} : vector<48x1xf32> -> vector<48x1xf32>
    %255 = vector.broadcast %254 : vector<48x1xf32> to vector<48x48xf32>
    %256 = arith.mulf %251, %255 : vector<48x48xf32>
    %cst_101 = arith.constant dense<0.000000e+00> : vector<48x32xf32>
    %257 = tpu.matmul %195, %240, %cst_101 {dimension_numbers = #tpu.dot_dimension_numbers<[1], [0], [0], [1], [0, 0, 1, 1], [], []>} : vector<48x32xf32>, vector<32x32xf32>, vector<48x32xf32> -> vector<48x32xf32>
    %cst_102 = arith.constant dense<0.000000e+00> : vector<48x32xf32>
    %258 = tpu.matmul %256, %257, %cst_102 {dimension_numbers = #tpu.dot_dimension_numbers<[1], [0], [0], [1], [0, 0, 1, 1], [], []>} : vector<48x48xf32>, vector<48x32xf32>, vector<48x32xf32> -> vector<48x32xf32>
    %259 = arith.addf %238, %258 : vector<48x32xf32>
    %c432 = arith.constant 432 : index
    %c0_103 = arith.constant 0 : index
    %260 = vector.load %arg1[%c432, %c0_103] : memref<672x32xf32, #tpu.memory_space<vmem>>, vector<32x32xf32>
    %c560 = arith.constant 560 : index
    %c0_104 = arith.constant 0 : index
    %261 = vector.load %arg1[%c560, %c0_104] : memref<672x32xf32, #tpu.memory_space<vmem>>, vector<32x32xf32>
    %c665 = arith.constant 665 : index
    %c0_105 = arith.constant 0 : index
    %262 = vector.load %arg1[%c665, %c0_105] : memref<672x32xf32, #tpu.memory_space<vmem>>, vector<1x32xf32>
    %cst_106 = arith.constant dense<0.000000e+00> : vector<48x32xf32>
    %263 = tpu.matmul %195, %260, %cst_106 {dimension_numbers = #tpu.dot_dimension_numbers<[1], [0], [0], [1], [0, 0, 1, 1], [], []>} : vector<48x32xf32>, vector<32x32xf32>, vector<48x32xf32> -> vector<48x32xf32>
    %264 = vector.broadcast %262 : vector<1x32xf32> to vector<48x32xf32>
    %265 = arith.addf %263, %264 : vector<48x32xf32>
    %cst_107 = arith.constant dense<0.000000e+00> : vector<48x48xf32>
    %266 = tpu.matmul %265, %195, %cst_107 {dimension_numbers = #tpu.dot_dimension_numbers<[1], [1], [0], [0], [0, 0, 1, 0], [], []>} : vector<48x32xf32>, vector<48x32xf32>, vector<48x48xf32> -> vector<48x48xf32>
    %267 = arith.addf %266, %10 : vector<48x48xf32>
    %cst_108 = arith.constant dense<0xFF800000> : vector<48xf32>
    %268 = vector.multi_reduction <maximumf>, %267, %cst_108 [1] : vector<48x48xf32> to vector<48xf32>
    %269 = vector.shape_cast %268 : vector<48xf32> to vector<48x1xf32>
    %270 = vector.broadcast %269 : vector<48x1xf32> to vector<48x48xf32>
    %271 = arith.subf %267, %270 : vector<48x48xf32>
    %272 = math.exp %271 : vector<48x48xf32>
    %cst_109 = arith.constant dense<0.000000e+00> : vector<48xf32>
    %273 = vector.multi_reduction <add>, %272, %cst_109 [1] : vector<48x48xf32> to vector<48xf32>
    %274 = vector.shape_cast %273 : vector<48xf32> to vector<48x1xf32>
    %275 = tpu.reciprocal %274 {approx = true} : vector<48x1xf32> -> vector<48x1xf32>
    %276 = vector.broadcast %275 : vector<48x1xf32> to vector<48x48xf32>
    %277 = arith.mulf %272, %276 : vector<48x48xf32>
    %cst_110 = arith.constant dense<0.000000e+00> : vector<48x32xf32>
    %278 = tpu.matmul %195, %261, %cst_110 {dimension_numbers = #tpu.dot_dimension_numbers<[1], [0], [0], [1], [0, 0, 1, 1], [], []>} : vector<48x32xf32>, vector<32x32xf32>, vector<48x32xf32> -> vector<48x32xf32>
    %cst_111 = arith.constant dense<0.000000e+00> : vector<48x32xf32>
    %279 = tpu.matmul %277, %278, %cst_111 {dimension_numbers = #tpu.dot_dimension_numbers<[1], [0], [0], [1], [0, 0, 1, 1], [], []>} : vector<48x48xf32>, vector<48x32xf32>, vector<48x32xf32> -> vector<48x32xf32>
    %280 = arith.addf %259, %279 : vector<48x32xf32>
    %c660 = arith.constant 660 : index
    %c0_112 = arith.constant 0 : index
    %281 = vector.load %arg1[%c660, %c0_112] : memref<672x32xf32, #tpu.memory_space<vmem>>, vector<1x32xf32>
    %282 = arith.addf %195, %280 : vector<48x32xf32>
    %283 = vector.broadcast %281 : vector<1x32xf32> to vector<48x32xf32>
    %284 = arith.addf %282, %283 : vector<48x32xf32>
    %c658 = arith.constant 658 : index
    %c0_113 = arith.constant 0 : index
    %285 = vector.load %arg1[%c658, %c0_113] : memref<672x32xf32, #tpu.memory_space<vmem>>, vector<1x32xf32>
    %c659 = arith.constant 659 : index
    %c0_114 = arith.constant 0 : index
    %286 = vector.load %arg1[%c659, %c0_114] : memref<672x32xf32, #tpu.memory_space<vmem>>, vector<1x32xf32>
    %cst_115 = arith.constant dense<0.000000e+00> : vector<48xf32>
    %287 = vector.multi_reduction <add>, %284, %cst_115 [1] : vector<48x32xf32> to vector<48xf32>
    %288 = vector.shape_cast %287 : vector<48xf32> to vector<48x1xf32>
    %cst_116 = arith.constant 3.200000e+01 : f32
    %289 = vector.broadcast %cst_116 : f32 to vector<48x1xf32>
    %290 = arith.divf %288, %289 : vector<48x1xf32>
    %291 = vector.broadcast %290 : vector<48x1xf32> to vector<48x32xf32>
    %292 = arith.subf %284, %291 : vector<48x32xf32>
    %293 = arith.mulf %292, %292 : vector<48x32xf32>
    %cst_117 = arith.constant dense<0.000000e+00> : vector<48xf32>
    %294 = vector.multi_reduction <add>, %293, %cst_117 [1] : vector<48x32xf32> to vector<48xf32>
    %295 = vector.shape_cast %294 : vector<48xf32> to vector<48x1xf32>
    %cst_118 = arith.constant 3.200000e+01 : f32
    %296 = vector.broadcast %cst_118 : f32 to vector<48x1xf32>
    %297 = arith.divf %295, %296 : vector<48x1xf32>
    %298 = vector.broadcast %290 : vector<48x1xf32> to vector<48x32xf32>
    %299 = arith.subf %284, %298 : vector<48x32xf32>
    %cst_119 = arith.constant 9.99999974E-6 : f32
    %300 = vector.broadcast %cst_119 : f32 to vector<48x1xf32>
    %301 = arith.addf %297, %300 : vector<48x1xf32>
    %302 = math.rsqrt %301 : vector<48x1xf32>
    %303 = vector.broadcast %302 : vector<48x1xf32> to vector<48x32xf32>
    %304 = arith.mulf %299, %303 : vector<48x32xf32>
    %305 = vector.broadcast %285 : vector<1x32xf32> to vector<48x32xf32>
    %306 = arith.mulf %304, %305 : vector<48x32xf32>
    %307 = vector.broadcast %286 : vector<1x32xf32> to vector<48x32xf32>
    %308 = arith.addf %306, %307 : vector<48x32xf32>
    %c40 = arith.constant 40 : index
    %c0_120 = arith.constant 0 : index
    %309 = vector.load %arg2[%c40, %c0_120] : memref<80x64xf32, #tpu.memory_space<vmem>>, vector<32x64xf32>
    %c72 = arith.constant 72 : index
    %c0_121 = arith.constant 0 : index
    %310 = vector.load %arg2[%c72, %c0_121] : memref<80x64xf32, #tpu.memory_space<vmem>>, vector<1x64xf32>
    %cst_122 = arith.constant dense<0.000000e+00> : vector<48x64xf32>
    %311 = tpu.matmul %308, %309, %cst_122 {dimension_numbers = #tpu.dot_dimension_numbers<[1], [0], [0], [1], [0, 0, 1, 1], [], []>} : vector<48x32xf32>, vector<32x64xf32>, vector<48x64xf32> -> vector<48x64xf32>
    %312 = vector.broadcast %310 : vector<1x64xf32> to vector<48x64xf32>
    %313 = arith.addf %311, %312 : vector<48x64xf32>
    %cst_123 = arith.constant 5.000000e-01 : f32
    %314 = vector.broadcast %cst_123 : f32 to vector<48x64xf32>
    %315 = arith.mulf %314, %313 : vector<48x64xf32>
    %cst_124 = arith.constant 4.471500e-02 : f32
    %316 = vector.broadcast %cst_124 : f32 to vector<48x64xf32>
    %317 = arith.mulf %316, %313 : vector<48x64xf32>
    %318 = arith.mulf %317, %313 : vector<48x64xf32>
    %319 = arith.mulf %318, %313 : vector<48x64xf32>
    %320 = arith.addf %313, %319 : vector<48x64xf32>
    %cst_125 = arith.constant 0.797884583 : f32
    %321 = vector.broadcast %cst_125 : f32 to vector<48x64xf32>
    %322 = arith.mulf %321, %320 : vector<48x64xf32>
    %323 = math.tanh %322 : vector<48x64xf32>
    %cst_126 = arith.constant 1.000000e+00 : f32
    %324 = vector.broadcast %cst_126 : f32 to vector<48x64xf32>
    %325 = arith.addf %324, %323 : vector<48x64xf32>
    %326 = arith.mulf %315, %325 : vector<48x64xf32>
    %c592 = arith.constant 592 : index
    %c0_127 = arith.constant 0 : index
    %327 = vector.load %arg1[%c592, %c0_127] : memref<672x32xf32, #tpu.memory_space<vmem>>, vector<64x32xf32>
    %c661 = arith.constant 661 : index
    %c0_128 = arith.constant 0 : index
    %328 = vector.load %arg1[%c661, %c0_128] : memref<672x32xf32, #tpu.memory_space<vmem>>, vector<1x32xf32>
    %cst_129 = arith.constant dense<0.000000e+00> : vector<48x32xf32>
    %329 = tpu.matmul %326, %327, %cst_129 {dimension_numbers = #tpu.dot_dimension_numbers<[1], [0], [0], [1], [0, 0, 1, 1], [], []>} : vector<48x64xf32>, vector<64x32xf32>, vector<48x32xf32> -> vector<48x32xf32>
    %330 = vector.broadcast %328 : vector<1x32xf32> to vector<48x32xf32>
    %331 = arith.addf %329, %330 : vector<48x32xf32>
    %332 = arith.addf %284, %331 : vector<48x32xf32>
    %333 = vector.extract_strided_slice %332 {offsets = [0, 0], sizes = [8, 32], strides = [1, 1]} : vector<48x32xf32> to vector<8x32xf32>
    %334 = vector.extract_strided_slice %332 {offsets = [8, 0], sizes = [8, 32], strides = [1, 1]} : vector<48x32xf32> to vector<8x32xf32>
    %335 = vector.extract_strided_slice %332 {offsets = [16, 0], sizes = [8, 32], strides = [1, 1]} : vector<48x32xf32> to vector<8x32xf32>
    %336 = vector.extract_strided_slice %332 {offsets = [24, 0], sizes = [8, 32], strides = [1, 1]} : vector<48x32xf32> to vector<8x32xf32>
    %337 = vector.extract_strided_slice %332 {offsets = [32, 0], sizes = [8, 32], strides = [1, 1]} : vector<48x32xf32> to vector<8x32xf32>
    %338 = vector.extract_strided_slice %332 {offsets = [40, 0], sizes = [8, 32], strides = [1, 1]} : vector<48x32xf32> to vector<8x32xf32>
    %c48 = arith.constant 48 : index
    %c0_130 = arith.constant 0 : index
    %339 = vector.load %arg0[%c48, %c0_130] : memref<56x32xf32, #tpu.memory_space<vmem>>, vector<8x32xf32>
    %340 = tpu.concatenate %333, %334, %335, %336, %337, %338, %339 in 1 : vector<8x32xf32>, vector<8x32xf32>, vector<8x32xf32>, vector<8x32xf32>, vector<8x32xf32>, vector<8x32xf32>, vector<8x32xf32> -> vector<8x224xf32>
    %341 = arith.truncf %340 : vector<8x224xf32> to vector<8x224xbf16>
    %c0_131 = arith.constant 0 : index
    %c0_132 = arith.constant 0 : index
    %342 = vector.load %arg3[%c0_131, %c0_132] : memref<752x896xbf16, #tpu.memory_space<vmem>>, vector<224x512xbf16>
    %c744 = arith.constant 744 : index
    %c0_133 = arith.constant 0 : index
    %343 = vector.load %arg3[%c744, %c0_133] : memref<752x896xbf16, #tpu.memory_space<vmem>>, vector<1x512xbf16>
    %344 = arith.extf %343 : vector<1x512xbf16> to vector<1x512xf32>
    %cst_134 = arith.constant dense<0.000000e+00> : vector<8x512xf32>
    %345 = tpu.matmul %341, %342, %cst_134 {dimension_numbers = #tpu.dot_dimension_numbers<[1], [0], [0], [1], [0, 0, 1, 1], [], []>} : vector<8x224xbf16>, vector<224x512xbf16>, vector<8x512xf32> -> vector<8x512xf32>
    %346 = vector.broadcast %344 : vector<1x512xf32> to vector<8x512xf32>
    %347 = arith.addf %345, %346 : vector<8x512xf32>
    %cst_135 = arith.constant 0.000000e+00 : f32
    %348 = vector.broadcast %cst_135 : f32 to vector<8x512xf32>
    %349 = arith.cmpf ogt, %347, %348 : vector<8x512xf32>
    %350 = math.exp %347 : vector<8x512xf32>
    %cst_136 = arith.constant 1.000000e+00 : f32
    %351 = vector.broadcast %cst_136 : f32 to vector<8x512xf32>
    %352 = arith.subf %350, %351 : vector<8x512xf32>
    %cst_137 = arith.constant 1.67326319 : f32
    %353 = vector.broadcast %cst_137 : f32 to vector<8x512xf32>
    %354 = arith.mulf %353, %352 : vector<8x512xf32>
    %355 = arith.select %349, %347, %354 : vector<8x512xi1>, vector<8x512xf32>
    %cst_138 = arith.constant 1.05070102 : f32
    %356 = vector.broadcast %cst_138 : f32 to vector<8x512xf32>
    %357 = arith.mulf %356, %355 : vector<8x512xf32>
    %c224_139 = arith.constant 224 : index
    %c0_140 = arith.constant 0 : index
    %358 = vector.load %arg3[%c224_139, %c0_140] : memref<752x896xbf16, #tpu.memory_space<vmem>>, vector<512x896xbf16>
    %c745 = arith.constant 745 : index
    %c0_141 = arith.constant 0 : index
    %359 = vector.load %arg3[%c745, %c0_141] : memref<752x896xbf16, #tpu.memory_space<vmem>>, vector<1x896xbf16>
    %360 = arith.extf %359 : vector<1x896xbf16> to vector<1x896xf32>
    %361 = arith.truncf %357 : vector<8x512xf32> to vector<8x512xbf16>
    %cst_142 = arith.constant dense<0.000000e+00> : vector<8x896xf32>
    %362 = tpu.matmul %361, %358, %cst_142 {dimension_numbers = #tpu.dot_dimension_numbers<[1], [0], [0], [1], [0, 0, 1, 1], [], []>} : vector<8x512xbf16>, vector<512x896xbf16>, vector<8x896xf32> -> vector<8x896xf32>
    %363 = vector.broadcast %360 : vector<1x896xf32> to vector<8x896xf32>
    %364 = arith.addf %362, %363 : vector<8x896xf32>
    %cst_143 = arith.constant 0.000000e+00 : f32
    %365 = vector.broadcast %cst_143 : f32 to vector<8x896xf32>
    %366 = arith.cmpf ogt, %364, %365 : vector<8x896xf32>
    %367 = math.exp %364 : vector<8x896xf32>
    %cst_144 = arith.constant 1.000000e+00 : f32
    %368 = vector.broadcast %cst_144 : f32 to vector<8x896xf32>
    %369 = arith.subf %367, %368 : vector<8x896xf32>
    %cst_145 = arith.constant 1.67326319 : f32
    %370 = vector.broadcast %cst_145 : f32 to vector<8x896xf32>
    %371 = arith.mulf %370, %369 : vector<8x896xf32>
    %372 = arith.select %366, %364, %371 : vector<8x896xi1>, vector<8x896xf32>
    %cst_146 = arith.constant 1.05070102 : f32
    %373 = vector.broadcast %cst_146 : f32 to vector<8x896xf32>
    %374 = arith.mulf %373, %372 : vector<8x896xf32>
    %c736 = arith.constant 736 : index
    %c0_147 = arith.constant 0 : index
    %375 = vector.load %arg3[%c736, %c0_147] : memref<752x896xbf16, #tpu.memory_space<vmem>>, vector<8x896xbf16>
    %c746 = arith.constant 746 : index
    %c0_148 = arith.constant 0 : index
    %376 = vector.load %arg3[%c746, %c0_148] : memref<752x896xbf16, #tpu.memory_space<vmem>>, vector<1x8xbf16>
    %377 = arith.extf %376 : vector<1x8xbf16> to vector<1x8xf32>
    %378 = arith.truncf %374 : vector<8x896xf32> to vector<8x896xbf16>
    %cst_149 = arith.constant dense<0.000000e+00> : vector<8x8xf32>
    %379 = tpu.matmul %378, %375, %cst_149 {dimension_numbers = #tpu.dot_dimension_numbers<[1], [1], [0], [0], [0, 0, 1, 0], [], []>} : vector<8x896xbf16>, vector<8x896xbf16>, vector<8x8xf32> -> vector<8x8xf32>
    %380 = vector.broadcast %377 : vector<1x8xf32> to vector<8x8xf32>
    %381 = arith.addf %379, %380 : vector<8x8xf32>
    %c0_150 = arith.constant 0 : index
    %c0_151 = arith.constant 0 : index
    %382 = vector.load %arg4[%c0_150, %c0_151] : memref<8x8xf32, #tpu.memory_space<vmem>>, vector<8x8xf32>
    tpu.vector_store %arg4[%c0_150, %c0_151], %381 {strides = array<i32>} : memref<8x8xf32, #tpu.memory_space<vmem>>, vector<8x8xf32>,
    return
  }
}

</mosaic_0001>

<llo_original>
// kernel: tpu_custom_call.1
$region0: #{tpu_custom_call.1}
  #allocation0 [shape = 'u32[]', space=smem, size = 0x4, offset = 0x4, fixed_abs, tag = 'smem constant byte address 0x4 - core index']
  #allocation1 [shape = 'u32[72,128]{1,0:T(1,128)}', space=vmem, size = 0x9000, scoped, tag = 'internal scratch']
  %s0 = inlined_call_operand.vmem [shape: f32[56,32], index: 0, kind: input, shape index: {}]
  %s1 = inlined_call_operand.vmem [shape: f32[672,32], index: 1, kind: input, shape index: {}]
  %s2 = inlined_call_operand.vmem [shape: f32[80,64], index: 2, kind: input, shape index: {}]
  %s3 = inlined_call_operand.hbm [shape: bf16[752,896], index: 3, kind: input, shape index: {}]
  %s4 = inlined_call_operand.hbm [shape: f32[8,8], index: 4, kind: output, shape index: {}]
  %s5 = sld [smem:[#allocation0]]
  $region30: #{tpu_custom_call.1} parent=0
    _
  %s7 = ssub.s32 1, %s5
  %s8 = scalar_select 0, %s7, %s5
  $region1: #{tpu_custom_call.1} parent=0
    #allocation2 [shape = 'u8[1347584]{0}', space=vmem, size = 0x149000, scoped, tag = 'input window, operand 3, single buffered']
    #allocation3 [shape = 's32[1]{0}', space=sflag, size = 0x4, scoped, tag = 'scoped memory for tpu_custom_call.1']
    #allocation4 [shape = 's32[1]{0}', space=sflag, size = 0x4, scoped, tag = 'scoped memory for tpu_custom_call.1']
    #allocation5 [shape = 'u8[4096]{0}', space=vmem, size = 0x1000, scoped, tag = 'output window, operand 0, single buffered']
    %9 = vsyncpa [#allocation3], 0
    %10 = vsyncpa [#allocation4], 0
    // Predicated region
    $region2: #{tpu_custom_call.1} parent=1 // pred_check
      _
    $region3: #{tpu_custom_call.1} parent=1 // pred_check_branch
      %12 = sbr.rel (0) target = $region5
    $region4: #{tpu_custom_call.1} parent=1 // pred_region
      _
    $region5: #{tpu_custom_call.1} parent=1 // pred_fallthru
      _
    // Predicated region
    $region6: #{tpu_custom_call.1} parent=1 // pred_check
      _
    $region7: #{tpu_custom_call.1} parent=1 // pred_check_branch
      %14 = sbr.rel (0) target = $region9
    $region8: #{tpu_custom_call.1} parent=1 // pred_region
      _
    $region9: #{tpu_custom_call.1} parent=1 // pred_fallthru
      _
    // Predicated region
    $region10: #{tpu_custom_call.1} parent=1 // pred_check
      _
    $region11: #{tpu_custom_call.1} parent=1 // pred_check_branch
      %16 = sbr.rel (0) target = $region13
    $region12: #{tpu_custom_call.1} parent=1 // pred_region
      _
    $region13: #{tpu_custom_call.1} parent=1 // pred_fallthru
      _
    // Predicated region
    $region14: #{tpu_custom_call.1} parent=1 // pred_check
      _
    $region15: #{tpu_custom_call.1} parent=1 // pred_check_branch
      %18 = sbr.rel (0) target = $region17
    $region16: #{tpu_custom_call.1} parent=1 // pred_region
      %20 = vsyncadd [#allocation3], 0
      %s21 = sshll.u32 %s3, 4
      %s22 = int_to_ptr.hbm [resolvable:$true] %s21
      %s23 = sshll.u32 [#allocation2], 4
      %s24 = int_to_ptr.vmem [resolvable:$true] %s23
      %29 = dma.hbm_to_vmem [thread:$0]  %s22, 42112, %s24, [#allocation3], 448, 448, 28
    $region17: #{tpu_custom_call.1} parent=1 // pred_fallthru
      _
    // Predicated region
    $region18: #{tpu_custom_call.1} parent=1 // pred_check
      _
    $region19: #{tpu_custom_call.1} parent=1 // pred_check_branch
      %31 = sbr.rel (0) target = $region21
    $region20: #{tpu_custom_call.1} parent=1 // pred_region
      %33 = dma.done [#allocation3], 42112
    $region21: #{tpu_custom_call.1} parent=1 // pred_fallthru
      _
    %v35 = vld [vmem:[%s0] sm:$0xff]
    %v36 = vld [vmem:[%s0 + $0x8] sm:$0xff]
    %v37 = vld [vmem:[%s0 + $0x10] sm:$0xff]
    %v38 = vld [vmem:[%s0 + $0x18] sm:$0xff]
    %v39 = vld [vmem:[%s0 + $0x20] sm:$0xff]
    %v40 = vld [vmem:[%s0 + $0x28] sm:$0xff]
    %v41 = vlaneseq
    %v42 = vshrl.u32 %v41, 7
    %v43 = vadd.s32 %v42, 8
    %v44 = vadd.s32 %v42, 16
    %v45 = vadd.s32 %v42, 24
    %v46 = vadd.s32 %v42, 32
    %v47 = vadd.s32 %v42, 40
    %v48 = vlaneseq
    %v49 = vand.u32 %v48, 127
    %v50 = vand.u32 %v42, 7
    %v51 = vand.u32 %v43, 7
    %v52 = vand.u32 %v44, 7
    %v53 = vand.u32 %v45, 7
    %v54 = vand.u32 %v46, 7
    %v55 = vand.u32 %v47, 7
    %v56 = vand.u32 %v49, 7
    %vm57 = vcmp.eq.s32.totalorder %v50, %v56
    %vm58 = vcmp.eq.s32.totalorder %v51, %v56
    %vm59 = vcmp.eq.s32.totalorder %v52, %v56
    %vm60 = vcmp.eq.s32.totalorder %v53, %v56
    %vm61 = vcmp.eq.s32.totalorder %v54, %v56
    %vm62 = vcmp.eq.s32.totalorder %v55, %v56
    %v63 = vsel %vm57, 0.0, -1e+30
    %v64 = vsel %vm58, 0.0, -1e+30
    %v65 = vsel %vm59, 0.0, -1e+30
    %v66 = vsel %vm60, 0.0, -1e+30
    %v67 = vsel %vm61, 0.0, -1e+30
    %v68 = vsel %vm62, 0.0, -1e+30
    %v69 = vld [vmem:[%s1 + $0x140] sm:$0x1]
    %v70 = vld [vmem:[%s1 + $0x141] sm:$0x1]
    %vm71 = vcmask 261120
    %v72 = vsel %vm71, %v35, 0.0
    %73 = vadd.xlane.f32.xlu0 %v72
    %v74 = vpop.xlane.xlu0 %73
    %v75 = vsel %vm71, %v36, 0.0
    %76 = vadd.xlane.f32.xlu0 %v75
    %v77 = vpop.xlane.xlu0 %76
    %v78 = vsel %vm71, %v37, 0.0
    %79 = vadd.xlane.f32.xlu0 %v78
    %v80 = vpop.xlane.xlu0 %79
    %v81 = vsel %vm71, %v38, 0.0
    %82 = vadd.xlane.f32.xlu0 %v81
    %v83 = vpop.xlane.xlu0 %82
    %v84 = vsel %vm71, %v39, 0.0
    %85 = vadd.xlane.f32.xlu0 %v84
    %v86 = vpop.xlane.xlu0 %85
    %v87 = vsel %vm71, %v40, 0.0
    %88 = vadd.xlane.f32.xlu0 %v87
    %v89 = vpop.xlane.xlu0 %88
    %v90 = vrcp.pop 32.0
    %v91 = vmul.f32 32.0, %v90
    %v92 = vsub.f32 1.0, %v91
    %v93 = vmul.f32 %v90, %v92
    %v94 = vadd.f32 %v90, %v93
    %vm95 = vweird.f32 %v90
    %v96 = vsel %vm95, %v90, %v94
    %v97 = vmul.f32 %v74, %v96
    %v98 = vmul.f32 %v77, %v96
    %v99 = vmul.f32 %v80, %v96
    %v100 = vmul.f32 %v83, %v96
    %v101 = vmul.f32 %v86, %v96
    %v102 = vmul.f32 %v89, %v96
    %v103 = vsub.f32 %v35, %v97
    %v104 = vsub.f32 %v36, %v98
    %v105 = vsub.f32 %v37, %v99
    %v106 = vsub.f32 %v38, %v100
    %v107 = vsub.f32 %v39, %v101
    %v108 = vsub.f32 %v40, %v102
    %v109 = vmul.f32 %v103, %v103
    %v110 = vmul.f32 %v104, %v104
    %v111 = vmul.f32 %v105, %v105
    %v112 = vmul.f32 %v106, %v106
    %v113 = vmul.f32 %v107, %v107
    %v114 = vmul.f32 %v108, %v108
    %v115 = vsel %vm71, %v109, 0.0
    %116 = vadd.xlane.f32.xlu0 %v115
    %v117 = vpop.xlane.xlu0 %116
    %v118 = vsel %vm71, %v110, 0.0
    %119 = vadd.xlane.f32.xlu0 %v118
    %v120 = vpop.xlane.xlu0 %119
    %v121 = vsel %vm71, %v111, 0.0
    %122 = vadd.xlane.f32.xlu0 %v121
    %v123 = vpop.xlane.xlu0 %122
    %v124 = vsel %vm71, %v112, 0.0
    %125 = vadd.xlane.f32.xlu0 %v124
    %v126 = vpop.xlane.xlu0 %125
    %v127 = vsel %vm71, %v113, 0.0
    %128 = vadd.xlane.f32.xlu0 %v127
    %v129 = vpop.xlane.xlu0 %128
    %v130 = vsel %vm71, %v114, 0.0
    %131 = vadd.xlane.f32.xlu0 %v130
    %v132 = vpop.xlane.xlu0 %131
    %v133 = vmul.f32 %v117, %v96
    %v134 = vmul.f32 %v120, %v96
    %v135 = vmul.f32 %v123, %v96
    %v136 = vmul.f32 %v126, %v96
    %v137 = vmul.f32 %v129, %v96
    %v138 = vmul.f32 %v132, %v96
    %v139 = vadd.f32 %v133, 1e-05
    %v140 = vadd.f32 %v134, 1e-05
    %v141 = vadd.f32 %v135, 1e-05
    %v142 = vadd.f32 %v136, 1e-05
    %v143 = vadd.f32 %v137, 1e-05
    %v144 = vadd.f32 %v138, 1e-05
    %v145 = vrsqrt.pop %v139
    %v146 = vmul.f32 %v145, %v139
    %v147 = vmul.f32 %v146, %v145
    %v148 = vmul.f32 0.5, %v147
    %v149 = vsub.f32 1.5, %v148
    %v150 = vmul.f32 %v145, %v149
    %vm151 = vweird.f32 %v139
    %vm152 = vweird.f32 %v145
    %vm153 = vmor %vm151, %vm152
    %v154 = vsel %vm153, %v145, %v150
    %v155 = vrsqrt.pop %v140
    %v156 = vmul.f32 %v155, %v140
    %v157 = vmul.f32 %v156, %v155
    %v158 = vmul.f32 0.5, %v157
    %v159 = vsub.f32 1.5, %v158
    %v160 = vmul.f32 %v155, %v159
    %vm161 = vweird.f32 %v140
    %vm162 = vweird.f32 %v155
    %vm163 = vmor %vm161, %vm162
    %v164 = vsel %vm163, %v155, %v160
    %v165 = vrsqrt.pop %v141
    %v166 = vmul.f32 %v165, %v141
    %v167 = vmul.f32 %v166, %v165
    %v168 = vmul.f32 0.5, %v167
    %v169 = vsub.f32 1.5, %v168
    %v170 = vmul.f32 %v165, %v169
    %vm171 = vweird.f32 %v141
    %vm172 = vweird.f32 %v165
    %vm173 = vmor %vm171, %vm172
    %v174 = vsel %vm173, %v165, %v170
    %v175 = vrsqrt.pop %v142
    %v176 = vmul.f32 %v175, %v142
    %v177 = vmul.f32 %v176, %v175
    %v178 = vmul.f32 0.5, %v177
    %v179 = vsub.f32 1.5, %v178
    %v180 = vmul.f32 %v175, %v179
    %vm181 = vweird.f32 %v142
    %vm182 = vweird.f32 %v175
    %vm183 = vmor %vm181, %vm182
    %v184 = vsel %vm183, %v175, %v180
    %v185 = vrsqrt.pop %v143
    %v186 = vmul.f32 %v185, %v143
    %v187 = vmul.f32 %v186, %v185
    %v188 = vmul.f32 0.5, %v187
    %v189 = vsub.f32 1.5, %v188
    %v190 = vmul.f32 %v185, %v189
    %vm191 = vweird.f32 %v143
    %vm192 = vweird.f32 %v185
    %vm193 = vmor %vm191, %vm192
    %v194 = vsel %vm193, %v185, %v190
    %v195 = vrsqrt.pop %v144
    %v196 = vmul.f32 %v195, %v144
    %v197 = vmul.f32 %v196, %v195
    %v198 = vmul.f32 0.5, %v197
    %v199 = vsub.f32 1.5, %v198
    %v200 = vmul.f32 %v195, %v199
    %vm201 = vweird.f32 %v144
    %vm202 = vweird.f32 %v195
    %vm203 = vmor %vm201, %vm202
    %v204 = vsel %vm203, %v195, %v200
    %v205 = vmul.f32 %v103, %v154
    %v206 = vmul.f32 %v104, %v164
    %v207 = vmul.f32 %v105, %v174
    %v208 = vmul.f32 %v106, %v184
    %v209 = vmul.f32 %v107, %v194
    %v210 = vmul.f32 %v108, %v204
    %v211 = vperm.slane %v69, 0
    %v212 = vmul.f32 %v205, %v211
    %v213 = vmul.f32 %v206, %v211
    %v214 = vmul.f32 %v207, %v211
    %v215 = vmul.f32 %v208, %v211
    %v216 = vmul.f32 %v209, %v211
    %v217 = vmul.f32 %v210, %v211
    %v218 = vperm.slane %v70, 0
    %v219 = vadd.f32 %v212, %v218
    %v220 = vadd.f32 %v213, %v218
    %v221 = vadd.f32 %v214, %v218
    %v222 = vadd.f32 %v215, %v218
    %v223 = vadd.f32 %v216, %v218
    %v224 = vadd.f32 %v217, %v218
    %v225 = vld [vmem:[%s1] sm:$0xff]
    %v226 = vld [vmem:[%s1 + $0x8] sm:$0xff]
    %v227 = vld [vmem:[%s1 + $0x10] sm:$0xff]
    %v228 = vld [vmem:[%s1 + $0x18] sm:$0xff]
    %v229 = vld [vmem:[%s1 + $0x80] sm:$0xff]
    %v230 = vld [vmem:[%s1 + $0x88] sm:$0xff]
    %v231 = vld [vmem:[%s1 + $0x90] sm:$0xff]
    %v232 = vld [vmem:[%s1 + $0x98] sm:$0xff]
    %v233 = vld [vmem:[%s1 + $0x146] sm:$0x1]
    %v234 = vperm.slane %v233, 0
    %v236 = vsel %vm71, %v219, 0
    %v239 = vsel %vm71, %v220, 0
    %v242 = vsel %vm71, %v221, 0
    %v245 = vsel %vm71, %v222, 0
    %v248 = vsel %vm71, %v223, 0
    %v251 = vsel %vm71, %v224, 0
    %253 = vmatpush.msra.mxu0 0.0
    %254 = vmatpush.msra.mxu0 0.0
    %255 = vmatpush.msra.mxu0 0.0
    %256 = vmatpush.msra.mxu0 0.0
    %257 = vmatpush.msra.mxu0 0.0
    %258 = vmatpush.msra.mxu0 0.0
    %259 = vmatpush.msra.mxu0 0.0
    %260 = vmatpush.msra.mxu0 0.0
    %261 = vmatpush.msra.mxu0 0.0
    %262 = vmatpush.msra.mxu0 0.0
    %263 = vmatpush.msra.mxu0 0.0
    %264 = vmatpush.msra.mxu0 0.0
    %265 = vmatpush.msra.mxu0 %v228
    %266 = vmatpush.msra.mxu0 %v227
    %267 = vmatpush.msra.mxu0 %v226
    %268 = vmatpush.msra.mxu0 %v225
    %269 = vmatmul.f32.gmra.mxu0 %v236
    %v270 = vpop.f32.mrf.mxu0
    %v271 = vadd.f32 %v234, %v270
    %272 = vmatmul.f32.gmra.mxu0 %v239
    %v273 = vpop.f32.mrf.mxu0
    %v274 = vadd.f32 %v234, %v273
    %275 = vmatmul.f32.gmra.mxu0 %v242
    %v276 = vpop.f32.mrf.mxu0
    %v277 = vadd.f32 %v234, %v276
    %278 = vmatmul.f32.gmra.mxu0 %v245
    %v279 = vpop.f32.mrf.mxu0
    %v280 = vadd.f32 %v234, %v279
    %281 = vmatmul.f32.gmra.mxu0 %v248
    %v282 = vpop.f32.mrf.mxu0
    %v283 = vadd.f32 %v234, %v282
    %284 = vmatmul.f32.gmra.mxu0 %v251
    %v285 = vpop.f32.mrf.mxu0
    %v286 = vadd.f32 %v234, %v285
    %287 = vdwg.mxu0
    %v289 = vsel %vm71, %v271, 0
    %v292 = vsel %vm71, %v274, 0
    %v295 = vsel %vm71, %v277, 0
    %v298 = vsel %vm71, %v280, 0
    %v301 = vsel %vm71, %v283, 0
    %v304 = vsel %vm71, %v286, 0
    %306 = vmatpush.xpose.msra.mxu0 0.0
    %307 = vmatpush.xpose.msra.mxu0 0.0
    %308 = vmatpush.xpose.msra.mxu0 0.0
    %309 = vmatpush.xpose.msra.mxu0 0.0
    %310 = vmatpush.xpose.msra.mxu0 0.0
    %311 = vmatpush.xpose.msra.mxu0 0.0
    %312 = vmatpush.xpose.msra.mxu0 0.0
    %313 = vmatpush.xpose.msra.mxu0 0.0
    %314 = vmatpush.xpose.msra.mxu0 0.0
    %315 = vmatpush.xpose.msra.mxu0 0.0
    %316 = vmatpush.xpose.msra.mxu0 %v251
    %317 = vmatpush.xpose.msra.mxu0 %v248
    %318 = vmatpush.xpose.msra.mxu0 %v245
    %319 = vmatpush.xpose.msra.mxu0 %v242
    %320 = vmatpush.xpose.msra.mxu0 %v239
    %321 = vmatpush.xpose.msra.mxu0 %v236
    %322 = vmatmul.f32.gmra.mxu0 %v289
    %v323 = vpop.f32.mrf.mxu0
    %v324 = vadd.f32 %v63, %v323
    %325 = vmatmul.f32.gmra.mxu0 %v292
    %v326 = vpop.f32.mrf.mxu0
    %v327 = vadd.f32 %v64, %v326
    %328 = vmatmul.f32.gmra.mxu0 %v295
    %v329 = vpop.f32.mrf.mxu0
    %v330 = vadd.f32 %v65, %v329
    %331 = vmatmul.f32.gmra.mxu0 %v298
    %v332 = vpop.f32.mrf.mxu0
    %v333 = vadd.f32 %v66, %v332
    %334 = vmatmul.f32.gmra.mxu0 %v301
    %v335 = vpop.f32.mrf.mxu0
    %v336 = vadd.f32 %v67, %v335
    %337 = vmatmul.f32.gmra.mxu0 %v304
    %v338 = vpop.f32.mrf.mxu0
    %v339 = vadd.f32 %v68, %v338
    %340 = vdwg.mxu0
    %vm341 = vcmask 392192
    %v342 = vsel %vm341, %v324, -inf
    %343 = vmax.xlane.f32.xlu0 %v342
    %v344 = vpop.xlane.xlu0 %343
    %v345 = vsel %vm341, %v327, -inf
    %346 = vmax.xlane.f32.xlu0 %v345
    %v347 = vpop.xlane.xlu0 %346
    %v348 = vsel %vm341, %v330, -inf
    %349 = vmax.xlane.f32.xlu0 %v348
    %v350 = vpop.xlane.xlu0 %349
    %v351 = vsel %vm341, %v333, -inf
    %352 = vmax.xlane.f32.xlu0 %v351
    %v353 = vpop.xlane.xlu0 %352
    %v354 = vsel %vm341, %v336, -inf
    %355 = vmax.xlane.f32.xlu0 %v354
    %v356 = vpop.xlane.xlu0 %355
    %v357 = vsel %vm341, %v339, -inf
    %358 = vmax.xlane.f32.xlu0 %v357
    %v359 = vpop.xlane.xlu0 %358
    %v360 = vsub.f32 %v324, %v344
    %v361 = vsub.f32 %v327, %v347
    %v362 = vsub.f32 %v330, %v350
    %v363 = vsub.f32 %v333, %v353
    %v364 = vsub.f32 %v336, %v356
    %v365 = vsub.f32 %v339, %v359
    %v366 = vmul.f32 %v360, 1.442695
    %v367 = vpow.pop %v366
    %v368 = vmul.f32 %v361, 1.442695
    %v369 = vpow.pop %v368
    %v370 = vmul.f32 %v362, 1.442695
    %v371 = vpow.pop %v370
    %v372 = vmul.f32 %v363, 1.442695
    %v373 = vpow.pop %v372
    %v374 = vmul.f32 %v364, 1.442695
    %v375 = vpow.pop %v374
    %v376 = vmul.f32 %v365, 1.442695
    %v377 = vpow.pop %v376
    %v378 = vsel %vm341, %v367, 0.0
    %379 = vadd.xlane.f32.xlu0 %v378
    %v380 = vpop.xlane.xlu0 %379
    %v381 = vsel %vm341, %v369, 0.0
    %382 = vadd.xlane.f32.xlu0 %v381
    %v383 = vpop.xlane.xlu0 %382
    %v384 = vsel %vm341, %v371, 0.0
    %385 = vadd.xlane.f32.xlu0 %v384
    %v386 = vpop.xlane.xlu0 %385
    %v387 = vsel %vm341, %v373, 0.0
    %388 = vadd.xlane.f32.xlu0 %v387
    %v389 = vpop.xlane.xlu0 %388
    %v390 = vsel %vm341, %v375, 0.0
    %391 = vadd.xlane.f32.xlu0 %v390
    %v392 = vpop.xlane.xlu0 %391
    %v393 = vsel %vm341, %v377, 0.0
    %394 = vadd.xlane.f32.xlu0 %v393
    %v395 = vpop.xlane.xlu0 %394
    %v396 = vrcp.pop %v380
    %v397 = vrcp.pop %v383
    %v398 = vrcp.pop %v386
    %v399 = vrcp.pop %v389
    %v400 = vrcp.pop %v392
    %v401 = vrcp.pop %v395
    %v402 = vmul.f32 %v367, %v396
    %v403 = vmul.f32 %v369, %v397
    %v404 = vmul.f32 %v371, %v398
    %v405 = vmul.f32 %v373, %v399
    %v406 = vmul.f32 %v375, %v400
    %v407 = vmul.f32 %v377, %v401
    %408 = vmatpush.msra.mxu0 0.0
    %409 = vmatpush.msra.mxu0 0.0
    %410 = vmatpush.msra.mxu0 0.0
    %411 = vmatpush.msra.mxu0 0.0
    %412 = vmatpush.msra.mxu0 0.0
    %413 = vmatpush.msra.mxu0 0.0
    %414 = vmatpush.msra.mxu0 0.0
    %415 = vmatpush.msra.mxu0 0.0
    %416 = vmatpush.msra.mxu0 0.0
    %417 = vmatpush.msra.mxu0 0.0
    %418 = vmatpush.msra.mxu0 0.0
    %419 = vmatpush.msra.mxu0 0.0
    %420 = vmatpush.msra.mxu0 %v232
    %421 = vmatpush.msra.mxu0 %v231
    %422 = vmatpush.msra.mxu0 %v230
    %423 = vmatpush.msra.mxu0 %v229
    %424 = vmatmul.f32.gmra.mxu0 %v236
    %v425 = vpop.f32.mrf.mxu0
    %v426 = vadd.f32 0.0, %v425
    %427 = vmatmul.f32.gmra.mxu0 %v239
    %v428 = vpop.f32.mrf.mxu0
    %v429 = vadd.f32 0.0, %v428
    %430 = vmatmul.f32.gmra.mxu0 %v242
    %v431 = vpop.f32.mrf.mxu0
    %v432 = vadd.f32 0.0, %v431
    %433 = vmatmul.f32.gmra.mxu0 %v245
    %v434 = vpop.f32.mrf.mxu0
    %v435 = vadd.f32 0.0, %v434
    %436 = vmatmul.f32.gmra.mxu0 %v248
    %v437 = vpop.f32.mrf.mxu0
    %v438 = vadd.f32 0.0, %v437
    %439 = vmatmul.f32.gmra.mxu0 %v251
    %v440 = vpop.f32.mrf.mxu0
    %v441 = vadd.f32 0.0, %v440
    %442 = vdwg.mxu0
    %v443 = vld [vmem:[%s1 + $0x20] sm:$0xff]
    %v444 = vld [vmem:[%s1 + $0x28] sm:$0xff]
    %v445 = vld [vmem:[%s1 + $0x30] sm:$0xff]
    %v446 = vld [vmem:[%s1 + $0x38] sm:$0xff]
    %v447 = vld [vmem:[%s1 + $0xa0] sm:$0xff]
    %v448 = vld [vmem:[%s1 + $0xa8] sm:$0xff]
    %v449 = vld [vmem:[%s1 + $0xb0] sm:$0xff]
    %v450 = vld [vmem:[%s1 + $0xb8] sm:$0xff]
    %v451 = vld [vmem:[%s1 + $0x147] sm:$0x1]
    %v452 = vperm.slane %v451, 0
    %453 = vmatpush.msra.mxu0 0.0
    %454 = vmatpush.msra.mxu0 0.0
    %455 = vmatpush.msra.mxu0 0.0
    %456 = vmatpush.msra.mxu0 0.0
    %457 = vmatpush.msra.mxu0 0.0
    %458 = vmatpush.msra.mxu0 0.0
    %459 = vmatpush.msra.mxu0 0.0
    %460 = vmatpush.msra.mxu0 0.0
    %461 = vmatpush.msra.mxu0 0.0
    %462 = vmatpush.msra.mxu0 0.0
    %463 = vmatpush.msra.mxu0 0.0
    %464 = vmatpush.msra.mxu0 0.0
    %465 = vmatpush.msra.mxu0 %v446
    %466 = vmatpush.msra.mxu0 %v445
    %467 = vmatpush.msra.mxu0 %v444
    %468 = vmatpush.msra.mxu0 %v443
    %469 = vmatmul.f32.gmra.mxu0 %v236
    %v470 = vpop.f32.mrf.mxu0
    %v471 = vadd.f32 %v452, %v470
    %472 = vmatmul.f32.gmra.mxu0 %v239
    %v473 = vpop.f32.mrf.mxu0
    %v474 = vadd.f32 %v452, %v473
    %475 = vmatmul.f32.gmra.mxu0 %v242
    %v476 = vpop.f32.mrf.mxu0
    %v477 = vadd.f32 %v452, %v476
    %478 = vmatmul.f32.gmra.mxu0 %v245
    %v479 = vpop.f32.mrf.mxu0
    %v480 = vadd.f32 %v452, %v479
    %481 = vmatmul.f32.gmra.mxu0 %v248
    %v482 = vpop.f32.mrf.mxu0
    %v483 = vadd.f32 %v452, %v482
    %484 = vmatmul.f32.gmra.mxu0 %v251
    %v485 = vpop.f32.mrf.mxu0
    %v486 = vadd.f32 %v452, %v485
    %487 = vdwg.mxu0
    %v489 = vsel %vm71, %v471, 0
    %v492 = vsel %vm71, %v474, 0
    %v495 = vsel %vm71, %v477, 0
    %v498 = vsel %vm71, %v480, 0
    %v501 = vsel %vm71, %v483, 0
    %v504 = vsel %vm71, %v486, 0
    %506 = vmatpush.xpose.msra.mxu0 0.0
    %507 = vmatpush.xpose.msra.mxu0 0.0
    %508 = vmatpush.xpose.msra.mxu0 0.0
    %509 = vmatpush.xpose.msra.mxu0 0.0
    %510 = vmatpush.xpose.msra.mxu0 0.0
    %511 = vmatpush.xpose.msra.mxu0 0.0
    %512 = vmatpush.xpose.msra.mxu0 0.0
    %513 = vmatpush.xpose.msra.mxu0 0.0
    %514 = vmatpush.xpose.msra.mxu0 0.0
    %515 = vmatpush.xpose.msra.mxu0 0.0
    %516 = vmatpush.xpose.msra.mxu0 %v251
    %517 = vmatpush.xpose.msra.mxu0 %v248
    %518 = vmatpush.xpose.msra.mxu0 %v245
    %519 = vmatpush.xpose.msra.mxu0 %v242
    %520 = vmatpush.xpose.msra.mxu0 %v239
    %521 = vmatpush.xpose.msra.mxu0 %v236
    %522 = vmatmul.f32.gmra.mxu0 %v489
    %v523 = vpop.f32.mrf.mxu0
    %v524 = vadd.f32 %v63, %v523
    %525 = vmatmul.f32.gmra.mxu0 %v492
    %v526 = vpop.f32.mrf.mxu0
    %v527 = vadd.f32 %v64, %v526
    %528 = vmatmul.f32.gmra.mxu0 %v495
    %v529 = vpop.f32.mrf.mxu0
    %v530 = vadd.f32 %v65, %v529
    %531 = vmatmul.f32.gmra.mxu0 %v498
    %v532 = vpop.f32.mrf.mxu0
    %v533 = vadd.f32 %v66, %v532
    %534 = vmatmul.f32.gmra.mxu0 %v501
    %v535 = vpop.f32.mrf.mxu0
    %v536 = vadd.f32 %v67, %v535
    %537 = vmatmul.f32.gmra.mxu0 %v504
    %v538 = vpop.f32.mrf.mxu0
    %v539 = vadd.f32 %v68, %v538
    %540 = vdwg.mxu0
    %v541 = vsel %vm341, %v524, -inf
    %542 = vmax.xlane.f32.xlu0 %v541
    %v543 = vpop.xlane.xlu0 %542
    %v544 = vsel %vm341, %v527, -inf
    %545 = vmax.xlane.f32.xlu0 %v544
    %v546 = vpop.xlane.xlu0 %545
    %v547 = vsel %vm341, %v530, -inf
    %548 = vmax.xlane.f32.xlu0 %v547
    %v549 = vpop.xlane.xlu0 %548
    %v550 = vsel %vm341, %v533, -inf
    %551 = vmax.xlane.f32.xlu0 %v550
    %v552 = vpop.xlane.xlu0 %551
    %v553 = vsel %vm341, %v536, -inf
    %554 = vmax.xlane.f32.xlu0 %v553
    %v555 = vpop.xlane.xlu0 %554
    %v556 = vsel %vm341, %v539, -inf
    %557 = vmax.xlane.f32.xlu0 %v556
    %v558 = vpop.xlane.xlu0 %557
    %v559 = vsub.f32 %v524, %v543
    %v560 = vsub.f32 %v527, %v546
    %v561 = vsub.f32 %v530, %v549
    %v562 = vsub.f32 %v533, %v552
    %v563 = vsub.f32 %v536, %v555
    %v564 = vsub.f32 %v539, %v558
    %v565 = vmul.f32 %v559, 1.442695
    %v566 = vpow.pop %v565
    %v567 = vmul.f32 %v560, 1.442695
    %v568 = vpow.pop %v567
    %v569 = vmul.f32 %v561, 1.442695
    %v570 = vpow.pop %v569
    %v571 = vmul.f32 %v562, 1.442695
    %v572 = vpow.pop %v571
    %v573 = vmul.f32 %v563, 1.442695
    %v574 = vpow.pop %v573
    %v575 = vmul.f32 %v564, 1.442695
    %v576 = vpow.pop %v575
    %v577 = vsel %vm341, %v566, 0.0
    %578 = vadd.xlane.f32.xlu0 %v577
    %v579 = vpop.xlane.xlu0 %578
    %v580 = vsel %vm341, %v568, 0.0
    %581 = vadd.xlane.f32.xlu0 %v580
    %v582 = vpop.xlane.xlu0 %581
    %v583 = vsel %vm341, %v570, 0.0
    %584 = vadd.xlane.f32.xlu0 %v583
    %v585 = vpop.xlane.xlu0 %584
    %v586 = vsel %vm341, %v572, 0.0
    %587 = vadd.xlane.f32.xlu0 %v586
    %v588 = vpop.xlane.xlu0 %587
    %v589 = vsel %vm341, %v574, 0.0
    %590 = vadd.xlane.f32.xlu0 %v589
    %v591 = vpop.xlane.xlu0 %590
    %v592 = vsel %vm341, %v576, 0.0
    %593 = vadd.xlane.f32.xlu0 %v592
    %v594 = vpop.xlane.xlu0 %593
    %v595 = vrcp.pop %v579
    %v596 = vrcp.pop %v582
    %v597 = vrcp.pop %v585
    %v598 = vrcp.pop %v588
    %v599 = vrcp.pop %v591
    %v600 = vrcp.pop %v594
    %v601 = vmul.f32 %v566, %v595
    %v602 = vmul.f32 %v568, %v596
    %v603 = vmul.f32 %v570, %v597
    %v604 = vmul.f32 %v572, %v598
    %v605 = vmul.f32 %v574, %v599
    %v606 = vmul.f32 %v576, %v600
    %607 = vmatpush.msra.mxu0 0.0
    %608 = vmatpush.msra.mxu0 0.0
    %609 = vmatpush.msra.mxu0 0.0
    %610 = vmatpush.msra.mxu0 0.0
    %611 = vmatpush.msra.mxu0 0.0
    %612 = vmatpush.msra.mxu0 0.0
    %613 = vmatpush.msra.mxu0 0.0
    %614 = vmatpush.msra.mxu0 0.0
    %615 = vmatpush.msra.mxu0 0.0
    %616 = vmatpush.msra.mxu0 0.0
    %617 = vmatpush.msra.mxu0 0.0
    %618 = vmatpush.msra.mxu0 0.0
    %619 = vmatpush.msra.mxu0 %v450
    %620 = vmatpush.msra.mxu0 %v449
    %621 = vmatpush.msra.mxu0 %v448
    %622 = vmatpush.msra.mxu0 %v447
    %623 = vmatmul.f32.gmra.mxu0 %v236
    %v624 = vpop.f32.mrf.mxu0
    %v625 = vadd.f32 0.0, %v624
    %626 = vmatmul.f32.gmra.mxu0 %v239
    %v627 = vpop.f32.mrf.mxu0
    %v628 = vadd.f32 0.0, %v627
    %629 = vmatmul.f32.gmra.mxu0 %v242
    %v630 = vpop.f32.mrf.mxu0
    %v631 = vadd.f32 0.0, %v630
    %632 = vmatmul.f32.gmra.mxu0 %v245
    %v633 = vpop.f32.mrf.mxu0
    %v634 = vadd.f32 0.0, %v633
    %635 = vmatmul.f32.gmra.mxu0 %v248
    %v636 = vpop.f32.mrf.mxu0
    %v637 = vadd.f32 0.0, %v636
    %638 = vmatmul.f32.gmra.mxu0 %v251
    %v639 = vpop.f32.mrf.mxu0
    %v640 = vadd.f32 0.0, %v639
    %641 = vdwg.mxu0
    %v643 = vsel %vm341, %v601, 0
    %v646 = vsel %vm341, %v602, 0
    %v649 = vsel %vm341, %v603, 0
    %v652 = vsel %vm341, %v604, 0
    %v655 = vsel %vm341, %v605, 0
    %v658 = vsel %vm341, %v606, 0
    %660 = vmatpush.msra.mxu0 0.0
    %661 = vmatpush.msra.mxu0 0.0
    %662 = vmatpush.msra.mxu0 0.0
    %663 = vmatpush.msra.mxu0 0.0
    %664 = vmatpush.msra.mxu0 0.0
    %665 = vmatpush.msra.mxu0 0.0
    %666 = vmatpush.msra.mxu0 0.0
    %667 = vmatpush.msra.mxu0 0.0
    %668 = vmatpush.msra.mxu0 0.0
    %669 = vmatpush.msra.mxu0 0.0
    %670 = vmatpush.msra.mxu0 %v640
    %671 = vmatpush.msra.mxu0 %v637
    %672 = vmatpush.msra.mxu0 %v634
    %673 = vmatpush.msra.mxu0 %v631
    %674 = vmatpush.msra.mxu0 %v628
    %675 = vmatpush.msra.mxu0 %v625
    %676 = vmatmul.f32.gmra.mxu0 %v643
    %v677 = vpop.f32.mrf.mxu0
    %v678 = vadd.f32 0.0, %v677
    %679 = vmatmul.f32.gmra.mxu0 %v646
    %v680 = vpop.f32.mrf.mxu0
    %v681 = vadd.f32 0.0, %v680
    %682 = vmatmul.f32.gmra.mxu0 %v649
    %v683 = vpop.f32.mrf.mxu0
    %v684 = vadd.f32 0.0, %v683
    %685 = vmatmul.f32.gmra.mxu0 %v652
    %v686 = vpop.f32.mrf.mxu0
    %v687 = vadd.f32 0.0, %v686
    %688 = vmatmul.f32.gmra.mxu0 %v655
    %v689 = vpop.f32.mrf.mxu0
    %v690 = vadd.f32 0.0, %v689
    %691 = vmatmul.f32.gmra.mxu0 %v658
    %v692 = vpop.f32.mrf.mxu0
    %v693 = vadd.f32 0.0, %v692
    %694 = vdwg.mxu0
    %v696 = vsel %vm341, %v402, 0
    %v699 = vsel %vm341, %v403, 0
    %v702 = vsel %vm341, %v404, 0
    %v705 = vsel %vm341, %v405, 0
    %v708 = vsel %vm341, %v406, 0
    %v711 = vsel %vm341, %v407, 0
    %713 = vmatpush.msra.mxu0 0.0
    %714 = vmatpush.msra.mxu0 0.0
    %715 = vmatpush.msra.mxu0 0.0
    %716 = vmatpush.msra.mxu0 0.0
    %717 = vmatpush.msra.mxu0 0.0
    %718 = vmatpush.msra.mxu0 0.0
    %719 = vmatpush.msra.mxu0 0.0
    %720 = vmatpush.msra.mxu0 0.0
    %721 = vmatpush.msra.mxu0 0.0
    %722 = vmatpush.msra.mxu0 0.0
    %723 = vmatpush.msra.mxu0 %v441
    %724 = vmatpush.msra.mxu0 %v438
    %725 = vmatpush.msra.mxu0 %v435
    %726 = vmatpush.msra.mxu0 %v432
    %727 = vmatpush.msra.mxu0 %v429
    %728 = vmatpush.msra.mxu0 %v426
    %729 = vmatmul.f32.gmra.mxu0 %v696
    %v730 = vpop.f32.mrf.mxu0
    %v731 = vadd.f32 %v678, %v730
    %732 = vmatmul.f32.gmra.mxu0 %v699
    %v733 = vpop.f32.mrf.mxu0
    %v734 = vadd.f32 %v681, %v733
    %735 = vmatmul.f32.gmra.mxu0 %v702
    %v736 = vpop.f32.mrf.mxu0
    %v737 = vadd.f32 %v684, %v736
    %738 = vmatmul.f32.gmra.mxu0 %v705
    %v739 = vpop.f32.mrf.mxu0
    %v740 = vadd.f32 %v687, %v739
    %741 = vmatmul.f32.gmra.mxu0 %v708
    %v742 = vpop.f32.mrf.mxu0
    %v743 = vadd.f32 %v690, %v742
    %744 = vmatmul.f32.gmra.mxu0 %v711
    %v745 = vpop.f32.mrf.mxu0
    %v746 = vadd.f32 %v693, %v745
    %747 = vdwg.mxu0
    %v748 = vld [vmem:[%s1 + $0x40] sm:$0xff]
    %v749 = vld [vmem:[%s1 + $0x48] sm:$0xff]
    %v750 = vld [vmem:[%s1 + $0x50] sm:$0xff]
    %v751 = vld [vmem:[%s1 + $0x58] sm:$0xff]
    %v752 = vld [vmem:[%s1 + $0xc0] sm:$0xff]
    %v753 = vld [vmem:[%s1 + $0xc8] sm:$0xff]
    %v754 = vld [vmem:[%s1 + $0xd0] sm:$0xff]
    %v755 = vld [vmem:[%s1 + $0xd8] sm:$0xff]
    %v756 = vld [vmem:[%s1 + $0x148] sm:$0x1]
    %v757 = vperm.slane %v756, 0
    %758 = vmatpush.msra.mxu0 0.0
    %759 = vmatpush.msra.mxu0 0.0
    %760 = vmatpush.msra.mxu0 0.0
    %761 = vmatpush.msra.mxu0 0.0
    %762 = vmatpush.msra.mxu0 0.0
    %763 = vmatpush.msra.mxu0 0.0
    %764 = vmatpush.msra.mxu0 0.0
    %765 = vmatpush.msra.mxu0 0.0
    %766 = vmatpush.msra.mxu0 0.0
    %767 = vmatpush.msra.mxu0 0.0
    %768 = vmatpush.msra.mxu0 0.0
    %769 = vmatpush.msra.mxu0 0.0
    %770 = vmatpush.msra.mxu0 %v751
    %771 = vmatpush.msra.mxu0 %v750
    %772 = vmatpush.msra.mxu0 %v749
    %773 = vmatpush.msra.mxu0 %v748
    %774 = vmatmul.f32.gmra.mxu0 %v236
    %v775 = vpop.f32.mrf.mxu0
    %v776 = vadd.f32 %v757, %v775
    %777 = vmatmul.f32.gmra.mxu0 %v239
    %v778 = vpop.f32.mrf.mxu0
    %v779 = vadd.f32 %v757, %v778
    %780 = vmatmul.f32.gmra.mxu0 %v242
    %v781 = vpop.f32.mrf.mxu0
    %v782 = vadd.f32 %v757, %v781
    %783 = vmatmul.f32.gmra.mxu0 %v245
    %v784 = vpop.f32.mrf.mxu0
    %v785 = vadd.f32 %v757, %v784
    %786 = vmatmul.f32.gmra.mxu0 %v248
    %v787 = vpop.f32.mrf.mxu0
    %v788 = vadd.f32 %v757, %v787
    %789 = vmatmul.f32.gmra.mxu0 %v251
    %v790 = vpop.f32.mrf.mxu0
    %v791 = vadd.f32 %v757, %v790
    %792 = vdwg.mxu0
    %v794 = vsel %vm71, %v776, 0
    %v797 = vsel %vm71, %v779, 0
    %v800 = vsel %vm71, %v782, 0
    %v803 = vsel %vm71, %v785, 0
    %v806 = vsel %vm71, %v788, 0
    %v809 = vsel %vm71, %v791, 0
    %811 = vmatpush.xpose.msra.mxu0 0.0
    %812 = vmatpush.xpose.msra.mxu0 0.0
    %813 = vmatpush.xpose.msra.mxu0 0.0
    %814 = vmatpush.xpose.msra.mxu0 0.0
    %815 = vmatpush.xpose.msra.mxu0 0.0
    %816 = vmatpush.xpose.msra.mxu0 0.0
    %817 = vmatpush.xpose.msra.mxu0 0.0
    %818 = vmatpush.xpose.msra.mxu0 0.0
    %819 = vmatpush.xpose.msra.mxu0 0.0
    %820 = vmatpush.xpose.msra.mxu0 0.0
    %821 = vmatpush.xpose.msra.mxu0 %v251
    %822 = vmatpush.xpose.msra.mxu0 %v248
    %823 = vmatpush.xpose.msra.mxu0 %v245
    %824 = vmatpush.xpose.msra.mxu0 %v242
    %825 = vmatpush.xpose.msra.mxu0 %v239
    %826 = vmatpush.xpose.msra.mxu0 %v236
    %827 = vmatmul.f32.gmra.mxu0 %v794
    %v828 = vpop.f32.mrf.mxu0
    %v829 = vadd.f32 %v63, %v828
    %830 = vmatmul.f32.gmra.mxu0 %v797
    %v831 = vpop.f32.mrf.mxu0
    %v832 = vadd.f32 %v64, %v831
    %833 = vmatmul.f32.gmra.mxu0 %v800
    %v834 = vpop.f32.mrf.mxu0
    %v835 = vadd.f32 %v65, %v834
    %836 = vmatmul.f32.gmra.mxu0 %v803
    %v837 = vpop.f32.mrf.mxu0
    %v838 = vadd.f32 %v66, %v837
    %839 = vmatmul.f32.gmra.mxu0 %v806
    %v840 = vpop.f32.mrf.mxu0
    %v841 = vadd.f32 %v67, %v840
    %842 = vmatmul.f32.gmra.mxu0 %v809
    %v843 = vpop.f32.mrf.mxu0
    %v844 = vadd.f32 %v68, %v843
    %845 = vdwg.mxu0
    %v846 = vsel %vm341, %v829, -inf
    %847 = vmax.xlane.f32.xlu0 %v846
    %v848 = vpop.xlane.xlu0 %847
    %v849 = vsel %vm341, %v832, -inf
    %850 = vmax.xlane.f32.xlu0 %v849
    %v851 = vpop.xlane.xlu0 %850
    %v852 = vsel %vm341, %v835, -inf
    %853 = vmax.xlane.f32.xlu0 %v852
    %v854 = vpop.xlane.xlu0 %853
    %v855 = vsel %vm341, %v838, -inf
    %856 = vmax.xlane.f32.xlu0 %v855
    %v857 = vpop.xlane.xlu0 %856
    %v858 = vsel %vm341, %v841, -inf
    %859 = vmax.xlane.f32.xlu0 %v858
    %v860 = vpop.xlane.xlu0 %859
    %v861 = vsel %vm341, %v844, -inf
    %862 = vmax.xlane.f32.xlu0 %v861
    %v863 = vpop.xlane.xlu0 %862
    %v864 = vsub.f32 %v829, %v848
    %v865 = vsub.f32 %v832, %v851
    %v866 = vsub.f32 %v835, %v854
    %v867 = vsub.f32 %v838, %v857
    %v868 = vsub.f32 %v841, %v860
    %v869 = vsub.f32 %v844, %v863
    %v870 = vmul.f32 %v864, 1.442695
    %v871 = vpow.pop %v870
    %v872 = vmul.f32 %v865, 1.442695
    %v873 = vpow.pop %v872
    %v874 = vmul.f32 %v866, 1.442695
    %v875 = vpow.pop %v874
    %v876 = vmul.f32 %v867, 1.442695
    %v877 = vpow.pop %v876
    %v878 = vmul.f32 %v868, 1.442695
    %v879 = vpow.pop %v878
    %v880 = vmul.f32 %v869, 1.442695
    %v881 = vpow.pop %v880
    %v882 = vsel %vm341, %v871, 0.0
    %883 = vadd.xlane.f32.xlu0 %v882
    %v884 = vpop.xlane.xlu0 %883
    %v885 = vsel %vm341, %v873, 0.0
    %886 = vadd.xlane.f32.xlu0 %v885
    %v887 = vpop.xlane.xlu0 %886
    %v888 = vsel %vm341, %v875, 0.0
    %889 = vadd.xlane.f32.xlu0 %v888
    %v890 = vpop.xlane.xlu0 %889
    %v891 = vsel %vm341, %v877, 0.0
    %892 = vadd.xlane.f32.xlu0 %v891
    %v893 = vpop.xlane.xlu0 %892
    %v894 = vsel %vm341, %v879, 0.0
    %895 = vadd.xlane.f32.xlu0 %v894
    %v896 = vpop.xlane.xlu0 %895
    %v897 = vsel %vm341, %v881, 0.0
    %898 = vadd.xlane.f32.xlu0 %v897
    %v899 = vpop.xlane.xlu0 %898
    %v900 = vrcp.pop %v884
    %v901 = vrcp.pop %v887
    %v902 = vrcp.pop %v890
    %v903 = vrcp.pop %v893
    %v904 = vrcp.pop %v896
    %v905 = vrcp.pop %v899
    %v906 = vmul.f32 %v871, %v900
    %v907 = vmul.f32 %v873, %v901
    %v908 = vmul.f32 %v875, %v902
    %v909 = vmul.f32 %v877, %v903
    %v910 = vmul.f32 %v879, %v904
    %v911 = vmul.f32 %v881, %v905
    %912 = vmatpush.msra.mxu0 0.0
    %913 = vmatpush.msra.mxu0 0.0
    %914 = vmatpush.msra.mxu0 0.0
    %915 = vmatpush.msra.mxu0 0.0
    %916 = vmatpush.msra.mxu0 0.0
    %917 = vmatpush.msra.mxu0 0.0
    %918 = vmatpush.msra.mxu0 0.0
    %919 = vmatpush.msra.mxu0 0.0
    %920 = vmatpush.msra.mxu0 0.0
    %921 = vmatpush.msra.mxu0 0.0
    %922 = vmatpush.msra.mxu0 0.0
    %923 = vmatpush.msra.mxu0 0.0
    %924 = vmatpush.msra.mxu0 %v755
    %925 = vmatpush.msra.mxu0 %v754
    %926 = vmatpush.msra.mxu0 %v753
    %927 = vmatpush.msra.mxu0 %v752
    %928 = vmatmul.f32.gmra.mxu0 %v236
    %v929 = vpop.f32.mrf.mxu0
    %v930 = vadd.f32 0.0, %v929
    %931 = vmatmul.f32.gmra.mxu0 %v239
    %v932 = vpop.f32.mrf.mxu0
    %v933 = vadd.f32 0.0, %v932
    %934 = vmatmul.f32.gmra.mxu0 %v242
    %v935 = vpop.f32.mrf.mxu0
    %v936 = vadd.f32 0.0, %v935
    %937 = vmatmul.f32.gmra.mxu0 %v245
    %v938 = vpop.f32.mrf.mxu0
    %v939 = vadd.f32 0.0, %v938
    %940 = vmatmul.f32.gmra.mxu0 %v248
    %v941 = vpop.f32.mrf.mxu0
    %v942 = vadd.f32 0.0, %v941
    %943 = vmatmul.f32.gmra.mxu0 %v251
    %v944 = vpop.f32.mrf.mxu0
    %v945 = vadd.f32 0.0, %v944
    %946 = vdwg.mxu0
    %v948 = vsel %vm341, %v906, 0
    %v951 = vsel %vm341, %v907, 0
    %v954 = vsel %vm341, %v908, 0
    %v957 = vsel %vm341, %v909, 0
    %v960 = vsel %vm341, %v910, 0
    %v963 = vsel %vm341, %v911, 0
    %965 = vmatpush.msra.mxu0 0.0
    %966 = vmatpush.msra.mxu0 0.0
    %967 = vmatpush.msra.mxu0 0.0
    %968 = vmatpush.msra.mxu0 0.0
    %969 = vmatpush.msra.mxu0 0.0
    %970 = vmatpush.msra.mxu0 0.0
    %971 = vmatpush.msra.mxu0 0.0
    %972 = vmatpush.msra.mxu0 0.0
    %973 = vmatpush.msra.mxu0 0.0
    %974 = vmatpush.msra.mxu0 0.0
    %975 = vmatpush.msra.mxu0 %v945
    %976 = vmatpush.msra.mxu0 %v942
    %977 = vmatpush.msra.mxu0 %v939
    %978 = vmatpush.msra.mxu0 %v936
    %979 = vmatpush.msra.mxu0 %v933
    %980 = vmatpush.msra.mxu0 %v930
    %981 = vmatmul.f32.gmra.mxu0 %v948
    %v982 = vpop.f32.mrf.mxu0
    %v983 = vadd.f32 0.0, %v982
    %984 = vmatmul.f32.gmra.mxu0 %v951
    %v985 = vpop.f32.mrf.mxu0
    %v986 = vadd.f32 0.0, %v985
    %987 = vmatmul.f32.gmra.mxu0 %v954
    %v988 = vpop.f32.mrf.mxu0
    %v989 = vadd.f32 0.0, %v988
    %990 = vmatmul.f32.gmra.mxu0 %v957
    %v991 = vpop.f32.mrf.mxu0
    %v992 = vadd.f32 0.0, %v991
    %993 = vmatmul.f32.gmra.mxu0 %v960
    %v994 = vpop.f32.mrf.mxu0
    %v995 = vadd.f32 0.0, %v994
    %996 = vmatmul.f32.gmra.mxu0 %v963
    %v997 = vpop.f32.mrf.mxu0
    %v998 = vadd.f32 0.0, %v997
    %999 = vdwg.mxu0
    %v1000 = vadd.f32 %v731, %v983
    %v1001 = vadd.f32 %v734, %v986
    %v1002 = vadd.f32 %v737, %v989
    %v1003 = vadd.f32 %v740, %v992
    %v1004 = vadd.f32 %v743, %v995
    %v1005 = vadd.f32 %v746, %v998
    %v1006 = vld [vmem:[%s1 + $0x60] sm:$0xff]
    %v1007 = vld [vmem:[%s1 + $0x68] sm:$0xff]
    %v1008 = vld [vmem:[%s1 + $0x70] sm:$0xff]
    %v1009 = vld [vmem:[%s1 + $0x78] sm:$0xff]
    %v1010 = vld [vmem:[%s1 + $0xe0] sm:$0xff]
    %v1011 = vld [vmem:[%s1 + $0xe8] sm:$0xff]
    %v1012 = vld [vmem:[%s1 + $0xf0] sm:$0xff]
    %v1013 = vld [vmem:[%s1 + $0xf8] sm:$0xff]
    %v1014 = vld [vmem:[%s1 + $0x149] sm:$0x1]
    %v1015 = vperm.slane %v1014, 0
    %1016 = vmatpush.msra.mxu0 0.0
    %1017 = vmatpush.msra.mxu0 0.0
    %1018 = vmatpush.msra.mxu0 0.0
    %1019 = vmatpush.msra.mxu0 0.0
    %1020 = vmatpush.msra.mxu0 0.0
    %1021 = vmatpush.msra.mxu0 0.0
    %1022 = vmatpush.msra.mxu0 0.0
    %1023 = vmatpush.msra.mxu0 0.0
    %1024 = vmatpush.msra.mxu0 0.0
    %1025 = vmatpush.msra.mxu0 0.0
    %1026 = vmatpush.msra.mxu0 0.0
    %1027 = vmatpush.msra.mxu0 0.0
    %1028 = vmatpush.msra.mxu0 %v1009
    %1029 = vmatpush.msra.mxu0 %v1008
    %1030 = vmatpush.msra.mxu0 %v1007
    %1031 = vmatpush.msra.mxu0 %v1006
    %1032 = vmatmul.f32.gmra.mxu0 %v236
    %v1033 = vpop.f32.mrf.mxu0
    %v1034 = vadd.f32 %v1015, %v1033
    %1035 = vmatmul.f32.gmra.mxu0 %v239
    %v1036 = vpop.f32.mrf.mxu0
    %v1037 = vadd.f32 %v1015, %v1036
    %1038 = vmatmul.f32.gmra.mxu0 %v242
    %v1039 = vpop.f32.mrf.mxu0
    %v1040 = vadd.f32 %v1015, %v1039
    %1041 = vmatmul.f32.gmra.mxu0 %v245
    %v1042 = vpop.f32.mrf.mxu0
    %v1043 = vadd.f32 %v1015, %v1042
    %1044 = vmatmul.f32.gmra.mxu0 %v248
    %v1045 = vpop.f32.mrf.mxu0
    %v1046 = vadd.f32 %v1015, %v1045
    %1047 = vmatmul.f32.gmra.mxu0 %v251
    %v1048 = vpop.f32.mrf.mxu0
    %v1049 = vadd.f32 %v1015, %v1048
    %1050 = vdwg.mxu0
    %v1052 = vsel %vm71, %v1034, 0
    %v1055 = vsel %vm71, %v1037, 0
    %v1058 = vsel %vm71, %v1040, 0
    %v1061 = vsel %vm71, %v1043, 0
    %v1064 = vsel %vm71, %v1046, 0
    %v1067 = vsel %vm71, %v1049, 0
    %1069 = vmatpush.xpose.msra.mxu0 0.0
    %1070 = vmatpush.xpose.msra.mxu0 0.0
    %1071 = vmatpush.xpose.msra.mxu0 0.0
    %1072 = vmatpush.xpose.msra.mxu0 0.0
    %1073 = vmatpush.xpose.msra.mxu0 0.0
    %1074 = vmatpush.xpose.msra.mxu0 0.0
    %1075 = vmatpush.xpose.msra.mxu0 0.0
    %1076 = vmatpush.xpose.msra.mxu0 0.0
    %1077 = vmatpush.xpose.msra.mxu0 0.0
    %1078 = vmatpush.xpose.msra.mxu0 0.0
    %1079 = vmatpush.xpose.msra.mxu0 %v251
    %1080 = vmatpush.xpose.msra.mxu0 %v248
    %1081 = vmatpush.xpose.msra.mxu0 %v245
    %1082 = vmatpush.xpose.msra.mxu0 %v242
    %1083 = vmatpush.xpose.msra.mxu0 %v239
    %1084 = vmatpush.xpose.msra.mxu0 %v236
    %1085 = vmatmul.f32.gmra.mxu0 %v1052
    %v1086 = vpop.f32.mrf.mxu0
    %v1087 = vadd.f32 %v63, %v1086
    %1088 = vmatmul.f32.gmra.mxu0 %v1055
    %v1089 = vpop.f32.mrf.mxu0
    %v1090 = vadd.f32 %v64, %v1089
    %1091 = vmatmul.f32.gmra.mxu0 %v1058
    %v1092 = vpop.f32.mrf.mxu0
    %v1093 = vadd.f32 %v65, %v1092
    %1094 = vmatmul.f32.gmra.mxu0 %v1061
    %v1095 = vpop.f32.mrf.mxu0
    %v1096 = vadd.f32 %v66, %v1095
    %1097 = vmatmul.f32.gmra.mxu0 %v1064
    %v1098 = vpop.f32.mrf.mxu0
    %v1099 = vadd.f32 %v67, %v1098
    %1100 = vmatmul.f32.gmra.mxu0 %v1067
    %v1101 = vpop.f32.mrf.mxu0
    %v1102 = vadd.f32 %v68, %v1101
    %1103 = vdwg.mxu0
    %v1104 = vsel %vm341, %v1087, -inf
    %1105 = vmax.xlane.f32.xlu0 %v1104
    %v1106 = vpop.xlane.xlu0 %1105
    %v1107 = vsel %vm341, %v1090, -inf
    %1108 = vmax.xlane.f32.xlu0 %v1107
    %v1109 = vpop.xlane.xlu0 %1108
    %v1110 = vsel %vm341, %v1093, -inf
    %1111 = vmax.xlane.f32.xlu0 %v1110
    %v1112 = vpop.xlane.xlu0 %1111
    %v1113 = vsel %vm341, %v1096, -inf
    %1114 = vmax.xlane.f32.xlu0 %v1113
    %v1115 = vpop.xlane.xlu0 %1114
    %v1116 = vsel %vm341, %v1099, -inf
    %1117 = vmax.xlane.f32.xlu0 %v1116
    %v1118 = vpop.xlane.xlu0 %1117
    %v1119 = vsel %vm341, %v1102, -inf
    %1120 = vmax.xlane.f32.xlu0 %v1119
    %v1121 = vpop.xlane.xlu0 %1120
    %v1122 = vsub.f32 %v1087, %v1106
    %v1123 = vsub.f32 %v1090, %v1109
    %v1124 = vsub.f32 %v1093, %v1112
    %v1125 = vsub.f32 %v1096, %v1115
    %v1126 = vsub.f32 %v1099, %v1118
    %v1127 = vsub.f32 %v1102, %v1121
    %v1128 = vmul.f32 %v1122, 1.442695
    %v1129 = vpow.pop %v1128
    %v1130 = vmul.f32 %v1123, 1.442695
    %v1131 = vpow.pop %v1130
    %v1132 = vmul.f32 %v1124, 1.442695
    %v1133 = vpow.pop %v1132
    %v1134 = vmul.f32 %v1125, 1.442695
    %v1135 = vpow.pop %v1134
    %v1136 = vmul.f32 %v1126, 1.442695
    %v1137 = vpow.pop %v1136
    %v1138 = vmul.f32 %v1127, 1.442695
    %v1139 = vpow.pop %v1138
    %v1140 = vsel %vm341, %v1129, 0.0
    %1141 = vadd.xlane.f32.xlu0 %v1140
    %v1142 = vpop.xlane.xlu0 %1141
    %v1143 = vsel %vm341, %v1131, 0.0
    %1144 = vadd.xlane.f32.xlu0 %v1143
    %v1145 = vpop.xlane.xlu0 %1144
    %v1146 = vsel %vm341, %v1133, 0.0
    %1147 = vadd.xlane.f32.xlu0 %v1146
    %v1148 = vpop.xlane.xlu0 %1147
    %v1149 = vsel %vm341, %v1135, 0.0
    %1150 = vadd.xlane.f32.xlu0 %v1149
    %v1151 = vpop.xlane.xlu0 %1150
    %v1152 = vsel %vm341, %v1137, 0.0
    %1153 = vadd.xlane.f32.xlu0 %v1152
    %v1154 = vpop.xlane.xlu0 %1153
    %v1155 = vsel %vm341, %v1139, 0.0
    %1156 = vadd.xlane.f32.xlu0 %v1155
    %v1157 = vpop.xlane.xlu0 %1156
    %v1158 = vrcp.pop %v1142
    %v1159 = vrcp.pop %v1145
    %v1160 = vrcp.pop %v1148
    %v1161 = vrcp.pop %v1151
    %v1162 = vrcp.pop %v1154
    %v1163 = vrcp.pop %v1157
    %v1164 = vmul.f32 %v1129, %v1158
    %v1165 = vmul.f32 %v1131, %v1159
    %v1166 = vmul.f32 %v1133, %v1160
    %v1167 = vmul.f32 %v1135, %v1161
    %v1168 = vmul.f32 %v1137, %v1162
    %v1169 = vmul.f32 %v1139, %v1163
    %1170 = vmatpush.msra.mxu0 0.0
    %1171 = vmatpush.msra.mxu0 0.0
    %1172 = vmatpush.msra.mxu0 0.0
    %1173 = vmatpush.msra.mxu0 0.0
    %1174 = vmatpush.msra.mxu0 0.0
    %1175 = vmatpush.msra.mxu0 0.0
    %1176 = vmatpush.msra.mxu0 0.0
    %1177 = vmatpush.msra.mxu0 0.0
    %1178 = vmatpush.msra.mxu0 0.0
    %1179 = vmatpush.msra.mxu0 0.0
    %1180 = vmatpush.msra.mxu0 0.0
    %1181 = vmatpush.msra.mxu0 0.0
    %1182 = vmatpush.msra.mxu0 %v1013
    %1183 = vmatpush.msra.mxu0 %v1012
    %1184 = vmatpush.msra.mxu0 %v1011
    %1185 = vmatpush.msra.mxu0 %v1010
    %1186 = vmatmul.f32.gmra.mxu0 %v236
    %v1187 = vpop.f32.mrf.mxu0
    %v1188 = vadd.f32 0.0, %v1187
    %1189 = vmatmul.f32.gmra.mxu0 %v239
    %v1190 = vpop.f32.mrf.mxu0
    %v1191 = vadd.f32 0.0, %v1190
    %1192 = vmatmul.f32.gmra.mxu0 %v242
    %v1193 = vpop.f32.mrf.mxu0
    %v1194 = vadd.f32 0.0, %v1193
    %1195 = vmatmul.f32.gmra.mxu0 %v245
    %v1196 = vpop.f32.mrf.mxu0
    %v1197 = vadd.f32 0.0, %v1196
    %1198 = vmatmul.f32.gmra.mxu0 %v248
    %v1199 = vpop.f32.mrf.mxu0
    %v1200 = vadd.f32 0.0, %v1199
    %1201 = vmatmul.f32.gmra.mxu0 %v251
    %v1202 = vpop.f32.mrf.mxu0
    %v1203 = vadd.f32 0.0, %v1202
    %1204 = vdwg.mxu0
    %v1206 = vsel %vm341, %v1164, 0
    %v1209 = vsel %vm341, %v1165, 0
    %v1212 = vsel %vm341, %v1166, 0
    %v1215 = vsel %vm341, %v1167, 0
    %v1218 = vsel %vm341, %v1168, 0
    %v1221 = vsel %vm341, %v1169, 0
    %1223 = vmatpush.msra.mxu0 0.0
    %1224 = vmatpush.msra.mxu0 0.0
    %1225 = vmatpush.msra.mxu0 0.0
    %1226 = vmatpush.msra.mxu0 0.0
    %1227 = vmatpush.msra.mxu0 0.0
    %1228 = vmatpush.msra.mxu0 0.0
    %1229 = vmatpush.msra.mxu0 0.0
    %1230 = vmatpush.msra.mxu0 0.0
    %1231 = vmatpush.msra.mxu0 0.0
    %1232 = vmatpush.msra.mxu0 0.0
    %1233 = vmatpush.msra.mxu0 %v1203
    %1234 = vmatpush.msra.mxu0 %v1200
    %1235 = vmatpush.msra.mxu0 %v1197
    %1236 = vmatpush.msra.mxu0 %v1194
    %1237 = vmatpush.msra.mxu0 %v1191
    %1238 = vmatpush.msra.mxu0 %v1188
    %1239 = vmatmul.f32.gmra.mxu0 %v1206
    %v1240 = vpop.f32.mrf.mxu0
    %v1241 = vadd.f32 0.0, %v1240
    %1242 = vmatmul.f32.gmra.mxu0 %v1209
    %v1243 = vpop.f32.mrf.mxu0
    %v1244 = vadd.f32 0.0, %v1243
    %1245 = vmatmul.f32.gmra.mxu0 %v1212
    %v1246 = vpop.f32.mrf.mxu0
    %v1247 = vadd.f32 0.0, %v1246
    %1248 = vmatmul.f32.gmra.mxu0 %v1215
    %v1249 = vpop.f32.mrf.mxu0
    %v1250 = vadd.f32 0.0, %v1249
    %1251 = vmatmul.f32.gmra.mxu0 %v1218
    %v1252 = vpop.f32.mrf.mxu0
    %v1253 = vadd.f32 0.0, %v1252
    %1254 = vmatmul.f32.gmra.mxu0 %v1221
    %v1255 = vpop.f32.mrf.mxu0
    %v1256 = vadd.f32 0.0, %v1255
    %1257 = vdwg.mxu0
    %v1258 = vadd.f32 %v1000, %v1241
    %v1259 = vadd.f32 %v1001, %v1244
    %v1260 = vadd.f32 %v1002, %v1247
    %v1261 = vadd.f32 %v1003, %v1250
    %v1262 = vadd.f32 %v1004, %v1253
    %v1263 = vadd.f32 %v1005, %v1256
    %v1264 = vld [vmem:[%s1 + $0x144] sm:$0x1]
    %v1265 = vadd.f32 %v219, %v1258
    %v1266 = vadd.f32 %v220, %v1259
    %v1267 = vadd.f32 %v221, %v1260
    %v1268 = vadd.f32 %v222, %v1261
    %v1269 = vadd.f32 %v223, %v1262
    %v1270 = vadd.f32 %v224, %v1263
    %v1271 = vperm.slane %v1264, 0
    %v1272 = vadd.f32 %v1265, %v1271
    %v1273 = vadd.f32 %v1266, %v1271
    %v1274 = vadd.f32 %v1267, %v1271
    %v1275 = vadd.f32 %v1268, %v1271
    %v1276 = vadd.f32 %v1269, %v1271
    %v1277 = vadd.f32 %v1270, %v1271
    %v1278 = vld [vmem:[%s1 + $0x142] sm:$0x1]
    %v1279 = vld [vmem:[%s1 + $0x143] sm:$0x1]
    %v1280 = vsel %vm71, %v1272, 0.0
    %1281 = vadd.xlane.f32.xlu0 %v1280
    %v1282 = vpop.xlane.xlu0 %1281
    %v1283 = vsel %vm71, %v1273, 0.0
    %1284 = vadd.xlane.f32.xlu0 %v1283
    %v1285 = vpop.xlane.xlu0 %1284
    %v1286 = vsel %vm71, %v1274, 0.0
    %1287 = vadd.xlane.f32.xlu0 %v1286
    %v1288 = vpop.xlane.xlu0 %1287
    %v1289 = vsel %vm71, %v1275, 0.0
    %1290 = vadd.xlane.f32.xlu0 %v1289
    %v1291 = vpop.xlane.xlu0 %1290
    %v1292 = vsel %vm71, %v1276, 0.0
    %1293 = vadd.xlane.f32.xlu0 %v1292
    %v1294 = vpop.xlane.xlu0 %1293
    %v1295 = vsel %vm71, %v1277, 0.0
    %1296 = vadd.xlane.f32.xlu0 %v1295
    %v1297 = vpop.xlane.xlu0 %1296
    %v1298 = vmul.f32 %v1282, %v96
    %v1299 = vmul.f32 %v1285, %v96
    %v1300 = vmul.f32 %v1288, %v96
    %v1301 = vmul.f32 %v1291, %v96
    %v1302 = vmul.f32 %v1294, %v96
    %v1303 = vmul.f32 %v1297, %v96
    %v1304 = vsub.f32 %v1272, %v1298
    %v1305 = vsub.f32 %v1273, %v1299
    %v1306 = vsub.f32 %v1274, %v1300
    %v1307 = vsub.f32 %v1275, %v1301
    %v1308 = vsub.f32 %v1276, %v1302
    %v1309 = vsub.f32 %v1277, %v1303
    %v1310 = vmul.f32 %v1304, %v1304
    %v1311 = vmul.f32 %v1305, %v1305
    %v1312 = vmul.f32 %v1306, %v1306
    %v1313 = vmul.f32 %v1307, %v1307
    %v1314 = vmul.f32 %v1308, %v1308
    %v1315 = vmul.f32 %v1309, %v1309
    %v1316 = vsel %vm71, %v1310, 0.0
    %1317 = vadd.xlane.f32.xlu0 %v1316
    %v1318 = vpop.xlane.xlu0 %1317
    %v1319 = vsel %vm71, %v1311, 0.0
    %1320 = vadd.xlane.f32.xlu0 %v1319
    %v1321 = vpop.xlane.xlu0 %1320
    %v1322 = vsel %vm71, %v1312, 0.0
    %1323 = vadd.xlane.f32.xlu0 %v1322
    %v1324 = vpop.xlane.xlu0 %1323
    %v1325 = vsel %vm71, %v1313, 0.0
    %1326 = vadd.xlane.f32.xlu0 %v1325
    %v1327 = vpop.xlane.xlu0 %1326
    %v1328 = vsel %vm71, %v1314, 0.0
    %1329 = vadd.xlane.f32.xlu0 %v1328
    %v1330 = vpop.xlane.xlu0 %1329
    %v1331 = vsel %vm71, %v1315, 0.0
    %1332 = vadd.xlane.f32.xlu0 %v1331
    %v1333 = vpop.xlane.xlu0 %1332
    %v1334 = vmul.f32 %v1318, %v96
    %v1335 = vmul.f32 %v1321, %v96
    %v1336 = vmul.f32 %v1324, %v96
    %v1337 = vmul.f32 %v1327, %v96
    %v1338 = vmul.f32 %v1330, %v96
    %v1339 = vmul.f32 %v1333, %v96
    %v1340 = vadd.f32 %v1334, 1e-05
    %v1341 = vadd.f32 %v1335, 1e-05
    %v1342 = vadd.f32 %v1336, 1e-05
    %v1343 = vadd.f32 %v1337, 1e-05
    %v1344 = vadd.f32 %v1338, 1e-05
    %v1345 = vadd.f32 %v1339, 1e-05
    %v1346 = vrsqrt.pop %v1340
    %v1347 = vmul.f32 %v1346, %v1340
    %v1348 = vmul.f32 %v1347, %v1346
    %v1349 = vmul.f32 0.5, %v1348
    %v1350 = vsub.f32 1.5, %v1349
    %v1351 = vmul.f32 %v1346, %v1350
    %vm1352 = vweird.f32 %v1340
    %vm1353 = vweird.f32 %v1346
    %vm1354 = vmor %vm1352, %vm1353
    %v1355 = vsel %vm1354, %v1346, %v1351
    %v1356 = vrsqrt.pop %v1341
    %v1357 = vmul.f32 %v1356, %v1341
    %v1358 = vmul.f32 %v1357, %v1356
    %v1359 = vmul.f32 0.5, %v1358
    %v1360 = vsub.f32 1.5, %v1359
    %v1361 = vmul.f32 %v1356, %v1360
    %vm1362 = vweird.f32 %v1341
    %vm1363 = vweird.f32 %v1356
    %vm1364 = vmor %vm1362, %vm1363
    %v1365 = vsel %vm1364, %v1356, %v1361
    %v1366 = vrsqrt.pop %v1342
    %v1367 = vmul.f32 %v1366, %v1342
    %v1368 = vmul.f32 %v1367, %v1366
    %v1369 = vmul.f32 0.5, %v1368
    %v1370 = vsub.f32 1.5, %v1369
    %v1371 = vmul.f32 %v1366, %v1370
    %vm1372 = vweird.f32 %v1342
    %vm1373 = vweird.f32 %v1366
    %vm1374 = vmor %vm1372, %vm1373
    %v1375 = vsel %vm1374, %v1366, %v1371
    %v1376 = vrsqrt.pop %v1343
    %v1377 = vmul.f32 %v1376, %v1343
    %v1378 = vmul.f32 %v1377, %v1376
    %v1379 = vmul.f32 0.5, %v1378
    %v1380 = vsub.f32 1.5, %v1379
    %v1381 = vmul.f32 %v1376, %v1380
    %vm1382 = vweird.f32 %v1343
    %vm1383 = vweird.f32 %v1376
    %vm1384 = vmor %vm1382, %vm1383
    %v1385 = vsel %vm1384, %v1376, %v1381
    %v1386 = vrsqrt.pop %v1344
    %v1387 = vmul.f32 %v1386, %v1344
    %v1388 = vmul.f32 %v1387, %v1386
    %v1389 = vmul.f32 0.5, %v1388
    %v1390 = vsub.f32 1.5, %v1389
    %v1391 = vmul.f32 %v1386, %v1390
    %vm1392 = vweird.f32 %v1344
    %vm1393 = vweird.f32 %v1386
    %vm1394 = vmor %vm1392, %vm1393
    %v1395 = vsel %vm1394, %v1386, %v1391
    %v1396 = vrsqrt.pop %v1345
    %v1397 = vmul.f32 %v1396, %v1345
    %v1398 = vmul.f32 %v1397, %v1396
    %v1399 = vmul.f32 0.5, %v1398
    %v1400 = vsub.f32 1.5, %v1399
    %v1401 = vmul.f32 %v1396, %v1400
    %vm1402 = vweird.f32 %v1345
    %vm1403 = vweird.f32 %v1396
    %vm1404 = vmor %vm1402, %vm1403
    %v1405 = vsel %vm1404, %v1396, %v1401
    %v1406 = vmul.f32 %v1304, %v1355
    %v1407 = vmul.f32 %v1305, %v1365
    %v1408 = vmul.f32 %v1306, %v1375
    %v1409 = vmul.f32 %v1307, %v1385
    %v1410 = vmul.f32 %v1308, %v1395
    %v1411 = vmul.f32 %v1309, %v1405
    %v1412 = vperm.slane %v1278, 0
    %v1413 = vmul.f32 %v1406, %v1412
    %v1414 = vmul.f32 %v1407, %v1412
    %v1415 = vmul.f32 %v1408, %v1412
    %v1416 = vmul.f32 %v1409, %v1412
    %v1417 = vmul.f32 %v1410, %v1412
    %v1418 = vmul.f32 %v1411, %v1412
    %v1419 = vperm.slane %v1279, 0
    %v1420 = vadd.f32 %v1413, %v1419
    %v1421 = vadd.f32 %v1414, %v1419
    %v1422 = vadd.f32 %v1415, %v1419
    %v1423 = vadd.f32 %v1416, %v1419
    %v1424 = vadd.f32 %v1417, %v1419
    %v1425 = vadd.f32 %v1418, %v1419
    %v1426 = vld [vmem:[%s2] sm:$0xff]
    %v1427 = vld [vmem:[%s2 + $0x8] sm:$0xff]
    %v1428 = vld [vmem:[%s2 + $0x10] sm:$0xff]
    %v1429 = vld [vmem:[%s2 + $0x18] sm:$0xff]
    %v1430 = vld [vmem:[%s2 + $0x20] sm:$0x1]
    %v1431 = vperm.slane %v1430, 0
    %v1433 = vsel %vm71, %v1420, 0
    %v1436 = vsel %vm71, %v1421, 0
    %v1439 = vsel %vm71, %v1422, 0
    %v1442 = vsel %vm71, %v1423, 0
    %v1445 = vsel %vm71, %v1424, 0
    %v1448 = vsel %vm71, %v1425, 0
    %1450 = vmatpush.msra.mxu0 0.0
    %1451 = vmatpush.msra.mxu0 0.0
    %1452 = vmatpush.msra.mxu0 0.0
    %1453 = vmatpush.msra.mxu0 0.0
    %1454 = vmatpush.msra.mxu0 0.0
    %1455 = vmatpush.msra.mxu0 0.0
    %1456 = vmatpush.msra.mxu0 0.0
    %1457 = vmatpush.msra.mxu0 0.0
    %1458 = vmatpush.msra.mxu0 0.0
    %1459 = vmatpush.msra.mxu0 0.0
    %1460 = vmatpush.msra.mxu0 0.0
    %1461 = vmatpush.msra.mxu0 0.0
    %1462 = vmatpush.msra.mxu0 %v1429
    %1463 = vmatpush.msra.mxu0 %v1428
    %1464 = vmatpush.msra.mxu0 %v1427
    %1465 = vmatpush.msra.mxu0 %v1426
    %1466 = vmatmul.f32.gmra.mxu0 %v1433
    %v1467 = vpop.f32.mrf.mxu0
    %v1468 = vadd.f32 %v1431, %v1467
    %1469 = vmatmul.f32.gmra.mxu0 %v1436
    %v1470 = vpop.f32.mrf.mxu0
    %v1471 = vadd.f32 %v1431, %v1470
    %1472 = vmatmul.f32.gmra.mxu0 %v1439
    %v1473 = vpop.f32.mrf.mxu0
    %v1474 = vadd.f32 %v1431, %v1473
    %1475 = vmatmul.f32.gmra.mxu0 %v1442
    %v1476 = vpop.f32.mrf.mxu0
    %v1477 = vadd.f32 %v1431, %v1476
    %1478 = vmatmul.f32.gmra.mxu0 %v1445
    %v1479 = vpop.f32.mrf.mxu0
    %v1480 = vadd.f32 %v1431, %v1479
    %1481 = vmatmul.f32.gmra.mxu0 %v1448
    %v1482 = vpop.f32.mrf.mxu0
    %v1483 = vadd.f32 %v1431, %v1482
    %1484 = vdwg.mxu0
    %v1485 = vmul.f32 %v1468, 0.5
    %v1486 = vmul.f32 %v1471, 0.5
    %v1487 = vmul.f32 %v1474, 0.5
    %v1488 = vmul.f32 %v1477, 0.5
    %v1489 = vmul.f32 %v1480, 0.5
    %v1490 = vmul.f32 %v1483, 0.5
    %v1491 = vmul.f32 %v1468, 0.044715
    %v1492 = vmul.f32 %v1471, 0.044715
    %v1493 = vmul.f32 %v1474, 0.044715
    %v1494 = vmul.f32 %v1477, 0.044715
    %v1495 = vmul.f32 %v1480, 0.044715
    %v1496 = vmul.f32 %v1483, 0.044715
    %v1497 = vmul.f32 %v1491, %v1468
    %v1498 = vmul.f32 %v1492, %v1471
    %v1499 = vmul.f32 %v1493, %v1474
    %v1500 = vmul.f32 %v1494, %v1477
    %v1501 = vmul.f32 %v1495, %v1480
    %v1502 = vmul.f32 %v1496, %v1483
    %v1503 = vmul.f32 %v1497, %v1468
    %v1504 = vmul.f32 %v1498, %v1471
    %v1505 = vmul.f32 %v1499, %v1474
    %v1506 = vmul.f32 %v1500, %v1477
    %v1507 = vmul.f32 %v1501, %v1480
    %v1508 = vmul.f32 %v1502, %v1483
    %v1509 = vadd.f32 %v1468, %v1503
    %v1510 = vadd.f32 %v1471, %v1504
    %v1511 = vadd.f32 %v1474, %v1505
    %v1512 = vadd.f32 %v1477, %v1506
    %v1513 = vadd.f32 %v1480, %v1507
    %v1514 = vadd.f32 %v1483, %v1508
    %v1515 = vmul.f32 %v1509, 0.7978846
    %v1516 = vmul.f32 %v1510, 0.7978846
    %v1517 = vmul.f32 %v1511, 0.7978846
    %v1518 = vmul.f32 %v1512, 0.7978846
    %v1519 = vmul.f32 %v1513, 0.7978846
    %v1520 = vmul.f32 %v1514, 0.7978846
    %v1521 = vtanh.pop %v1515
    %v1522 = vtanh.pop %v1516
    %v1523 = vtanh.pop %v1517
    %v1524 = vtanh.pop %v1518
    %v1525 = vtanh.pop %v1519
    %v1526 = vtanh.pop %v1520
    %v1527 = vadd.f32 %v1521, 1.0
    %v1528 = vadd.f32 %v1522, 1.0
    %v1529 = vadd.f32 %v1523, 1.0
    %v1530 = vadd.f32 %v1524, 1.0
    %v1531 = vadd.f32 %v1525, 1.0
    %v1532 = vadd.f32 %v1526, 1.0
    %v1533 = vmul.f32 %v1485, %v1527
    %v1534 = vmul.f32 %v1486, %v1528
    %v1535 = vmul.f32 %v1487, %v1529
    %v1536 = vmul.f32 %v1488, %v1530
    %v1537 = vmul.f32 %v1489, %v1531
    %v1538 = vmul.f32 %v1490, %v1532
    %v1539 = vld [vmem:[%s1 + $0x100] sm:$0xff]
    %v1540 = vld [vmem:[%s1 + $0x108] sm:$0xff]
    %v1541 = vld [vmem:[%s1 + $0x110] sm:$0xff]
    %v1542 = vld [vmem:[%s1 + $0x118] sm:$0xff]
    %v1543 = vld [vmem:[%s1 + $0x120] sm:$0xff]
    %v1544 = vld [vmem:[%s1 + $0x128] sm:$0xff]
    %v1545 = vld [vmem:[%s1 + $0x130] sm:$0xff]
    %v1546 = vld [vmem:[%s1 + $0x138] sm:$0xff]
    %v1547 = vld [vmem:[%s1 + $0x145] sm:$0x1]
    %v1548 = vperm.slane %v1547, 0
    %vm1549 = vcmask 523264
    %v1551 = vsel %vm1549, %v1533, 0
    %v1554 = vsel %vm1549, %v1534, 0
    %v1557 = vsel %vm1549, %v1535, 0
    %v1560 = vsel %vm1549, %v1536, 0
    %v1563 = vsel %vm1549, %v1537, 0
    %v1566 = vsel %vm1549, %v1538, 0
    %1568 = vmatpush.msra.mxu0 0.0
    %1569 = vmatpush.msra.mxu0 0.0
    %1570 = vmatpush.msra.mxu0 0.0
    %1571 = vmatpush.msra.mxu0 0.0
    %1572 = vmatpush.msra.mxu0 0.0
    %1573 = vmatpush.msra.mxu0 0.0
    %1574 = vmatpush.msra.mxu0 0.0
    %1575 = vmatpush.msra.mxu0 0.0
    %1576 = vmatpush.msra.mxu0 %v1546
    %1577 = vmatpush.msra.mxu0 %v1545
    %1578 = vmatpush.msra.mxu0 %v1544
    %1579 = vmatpush.msra.mxu0 %v1543
    %1580 = vmatpush.msra.mxu0 %v1542
    %1581 = vmatpush.msra.mxu0 %v1541
    %1582 = vmatpush.msra.mxu0 %v1540
    %1583 = vmatpush.msra.mxu0 %v1539
    %1584 = vmatmul.f32.gmra.mxu0 %v1551
    %v1585 = vpop.f32.mrf.mxu0
    %v1586 = vadd.f32 %v1548, %v1585
    %1587 = vmatmul.f32.gmra.mxu0 %v1554
    %v1588 = vpop.f32.mrf.mxu0
    %v1589 = vadd.f32 %v1548, %v1588
    %1590 = vmatmul.f32.gmra.mxu0 %v1557
    %v1591 = vpop.f32.mrf.mxu0
    %v1592 = vadd.f32 %v1548, %v1591
    %1593 = vmatmul.f32.gmra.mxu0 %v1560
    %v1594 = vpop.f32.mrf.mxu0
    %v1595 = vadd.f32 %v1548, %v1594
    %1596 = vmatmul.f32.gmra.mxu0 %v1563
    %v1597 = vpop.f32.mrf.mxu0
    %v1598 = vadd.f32 %v1548, %v1597
    %1599 = vmatmul.f32.gmra.mxu0 %v1566
    %v1600 = vpop.f32.mrf.mxu0
    %v1601 = vadd.f32 %v1548, %v1600
    %1602 = vdwg.mxu0
    %v1603 = vadd.f32 %v1272, %v1586
    %v1604 = vadd.f32 %v1273, %v1589
    %v1605 = vadd.f32 %v1274, %v1592
    %v1606 = vadd.f32 %v1275, %v1595
    %v1607 = vadd.f32 %v1276, %v1598
    %v1608 = vadd.f32 %v1277, %v1601
    %v1609 = vld [vmem:[%s1 + $0x290] sm:$0x1]
    %v1610 = vld [vmem:[%s1 + $0x291] sm:$0x1]
    %v1611 = vsel %vm71, %v1603, 0.0
    %1612 = vadd.xlane.f32.xlu0 %v1611
    %v1613 = vpop.xlane.xlu0 %1612
    %v1614 = vsel %vm71, %v1604, 0.0
    %1615 = vadd.xlane.f32.xlu0 %v1614
    %v1616 = vpop.xlane.xlu0 %1615
    %v1617 = vsel %vm71, %v1605, 0.0
    %1618 = vadd.xlane.f32.xlu0 %v1617
    %v1619 = vpop.xlane.xlu0 %1618
    %v1620 = vsel %vm71, %v1606, 0.0
    %1621 = vadd.xlane.f32.xlu0 %v1620
    %v1622 = vpop.xlane.xlu0 %1621
    %v1623 = vsel %vm71, %v1607, 0.0
    %1624 = vadd.xlane.f32.xlu0 %v1623
    %v1625 = vpop.xlane.xlu0 %1624
    %v1626 = vsel %vm71, %v1608, 0.0
    %1627 = vadd.xlane.f32.xlu0 %v1626
    %v1628 = vpop.xlane.xlu0 %1627
    %v1629 = vmul.f32 %v1613, %v96
    %v1630 = vmul.f32 %v1616, %v96
    %v1631 = vmul.f32 %v1619, %v96
    %v1632 = vmul.f32 %v1622, %v96
    %v1633 = vmul.f32 %v1625, %v96
    %v1634 = vmul.f32 %v1628, %v96
    %v1635 = vsub.f32 %v1603, %v1629
    %v1636 = vsub.f32 %v1604, %v1630
    %v1637 = vsub.f32 %v1605, %v1631
    %v1638 = vsub.f32 %v1606, %v1632
    %v1639 = vsub.f32 %v1607, %v1633
    %v1640 = vsub.f32 %v1608, %v1634
    %v1641 = vmul.f32 %v1635, %v1635
    %v1642 = vmul.f32 %v1636, %v1636
    %v1643 = vmul.f32 %v1637, %v1637
    %v1644 = vmul.f32 %v1638, %v1638
    %v1645 = vmul.f32 %v1639, %v1639
    %v1646 = vmul.f32 %v1640, %v1640
    %v1647 = vsel %vm71, %v1641, 0.0
    %1648 = vadd.xlane.f32.xlu0 %v1647
    %v1649 = vpop.xlane.xlu0 %1648
    %v1650 = vsel %vm71, %v1642, 0.0
    %1651 = vadd.xlane.f32.xlu0 %v1650
    %v1652 = vpop.xlane.xlu0 %1651
    %v1653 = vsel %vm71, %v1643, 0.0
    %1654 = vadd.xlane.f32.xlu0 %v1653
    %v1655 = vpop.xlane.xlu0 %1654
    %v1656 = vsel %vm71, %v1644, 0.0
    %1657 = vadd.xlane.f32.xlu0 %v1656
    %v1658 = vpop.xlane.xlu0 %1657
    %v1659 = vsel %vm71, %v1645, 0.0
    %1660 = vadd.xlane.f32.xlu0 %v1659
    %v1661 = vpop.xlane.xlu0 %1660
    %v1662 = vsel %vm71, %v1646, 0.0
    %1663 = vadd.xlane.f32.xlu0 %v1662
    %v1664 = vpop.xlane.xlu0 %1663
    %v1665 = vmul.f32 %v1649, %v96
    %v1666 = vmul.f32 %v1652, %v96
    %v1667 = vmul.f32 %v1655, %v96
    %v1668 = vmul.f32 %v1658, %v96
    %v1669 = vmul.f32 %v1661, %v96
    %v1670 = vmul.f32 %v1664, %v96
    %v1671 = vadd.f32 %v1665, 1e-05
    %v1672 = vadd.f32 %v1666, 1e-05
    %v1673 = vadd.f32 %v1667, 1e-05
    %v1674 = vadd.f32 %v1668, 1e-05
    %v1675 = vadd.f32 %v1669, 1e-05
    %v1676 = vadd.f32 %v1670, 1e-05
    %v1677 = vrsqrt.pop %v1671
    %v1678 = vmul.f32 %v1677, %v1671
    %v1679 = vmul.f32 %v1678, %v1677
    %v1680 = vmul.f32 0.5, %v1679
    %v1681 = vsub.f32 1.5, %v1680
    %v1682 = vmul.f32 %v1677, %v1681
    %vm1683 = vweird.f32 %v1671
    %vm1684 = vweird.f32 %v1677
    %vm1685 = vmor %vm1683, %vm1684
    %v1686 = vsel %vm1685, %v1677, %v1682
    %v1687 = vrsqrt.pop %v1672
    %v1688 = vmul.f32 %v1687, %v1672
    %v1689 = vmul.f32 %v1688, %v1687
    %v1690 = vmul.f32 0.5, %v1689
    %v1691 = vsub.f32 1.5, %v1690
    %v1692 = vmul.f32 %v1687, %v1691
    %vm1693 = vweird.f32 %v1672
    %vm1694 = vweird.f32 %v1687
    %vm1695 = vmor %vm1693, %vm1694
    %v1696 = vsel %vm1695, %v1687, %v1692
    %v1697 = vrsqrt.pop %v1673
    %v1698 = vmul.f32 %v1697, %v1673
    %v1699 = vmul.f32 %v1698, %v1697
    %v1700 = vmul.f32 0.5, %v1699
    %v1701 = vsub.f32 1.5, %v1700
    %v1702 = vmul.f32 %v1697, %v1701
    %vm1703 = vweird.f32 %v1673
    %vm1704 = vweird.f32 %v1697
    %vm1705 = vmor %vm1703, %vm1704
    %v1706 = vsel %vm1705, %v1697, %v1702
    %v1707 = vrsqrt.pop %v1674
    %v1708 = vmul.f32 %v1707, %v1674
    %v1709 = vmul.f32 %v1708, %v1707
    %v1710 = vmul.f32 0.5, %v1709
    %v1711 = vsub.f32 1.5, %v1710
    %v1712 = vmul.f32 %v1707, %v1711
    %vm1713 = vweird.f32 %v1674
    %vm1714 = vweird.f32 %v1707
    %vm1715 = vmor %vm1713, %vm1714
    %v1716 = vsel %vm1715, %v1707, %v1712
    %v1717 = vrsqrt.pop %v1675
    %v1718 = vmul.f32 %v1717, %v1675
    %v1719 = vmul.f32 %v1718, %v1717
    %v1720 = vmul.f32 0.5, %v1719
    %v1721 = vsub.f32 1.5, %v1720
    %v1722 = vmul.f32 %v1717, %v1721
    %vm1723 = vweird.f32 %v1675
    %vm1724 = vweird.f32 %v1717
    %vm1725 = vmor %vm1723, %vm1724
    %v1726 = vsel %vm1725, %v1717, %v1722
    %v1727 = vrsqrt.pop %v1676
    %v1728 = vmul.f32 %v1727, %v1676
    %v1729 = vmul.f32 %v1728, %v1727
    %v1730 = vmul.f32 0.5, %v1729
    %v1731 = vsub.f32 1.5, %v1730
    %v1732 = vmul.f32 %v1727, %v1731
    %vm1733 = vweird.f32 %v1676
    %vm1734 = vweird.f32 %v1727
    %vm1735 = vmor %vm1733, %vm1734
    %v1736 = vsel %vm1735, %v1727, %v1732
    %v1737 = vmul.f32 %v1635, %v1686
    %v1738 = vmul.f32 %v1636, %v1696
    %v1739 = vmul.f32 %v1637, %v1706
    %v1740 = vmul.f32 %v1638, %v1716
    %v1741 = vmul.f32 %v1639, %v1726
    %v1742 = vmul.f32 %v1640, %v1736
    %v1743 = vperm.slane %v1609, 0
    %v1744 = vmul.f32 %v1737, %v1743
    %v1745 = vmul.f32 %v1738, %v1743
    %v1746 = vmul.f32 %v1739, %v1743
    %v1747 = vmul.f32 %v1740, %v1743
    %v1748 = vmul.f32 %v1741, %v1743
    %v1749 = vmul.f32 %v1742, %v1743
    %v1750 = vperm.slane %v1610, 0
    %v1751 = vadd.f32 %v1744, %v1750
    %v1752 = vadd.f32 %v1745, %v1750
    %v1753 = vadd.f32 %v1746, %v1750
    %v1754 = vadd.f32 %v1747, %v1750
    %v1755 = vadd.f32 %v1748, %v1750
    %v1756 = vadd.f32 %v1749, %v1750
    %v1757 = vld [vmem:[%s1 + $0x150] sm:$0xff]
    %v1758 = vld [vmem:[%s1 + $0x158] sm:$0xff]
    %v1759 = vld [vmem:[%s1 + $0x160] sm:$0xff]
    %v1760 = vld [vmem:[%s1 + $0x168] sm:$0xff]
    %v1761 = vld [vmem:[%s1 + $0x1d0] sm:$0xff]
    %v1762 = vld [vmem:[%s1 + $0x1d8] sm:$0xff]
    %v1763 = vld [vmem:[%s1 + $0x1e0] sm:$0xff]
    %v1764 = vld [vmem:[%s1 + $0x1e8] sm:$0xff]
    %v1765 = vld [vmem:[%s1 + $0x296] sm:$0x1]
    %v1766 = vperm.slane %v1765, 0
    %v1768 = vsel %vm71, %v1751, 0
    %v1771 = vsel %vm71, %v1752, 0
    %v1774 = vsel %vm71, %v1753, 0
    %v1777 = vsel %vm71, %v1754, 0
    %v1780 = vsel %vm71, %v1755, 0
    %v1783 = vsel %vm71, %v1756, 0
    %1785 = vmatpush.msra.mxu0 0.0
    %1786 = vmatpush.msra.mxu0 0.0
    %1787 = vmatpush.msra.mxu0 0.0
    %1788 = vmatpush.msra.mxu0 0.0
    %1789 = vmatpush.msra.mxu0 0.0
    %1790 = vmatpush.msra.mxu0 0.0
    %1791 = vmatpush.msra.mxu0 0.0
    %1792 = vmatpush.msra.mxu0 0.0
    %1793 = vmatpush.msra.mxu0 0.0
    %1794 = vmatpush.msra.mxu0 0.0
    %1795 = vmatpush.msra.mxu0 0.0
    %1796 = vmatpush.msra.mxu0 0.0
    %1797 = vmatpush.msra.mxu0 %v1760
    %1798 = vmatpush.msra.mxu0 %v1759
    %1799 = vmatpush.msra.mxu0 %v1758
    %1800 = vmatpush.msra.mxu0 %v1757
    %1801 = vmatmul.f32.gmra.mxu0 %v1768
    %v1802 = vpop.f32.mrf.mxu0
    %v1803 = vadd.f32 %v1766, %v1802
    %1804 = vmatmul.f32.gmra.mxu0 %v1771
    %v1805 = vpop.f32.mrf.mxu0
    %v1806 = vadd.f32 %v1766, %v1805
    %1807 = vmatmul.f32.gmra.mxu0 %v1774
    %v1808 = vpop.f32.mrf.mxu0
    %v1809 = vadd.f32 %v1766, %v1808
    %1810 = vmatmul.f32.gmra.mxu0 %v1777
    %v1811 = vpop.f32.mrf.mxu0
    %v1812 = vadd.f32 %v1766, %v1811
    %1813 = vmatmul.f32.gmra.mxu0 %v1780
    %v1814 = vpop.f32.mrf.mxu0
    %v1815 = vadd.f32 %v1766, %v1814
    %1816 = vmatmul.f32.gmra.mxu0 %v1783
    %v1817 = vpop.f32.mrf.mxu0
    %v1818 = vadd.f32 %v1766, %v1817
    %1819 = vdwg.mxu0
    %v1821 = vsel %vm71, %v1803, 0
    %v1824 = vsel %vm71, %v1806, 0
    %v1827 = vsel %vm71, %v1809, 0
    %v1830 = vsel %vm71, %v1812, 0
    %v1833 = vsel %vm71, %v1815, 0
    %v1836 = vsel %vm71, %v1818, 0
    %1838 = vmatpush.xpose.msra.mxu0 0.0
    %1839 = vmatpush.xpose.msra.mxu0 0.0
    %1840 = vmatpush.xpose.msra.mxu0 0.0
    %1841 = vmatpush.xpose.msra.mxu0 0.0
    %1842 = vmatpush.xpose.msra.mxu0 0.0
    %1843 = vmatpush.xpose.msra.mxu0 0.0
    %1844 = vmatpush.xpose.msra.mxu0 0.0
    %1845 = vmatpush.xpose.msra.mxu0 0.0
    %1846 = vmatpush.xpose.msra.mxu0 0.0
    %1847 = vmatpush.xpose.msra.mxu0 0.0
    %1848 = vmatpush.xpose.msra.mxu0 %v1783
    %1849 = vmatpush.xpose.msra.mxu0 %v1780
    %1850 = vmatpush.xpose.msra.mxu0 %v1777
    %1851 = vmatpush.xpose.msra.mxu0 %v1774
    %1852 = vmatpush.xpose.msra.mxu0 %v1771
    %1853 = vmatpush.xpose.msra.mxu0 %v1768
    %1854 = vmatmul.f32.gmra.mxu0 %v1821
    %v1855 = vpop.f32.mrf.mxu0
    %v1856 = vadd.f32 %v63, %v1855
    %1857 = vmatmul.f32.gmra.mxu0 %v1824
    %v1858 = vpop.f32.mrf.mxu0
    %v1859 = vadd.f32 %v64, %v1858
    %1860 = vmatmul.f32.gmra.mxu0 %v1827
    %v1861 = vpop.f32.mrf.mxu0
    %v1862 = vadd.f32 %v65, %v1861
    %1863 = vmatmul.f32.gmra.mxu0 %v1830
    %v1864 = vpop.f32.mrf.mxu0
    %v1865 = vadd.f32 %v66, %v1864
    %1866 = vmatmul.f32.gmra.mxu0 %v1833
    %v1867 = vpop.f32.mrf.mxu0
    %v1868 = vadd.f32 %v67, %v1867
    %1869 = vmatmul.f32.gmra.mxu0 %v1836
    %v1870 = vpop.f32.mrf.mxu0
    %v1871 = vadd.f32 %v68, %v1870
    %1872 = vdwg.mxu0
    %v1873 = vsel %vm341, %v1856, -inf
    %1874 = vmax.xlane.f32.xlu0 %v1873
    %v1875 = vpop.xlane.xlu0 %1874
    %v1876 = vsel %vm341, %v1859, -inf
    %1877 = vmax.xlane.f32.xlu0 %v1876
    %v1878 = vpop.xlane.xlu0 %1877
    %v1879 = vsel %vm341, %v1862, -inf
    %1880 = vmax.xlane.f32.xlu0 %v1879
    %v1881 = vpop.xlane.xlu0 %1880
    %v1882 = vsel %vm341, %v1865, -inf
    %1883 = vmax.xlane.f32.xlu0 %v1882
    %v1884 = vpop.xlane.xlu0 %1883
    %v1885 = vsel %vm341, %v1868, -inf
    %1886 = vmax.xlane.f32.xlu0 %v1885
    %v1887 = vpop.xlane.xlu0 %1886
    %v1888 = vsel %vm341, %v1871, -inf
    %1889 = vmax.xlane.f32.xlu0 %v1888
    %v1890 = vpop.xlane.xlu0 %1889
    %v1891 = vsub.f32 %v1856, %v1875
    %v1892 = vsub.f32 %v1859, %v1878
    %v1893 = vsub.f32 %v1862, %v1881
    %v1894 = vsub.f32 %v1865, %v1884
    %v1895 = vsub.f32 %v1868, %v1887
    %v1896 = vsub.f32 %v1871, %v1890
    %v1897 = vmul.f32 %v1891, 1.442695
    %v1898 = vpow.pop %v1897
    %v1899 = vmul.f32 %v1892, 1.442695
    %v1900 = vpow.pop %v1899
    %v1901 = vmul.f32 %v1893, 1.442695
    %v1902 = vpow.pop %v1901
    %v1903 = vmul.f32 %v1894, 1.442695
    %v1904 = vpow.pop %v1903
    %v1905 = vmul.f32 %v1895, 1.442695
    %v1906 = vpow.pop %v1905
    %v1907 = vmul.f32 %v1896, 1.442695
    %v1908 = vpow.pop %v1907
    %v1909 = vsel %vm341, %v1898, 0.0
    %1910 = vadd.xlane.f32.xlu0 %v1909
    %v1911 = vpop.xlane.xlu0 %1910
    %v1912 = vsel %vm341, %v1900, 0.0
    %1913 = vadd.xlane.f32.xlu0 %v1912
    %v1914 = vpop.xlane.xlu0 %1913
    %v1915 = vsel %vm341, %v1902, 0.0
    %1916 = vadd.xlane.f32.xlu0 %v1915
    %v1917 = vpop.xlane.xlu0 %1916
    %v1918 = vsel %vm341, %v1904, 0.0
    %1919 = vadd.xlane.f32.xlu0 %v1918
    %v1920 = vpop.xlane.xlu0 %1919
    %v1921 = vsel %vm341, %v1906, 0.0
    %1922 = vadd.xlane.f32.xlu0 %v1921
    %v1923 = vpop.xlane.xlu0 %1922
    %v1924 = vsel %vm341, %v1908, 0.0
    %1925 = vadd.xlane.f32.xlu0 %v1924
    %v1926 = vpop.xlane.xlu0 %1925
    %v1927 = vrcp.pop %v1911
    %v1928 = vrcp.pop %v1914
    %v1929 = vrcp.pop %v1917
    %v1930 = vrcp.pop %v1920
    %v1931 = vrcp.pop %v1923
    %v1932 = vrcp.pop %v1926
    %v1933 = vmul.f32 %v1898, %v1927
    %v1934 = vmul.f32 %v1900, %v1928
    %v1935 = vmul.f32 %v1902, %v1929
    %v1936 = vmul.f32 %v1904, %v1930
    %v1937 = vmul.f32 %v1906, %v1931
    %v1938 = vmul.f32 %v1908, %v1932
    %1939 = vmatpush.msra.mxu0 0.0
    %1940 = vmatpush.msra.mxu0 0.0
    %1941 = vmatpush.msra.mxu0 0.0
    %1942 = vmatpush.msra.mxu0 0.0
    %1943 = vmatpush.msra.mxu0 0.0
    %1944 = vmatpush.msra.mxu0 0.0
    %1945 = vmatpush.msra.mxu0 0.0
    %1946 = vmatpush.msra.mxu0 0.0
    %1947 = vmatpush.msra.mxu0 0.0
    %1948 = vmatpush.msra.mxu0 0.0
    %1949 = vmatpush.msra.mxu0 0.0
    %1950 = vmatpush.msra.mxu0 0.0
    %1951 = vmatpush.msra.mxu0 %v1764
    %1952 = vmatpush.msra.mxu0 %v1763
    %1953 = vmatpush.msra.mxu0 %v1762
    %1954 = vmatpush.msra.mxu0 %v1761
    %1955 = vmatmul.f32.gmra.mxu0 %v1768
    %v1956 = vpop.f32.mrf.mxu0
    %v1957 = vadd.f32 0.0, %v1956
    %1958 = vmatmul.f32.gmra.mxu0 %v1771
    %v1959 = vpop.f32.mrf.mxu0
    %v1960 = vadd.f32 0.0, %v1959
    %1961 = vmatmul.f32.gmra.mxu0 %v1774
    %v1962 = vpop.f32.mrf.mxu0
    %v1963 = vadd.f32 0.0, %v1962
    %1964 = vmatmul.f32.gmra.mxu0 %v1777
    %v1965 = vpop.f32.mrf.mxu0
    %v1966 = vadd.f32 0.0, %v1965
    %1967 = vmatmul.f32.gmra.mxu0 %v1780
    %v1968 = vpop.f32.mrf.mxu0
    %v1969 = vadd.f32 0.0, %v1968
    %1970 = vmatmul.f32.gmra.mxu0 %v1783
    %v1971 = vpop.f32.mrf.mxu0
    %v1972 = vadd.f32 0.0, %v1971
    %1973 = vdwg.mxu0
    %v1974 = vld [vmem:[%s1 + $0x170] sm:$0xff]
    %v1975 = vld [vmem:[%s1 + $0x178] sm:$0xff]
    %v1976 = vld [vmem:[%s1 + $0x180] sm:$0xff]
    %v1977 = vld [vmem:[%s1 + $0x188] sm:$0xff]
    %v1978 = vld [vmem:[%s1 + $0x1f0] sm:$0xff]
    %v1979 = vld [vmem:[%s1 + $0x1f8] sm:$0xff]
    %v1980 = vld [vmem:[%s1 + $0x200] sm:$0xff]
    %v1981 = vld [vmem:[%s1 + $0x208] sm:$0xff]
    %v1982 = vld [vmem:[%s1 + $0x297] sm:$0x1]
    %v1983 = vperm.slane %v1982, 0
    %1984 = vmatpush.msra.mxu0 0.0
    %1985 = vmatpush.msra.mxu0 0.0
    %1986 = vmatpush.msra.mxu0 0.0
    %1987 = vmatpush.msra.mxu0 0.0
    %1988 = vmatpush.msra.mxu0 0.0
    %1989 = vmatpush.msra.mxu0 0.0
    %1990 = vmatpush.msra.mxu0 0.0
    %1991 = vmatpush.msra.mxu0 0.0
    %1992 = vmatpush.msra.mxu0 0.0
    %1993 = vmatpush.msra.mxu0 0.0
    %1994 = vmatpush.msra.mxu0 0.0
    %1995 = vmatpush.msra.mxu0 0.0
    %1996 = vmatpush.msra.mxu0 %v1977
    %1997 = vmatpush.msra.mxu0 %v1976
    %1998 = vmatpush.msra.mxu0 %v1975
    %1999 = vmatpush.msra.mxu0 %v1974
    %2000 = vmatmul.f32.gmra.mxu0 %v1768
    %v2001 = vpop.f32.mrf.mxu0
    %v2002 = vadd.f32 %v1983, %v2001
    %2003 = vmatmul.f32.gmra.mxu0 %v1771
    %v2004 = vpop.f32.mrf.mxu0
    %v2005 = vadd.f32 %v1983, %v2004
    %2006 = vmatmul.f32.gmra.mxu0 %v1774
    %v2007 = vpop.f32.mrf.mxu0
    %v2008 = vadd.f32 %v1983, %v2007
    %2009 = vmatmul.f32.gmra.mxu0 %v1777
    %v2010 = vpop.f32.mrf.mxu0
    %v2011 = vadd.f32 %v1983, %v2010
    %2012 = vmatmul.f32.gmra.mxu0 %v1780
    %v2013 = vpop.f32.mrf.mxu0
    %v2014 = vadd.f32 %v1983, %v2013
    %2015 = vmatmul.f32.gmra.mxu0 %v1783
    %v2016 = vpop.f32.mrf.mxu0
    %v2017 = vadd.f32 %v1983, %v2016
    %2018 = vdwg.mxu0
    %v2020 = vsel %vm71, %v2002, 0
    %v2023 = vsel %vm71, %v2005, 0
    %v2026 = vsel %vm71, %v2008, 0
    %v2029 = vsel %vm71, %v2011, 0
    %v2032 = vsel %vm71, %v2014, 0
    %v2035 = vsel %vm71, %v2017, 0
    %2037 = vmatpush.xpose.msra.mxu0 0.0
    %2038 = vmatpush.xpose.msra.mxu0 0.0
    %2039 = vmatpush.xpose.msra.mxu0 0.0
    %2040 = vmatpush.xpose.msra.mxu0 0.0
    %2041 = vmatpush.xpose.msra.mxu0 0.0
    %2042 = vmatpush.xpose.msra.mxu0 0.0
    %2043 = vmatpush.xpose.msra.mxu0 0.0
    %2044 = vmatpush.xpose.msra.mxu0 0.0
    %2045 = vmatpush.xpose.msra.mxu0 0.0
    %2046 = vmatpush.xpose.msra.mxu0 0.0
    %2047 = vmatpush.xpose.msra.mxu0 %v1783
    %2048 = vmatpush.xpose.msra.mxu0 %v1780
    %2049 = vmatpush.xpose.msra.mxu0 %v1777
    %2050 = vmatpush.xpose.msra.mxu0 %v1774
    %2051 = vmatpush.xpose.msra.mxu0 %v1771
    %2052 = vmatpush.xpose.msra.mxu0 %v1768
    %2053 = vmatmul.f32.gmra.mxu0 %v2020
    %v2054 = vpop.f32.mrf.mxu0
    %v2055 = vadd.f32 %v63, %v2054
    %2056 = vmatmul.f32.gmra.mxu0 %v2023
    %v2057 = vpop.f32.mrf.mxu0
    %v2058 = vadd.f32 %v64, %v2057
    %2059 = vmatmul.f32.gmra.mxu0 %v2026
    %v2060 = vpop.f32.mrf.mxu0
    %v2061 = vadd.f32 %v65, %v2060
    %2062 = vmatmul.f32.gmra.mxu0 %v2029
    %v2063 = vpop.f32.mrf.mxu0
    %v2064 = vadd.f32 %v66, %v2063
    %2065 = vmatmul.f32.gmra.mxu0 %v2032
    %v2066 = vpop.f32.mrf.mxu0
    %v2067 = vadd.f32 %v67, %v2066
    %2068 = vmatmul.f32.gmra.mxu0 %v2035
    %v2069 = vpop.f32.mrf.mxu0
    %v2070 = vadd.f32 %v68, %v2069
    %2071 = vdwg.mxu0
    %v2072 = vsel %vm341, %v2055, -inf
    %2073 = vmax.xlane.f32.xlu0 %v2072
    %v2074 = vpop.xlane.xlu0 %2073
    %v2075 = vsel %vm341, %v2058, -inf
    %2076 = vmax.xlane.f32.xlu0 %v2075
    %v2077 = vpop.xlane.xlu0 %2076
    %v2078 = vsel %vm341, %v2061, -inf
    %2079 = vmax.xlane.f32.xlu0 %v2078
    %v2080 = vpop.xlane.xlu0 %2079
    %v2081 = vsel %vm341, %v2064, -inf
    %2082 = vmax.xlane.f32.xlu0 %v2081
    %v2083 = vpop.xlane.xlu0 %2082
    %v2084 = vsel %vm341, %v2067, -inf
    %2085 = vmax.xlane.f32.xlu0 %v2084
    %v2086 = vpop.xlane.xlu0 %2085
    %v2087 = vsel %vm341, %v2070, -inf
    %2088 = vmax.xlane.f32.xlu0 %v2087
    %v2089 = vpop.xlane.xlu0 %2088
    %v2090 = vsub.f32 %v2055, %v2074
    %v2091 = vsub.f32 %v2058, %v2077
    %v2092 = vsub.f32 %v2061, %v2080
    %v2093 = vsub.f32 %v2064, %v2083
    %v2094 = vsub.f32 %v2067, %v2086
    %v2095 = vsub.f32 %v2070, %v2089
    %v2096 = vmul.f32 %v2090, 1.442695
    %v2097 = vpow.pop %v2096
    %v2098 = vmul.f32 %v2091, 1.442695
    %v2099 = vpow.pop %v2098
    %v2100 = vmul.f32 %v2092, 1.442695
    %v2101 = vpow.pop %v2100
    %v2102 = vmul.f32 %v2093, 1.442695
    %v2103 = vpow.pop %v2102
    %v2104 = vmul.f32 %v2094, 1.442695
    %v2105 = vpow.pop %v2104
    %v2106 = vmul.f32 %v2095, 1.442695
    %v2107 = vpow.pop %v2106
    %v2108 = vsel %vm341, %v2097, 0.0
    %2109 = vadd.xlane.f32.xlu0 %v2108
    %v2110 = vpop.xlane.xlu0 %2109
    %v2111 = vsel %vm341, %v2099, 0.0
    %2112 = vadd.xlane.f32.xlu0 %v2111
    %v2113 = vpop.xlane.xlu0 %2112
    %v2114 = vsel %vm341, %v2101, 0.0
    %2115 = vadd.xlane.f32.xlu0 %v2114
    %v2116 = vpop.xlane.xlu0 %2115
    %v2117 = vsel %vm341, %v2103, 0.0
    %2118 = vadd.xlane.f32.xlu0 %v2117
    %v2119 = vpop.xlane.xlu0 %2118
    %v2120 = vsel %vm341, %v2105, 0.0
    %2121 = vadd.xlane.f32.xlu0 %v2120
    %v2122 = vpop.xlane.xlu0 %2121
    %v2123 = vsel %vm341, %v2107, 0.0
    %2124 = vadd.xlane.f32.xlu0 %v2123
    %v2125 = vpop.xlane.xlu0 %2124
    %v2126 = vrcp.pop %v2110
    %v2127 = vrcp.pop %v2113
    %v2128 = vrcp.pop %v2116
    %v2129 = vrcp.pop %v2119
    %v2130 = vrcp.pop %v2122
    %v2131 = vrcp.pop %v2125
    %v2132 = vmul.f32 %v2097, %v2126
    %v2133 = vmul.f32 %v2099, %v2127
    %v2134 = vmul.f32 %v2101, %v2128
    %v2135 = vmul.f32 %v2103, %v2129
    %v2136 = vmul.f32 %v2105, %v2130
    %v2137 = vmul.f32 %v2107, %v2131
    %2138 = vmatpush.msra.mxu0 0.0
    %2139 = vmatpush.msra.mxu0 0.0
    %2140 = vmatpush.msra.mxu0 0.0
    %2141 = vmatpush.msra.mxu0 0.0
    %2142 = vmatpush.msra.mxu0 0.0
    %2143 = vmatpush.msra.mxu0 0.0
    %2144 = vmatpush.msra.mxu0 0.0
    %2145 = vmatpush.msra.mxu0 0.0
    %2146 = vmatpush.msra.mxu0 0.0
    %2147 = vmatpush.msra.mxu0 0.0
    %2148 = vmatpush.msra.mxu0 0.0
    %2149 = vmatpush.msra.mxu0 0.0
    %2150 = vmatpush.msra.mxu0 %v1981
    %2151 = vmatpush.msra.mxu0 %v1980
    %2152 = vmatpush.msra.mxu0 %v1979
    %2153 = vmatpush.msra.mxu0 %v1978
    %2154 = vmatmul.f32.gmra.mxu0 %v1768
    %v2155 = vpop.f32.mrf.mxu0
    %v2156 = vadd.f32 0.0, %v2155
    %2157 = vmatmul.f32.gmra.mxu0 %v1771
    %v2158 = vpop.f32.mrf.mxu0
    %v2159 = vadd.f32 0.0, %v2158
    %2160 = vmatmul.f32.gmra.mxu0 %v1774
    %v2161 = vpop.f32.mrf.mxu0
    %v2162 = vadd.f32 0.0, %v2161
    %2163 = vmatmul.f32.gmra.mxu0 %v1777
    %v2164 = vpop.f32.mrf.mxu0
    %v2165 = vadd.f32 0.0, %v2164
    %2166 = vmatmul.f32.gmra.mxu0 %v1780
    %v2167 = vpop.f32.mrf.mxu0
    %v2168 = vadd.f32 0.0, %v2167
    %2169 = vmatmul.f32.gmra.mxu0 %v1783
    %v2170 = vpop.f32.mrf.mxu0
    %v2171 = vadd.f32 0.0, %v2170
    %2172 = vdwg.mxu0
    %v2174 = vsel %vm341, %v2132, 0
    %v2177 = vsel %vm341, %v2133, 0
    %v2180 = vsel %vm341, %v2134, 0
    %v2183 = vsel %vm341, %v2135, 0
    %v2186 = vsel %vm341, %v2136, 0
    %v2189 = vsel %vm341, %v2137, 0
    %2191 = vmatpush.msra.mxu0 0.0
    %2192 = vmatpush.msra.mxu0 0.0
    %2193 = vmatpush.msra.mxu0 0.0
    %2194 = vmatpush.msra.mxu0 0.0
    %2195 = vmatpush.msra.mxu0 0.0
    %2196 = vmatpush.msra.mxu0 0.0
    %2197 = vmatpush.msra.mxu0 0.0
    %2198 = vmatpush.msra.mxu0 0.0
    %2199 = vmatpush.msra.mxu0 0.0
    %2200 = vmatpush.msra.mxu0 0.0
    %2201 = vmatpush.msra.mxu0 %v2171
    %2202 = vmatpush.msra.mxu0 %v2168
    %2203 = vmatpush.msra.mxu0 %v2165
    %2204 = vmatpush.msra.mxu0 %v2162
    %2205 = vmatpush.msra.mxu0 %v2159
    %2206 = vmatpush.msra.mxu0 %v2156
    %2207 = vmatmul.f32.gmra.mxu0 %v2174
    %v2208 = vpop.f32.mrf.mxu0
    %v2209 = vadd.f32 0.0, %v2208
    %2210 = vmatmul.f32.gmra.mxu0 %v2177
    %v2211 = vpop.f32.mrf.mxu0
    %v2212 = vadd.f32 0.0, %v2211
    %2213 = vmatmul.f32.gmra.mxu0 %v2180
    %v2214 = vpop.f32.mrf.mxu0
    %v2215 = vadd.f32 0.0, %v2214
    %2216 = vmatmul.f32.gmra.mxu0 %v2183
    %v2217 = vpop.f32.mrf.mxu0
    %v2218 = vadd.f32 0.0, %v2217
    %2219 = vmatmul.f32.gmra.mxu0 %v2186
    %v2220 = vpop.f32.mrf.mxu0
    %v2221 = vadd.f32 0.0, %v2220
    %2222 = vmatmul.f32.gmra.mxu0 %v2189
    %v2223 = vpop.f32.mrf.mxu0
    %v2224 = vadd.f32 0.0, %v2223
    %2225 = vdwg.mxu0
    %v2227 = vsel %vm341, %v1933, 0
    %v2230 = vsel %vm341, %v1934, 0
    %v2233 = vsel %vm341, %v1935, 0
    %v2236 = vsel %vm341, %v1936, 0
    %v2239 = vsel %vm341, %v1937, 0
    %v2242 = vsel %vm341, %v1938, 0
    %2244 = vmatpush.msra.mxu0 0.0
    %2245 = vmatpush.msra.mxu0 0.0
    %2246 = vmatpush.msra.mxu0 0.0
    %2247 = vmatpush.msra.mxu0 0.0
    %2248 = vmatpush.msra.mxu0 0.0
    %2249 = vmatpush.msra.mxu0 0.0
    %2250 = vmatpush.msra.mxu0 0.0
    %2251 = vmatpush.msra.mxu0 0.0
    %2252 = vmatpush.msra.mxu0 0.0
    %2253 = vmatpush.msra.mxu0 0.0
    %2254 = vmatpush.msra.mxu0 %v1972
    %2255 = vmatpush.msra.mxu0 %v1969
    %2256 = vmatpush.msra.mxu0 %v1966
    %2257 = vmatpush.msra.mxu0 %v1963
    %2258 = vmatpush.msra.mxu0 %v1960
    %2259 = vmatpush.msra.mxu0 %v1957
    %2260 = vmatmul.f32.gmra.mxu0 %v2227
    %v2261 = vpop.f32.mrf.mxu0
    %v2262 = vadd.f32 %v2209, %v2261
    %2263 = vmatmul.f32.gmra.mxu0 %v2230
    %v2264 = vpop.f32.mrf.mxu0
    %v2265 = vadd.f32 %v2212, %v2264
    %2266 = vmatmul.f32.gmra.mxu0 %v2233
    %v2267 = vpop.f32.mrf.mxu0
    %v2268 = vadd.f32 %v2215, %v2267
    %2269 = vmatmul.f32.gmra.mxu0 %v2236
    %v2270 = vpop.f32.mrf.mxu0
    %v2271 = vadd.f32 %v2218, %v2270
    %2272 = vmatmul.f32.gmra.mxu0 %v2239
    %v2273 = vpop.f32.mrf.mxu0
    %v2274 = vadd.f32 %v2221, %v2273
    %2275 = vmatmul.f32.gmra.mxu0 %v2242
    %v2276 = vpop.f32.mrf.mxu0
    %v2277 = vadd.f32 %v2224, %v2276
    %2278 = vdwg.mxu0
    %v2279 = vld [vmem:[%s1 + $0x190] sm:$0xff]
    %v2280 = vld [vmem:[%s1 + $0x198] sm:$0xff]
    %v2281 = vld [vmem:[%s1 + $0x1a0] sm:$0xff]
    %v2282 = vld [vmem:[%s1 + $0x1a8] sm:$0xff]
    %v2283 = vld [vmem:[%s1 + $0x210] sm:$0xff]
    %v2284 = vld [vmem:[%s1 + $0x218] sm:$0xff]
    %v2285 = vld [vmem:[%s1 + $0x220] sm:$0xff]
    %v2286 = vld [vmem:[%s1 + $0x228] sm:$0xff]
    %v2287 = vld [vmem:[%s1 + $0x298] sm:$0x1]
    %v2288 = vperm.slane %v2287, 0
    %2289 = vmatpush.msra.mxu0 0.0
    %2290 = vmatpush.msra.mxu0 0.0
    %2291 = vmatpush.msra.mxu0 0.0
    %2292 = vmatpush.msra.mxu0 0.0
    %2293 = vmatpush.msra.mxu0 0.0
    %2294 = vmatpush.msra.mxu0 0.0
    %2295 = vmatpush.msra.mxu0 0.0
    %2296 = vmatpush.msra.mxu0 0.0
    %2297 = vmatpush.msra.mxu0 0.0
    %2298 = vmatpush.msra.mxu0 0.0
    %2299 = vmatpush.msra.mxu0 0.0
    %2300 = vmatpush.msra.mxu0 0.0
    %2301 = vmatpush.msra.mxu0 %v2282
    %2302 = vmatpush.msra.mxu0 %v2281
    %2303 = vmatpush.msra.mxu0 %v2280
    %2304 = vmatpush.msra.mxu0 %v2279
    %2305 = vmatmul.f32.gmra.mxu0 %v1768
    %v2306 = vpop.f32.mrf.mxu0
    %v2307 = vadd.f32 %v2288, %v2306
    %2308 = vmatmul.f32.gmra.mxu0 %v1771
    %v2309 = vpop.f32.mrf.mxu0
    %v2310 = vadd.f32 %v2288, %v2309
    %2311 = vmatmul.f32.gmra.mxu0 %v1774
    %v2312 = vpop.f32.mrf.mxu0
    %v2313 = vadd.f32 %v2288, %v2312
    %2314 = vmatmul.f32.gmra.mxu0 %v1777
    %v2315 = vpop.f32.mrf.mxu0
    %v2316 = vadd.f32 %v2288, %v2315
    %2317 = vmatmul.f32.gmra.mxu0 %v1780
    %v2318 = vpop.f32.mrf.mxu0
    %v2319 = vadd.f32 %v2288, %v2318
    %2320 = vmatmul.f32.gmra.mxu0 %v1783
    %v2321 = vpop.f32.mrf.mxu0
    %v2322 = vadd.f32 %v2288, %v2321
    %2323 = vdwg.mxu0
    %v2325 = vsel %vm71, %v2307, 0
    %v2328 = vsel %vm71, %v2310, 0
    %v2331 = vsel %vm71, %v2313, 0
    %v2334 = vsel %vm71, %v2316, 0
    %v2337 = vsel %vm71, %v2319, 0
    %v2340 = vsel %vm71, %v2322, 0
    %2342 = vmatpush.xpose.msra.mxu0 0.0
    %2343 = vmatpush.xpose.msra.mxu0 0.0
    %2344 = vmatpush.xpose.msra.mxu0 0.0
    %2345 = vmatpush.xpose.msra.mxu0 0.0
    %2346 = vmatpush.xpose.msra.mxu0 0.0
    %2347 = vmatpush.xpose.msra.mxu0 0.0
    %2348 = vmatpush.xpose.msra.mxu0 0.0
    %2349 = vmatpush.xpose.msra.mxu0 0.0
    %2350 = vmatpush.xpose.msra.mxu0 0.0
    %2351 = vmatpush.xpose.msra.mxu0 0.0
    %2352 = vmatpush.xpose.msra.mxu0 %v1783
    %2353 = vmatpush.xpose.msra.mxu0 %v1780
    %2354 = vmatpush.xpose.msra.mxu0 %v1777
    %2355 = vmatpush.xpose.msra.mxu0 %v1774
    %2356 = vmatpush.xpose.msra.mxu0 %v1771
    %2357 = vmatpush.xpose.msra.mxu0 %v1768
    %2358 = vmatmul.f32.gmra.mxu0 %v2325
    %v2359 = vpop.f32.mrf.mxu0
    %v2360 = vadd.f32 %v63, %v2359
    %2361 = vmatmul.f32.gmra.mxu0 %v2328
    %v2362 = vpop.f32.mrf.mxu0
    %v2363 = vadd.f32 %v64, %v2362
    %2364 = vmatmul.f32.gmra.mxu0 %v2331
    %v2365 = vpop.f32.mrf.mxu0
    %v2366 = vadd.f32 %v65, %v2365
    %2367 = vmatmul.f32.gmra.mxu0 %v2334
    %v2368 = vpop.f32.mrf.mxu0
    %v2369 = vadd.f32 %v66, %v2368
    %2370 = vmatmul.f32.gmra.mxu0 %v2337
    %v2371 = vpop.f32.mrf.mxu0
    %v2372 = vadd.f32 %v67, %v2371
    %2373 = vmatmul.f32.gmra.mxu0 %v2340
    %v2374 = vpop.f32.mrf.mxu0
    %v2375 = vadd.f32 %v68, %v2374
    %2376 = vdwg.mxu0
    %v2377 = vsel %vm341, %v2360, -inf
    %2378 = vmax.xlane.f32.xlu0 %v2377
    %v2379 = vpop.xlane.xlu0 %2378
    %v2380 = vsel %vm341, %v2363, -inf
    %2381 = vmax.xlane.f32.xlu0 %v2380
    %v2382 = vpop.xlane.xlu0 %2381
    %v2383 = vsel %vm341, %v2366, -inf
    %2384 = vmax.xlane.f32.xlu0 %v2383
    %v2385 = vpop.xlane.xlu0 %2384
    %v2386 = vsel %vm341, %v2369, -inf
    %2387 = vmax.xlane.f32.xlu0 %v2386
    %v2388 = vpop.xlane.xlu0 %2387
    %v2389 = vsel %vm341, %v2372, -inf
    %2390 = vmax.xlane.f32.xlu0 %v2389
    %v2391 = vpop.xlane.xlu0 %2390
    %v2392 = vsel %vm341, %v2375, -inf
    %2393 = vmax.xlane.f32.xlu0 %v2392
    %v2394 = vpop.xlane.xlu0 %2393
    %v2395 = vsub.f32 %v2360, %v2379
    %v2396 = vsub.f32 %v2363, %v2382
    %v2397 = vsub.f32 %v2366, %v2385
    %v2398 = vsub.f32 %v2369, %v2388
    %v2399 = vsub.f32 %v2372, %v2391
    %v2400 = vsub.f32 %v2375, %v2394
    %v2401 = vmul.f32 %v2395, 1.442695
    %v2402 = vpow.pop %v2401
    %v2403 = vmul.f32 %v2396, 1.442695
    %v2404 = vpow.pop %v2403
    %v2405 = vmul.f32 %v2397, 1.442695
    %v2406 = vpow.pop %v2405
    %v2407 = vmul.f32 %v2398, 1.442695
    %v2408 = vpow.pop %v2407
    %v2409 = vmul.f32 %v2399, 1.442695
    %v2410 = vpow.pop %v2409
    %v2411 = vmul.f32 %v2400, 1.442695
    %v2412 = vpow.pop %v2411
    %v2413 = vsel %vm341, %v2402, 0.0
    %2414 = vadd.xlane.f32.xlu0 %v2413
    %v2415 = vpop.xlane.xlu0 %2414
    %v2416 = vsel %vm341, %v2404, 0.0
    %2417 = vadd.xlane.f32.xlu0 %v2416
    %v2418 = vpop.xlane.xlu0 %2417
    %v2419 = vsel %vm341, %v2406, 0.0
    %2420 = vadd.xlane.f32.xlu0 %v2419
    %v2421 = vpop.xlane.xlu0 %2420
    %v2422 = vsel %vm341, %v2408, 0.0
    %2423 = vadd.xlane.f32.xlu0 %v2422
    %v2424 = vpop.xlane.xlu0 %2423
    %v2425 = vsel %vm341, %v2410, 0.0
    %2426 = vadd.xlane.f32.xlu0 %v2425
    %v2427 = vpop.xlane.xlu0 %2426
    %v2428 = vsel %vm341, %v2412, 0.0
    %2429 = vadd.xlane.f32.xlu0 %v2428
    %v2430 = vpop.xlane.xlu0 %2429
    %v2431 = vrcp.pop %v2415
    %v2432 = vrcp.pop %v2418
    %v2433 = vrcp.pop %v2421
    %v2434 = vrcp.pop %v2424
    %v2435 = vrcp.pop %v2427
    %v2436 = vrcp.pop %v2430
    %v2437 = vmul.f32 %v2402, %v2431
    %v2438 = vmul.f32 %v2404, %v2432
    %v2439 = vmul.f32 %v2406, %v2433
    %v2440 = vmul.f32 %v2408, %v2434
    %v2441 = vmul.f32 %v2410, %v2435
    %v2442 = vmul.f32 %v2412, %v2436
    %2443 = vmatpush.msra.mxu0 0.0
    %2444 = vmatpush.msra.mxu0 0.0
    %2445 = vmatpush.msra.mxu0 0.0
    %2446 = vmatpush.msra.mxu0 0.0
    %2447 = vmatpush.msra.mxu0 0.0
    %2448 = vmatpush.msra.mxu0 0.0
    %2449 = vmatpush.msra.mxu0 0.0
    %2450 = vmatpush.msra.mxu0 0.0
    %2451 = vmatpush.msra.mxu0 0.0
    %2452 = vmatpush.msra.mxu0 0.0
    %2453 = vmatpush.msra.mxu0 0.0
    %2454 = vmatpush.msra.mxu0 0.0
    %2455 = vmatpush.msra.mxu0 %v2286
    %2456 = vmatpush.msra.mxu0 %v2285
    %2457 = vmatpush.msra.mxu0 %v2284
    %2458 = vmatpush.msra.mxu0 %v2283
    %2459 = vmatmul.f32.gmra.mxu0 %v1768
    %v2460 = vpop.f32.mrf.mxu0
    %v2461 = vadd.f32 0.0, %v2460
    %2462 = vmatmul.f32.gmra.mxu0 %v1771
    %v2463 = vpop.f32.mrf.mxu0
    %v2464 = vadd.f32 0.0, %v2463
    %2465 = vmatmul.f32.gmra.mxu0 %v1774
    %v2466 = vpop.f32.mrf.mxu0
    %v2467 = vadd.f32 0.0, %v2466
    %2468 = vmatmul.f32.gmra.mxu0 %v1777
    %v2469 = vpop.f32.mrf.mxu0
    %v2470 = vadd.f32 0.0, %v2469
    %2471 = vmatmul.f32.gmra.mxu0 %v1780
    %v2472 = vpop.f32.mrf.mxu0
    %v2473 = vadd.f32 0.0, %v2472
    %2474 = vmatmul.f32.gmra.mxu0 %v1783
    %v2475 = vpop.f32.mrf.mxu0
    %v2476 = vadd.f32 0.0, %v2475
    %2477 = vdwg.mxu0
    %v2479 = vsel %vm341, %v2437, 0
    %v2482 = vsel %vm341, %v2438, 0
    %v2485 = vsel %vm341, %v2439, 0
    %v2488 = vsel %vm341, %v2440, 0
    %v2491 = vsel %vm341, %v2441, 0
    %v2494 = vsel %vm341, %v2442, 0
    %2496 = vmatpush.msra.mxu0 0.0
    %2497 = vmatpush.msra.mxu0 0.0
    %2498 = vmatpush.msra.mxu0 0.0
    %2499 = vmatpush.msra.mxu0 0.0
    %2500 = vmatpush.msra.mxu0 0.0
    %2501 = vmatpush.msra.mxu0 0.0
    %2502 = vmatpush.msra.mxu0 0.0
    %2503 = vmatpush.msra.mxu0 0.0
    %2504 = vmatpush.msra.mxu0 0.0
    %2505 = vmatpush.msra.mxu0 0.0
    %2506 = vmatpush.msra.mxu0 %v2476
    %2507 = vmatpush.msra.mxu0 %v2473
    %2508 = vmatpush.msra.mxu0 %v2470
    %2509 = vmatpush.msra.mxu0 %v2467
    %2510 = vmatpush.msra.mxu0 %v2464
    %2511 = vmatpush.msra.mxu0 %v2461
    %2512 = vmatmul.f32.gmra.mxu0 %v2479
    %v2513 = vpop.f32.mrf.mxu0
    %v2514 = vadd.f32 0.0, %v2513
    %2515 = vmatmul.f32.gmra.mxu0 %v2482
    %v2516 = vpop.f32.mrf.mxu0
    %v2517 = vadd.f32 0.0, %v2516
    %2518 = vmatmul.f32.gmra.mxu0 %v2485
    %v2519 = vpop.f32.mrf.mxu0
    %v2520 = vadd.f32 0.0, %v2519
    %2521 = vmatmul.f32.gmra.mxu0 %v2488
    %v2522 = vpop.f32.mrf.mxu0
    %v2523 = vadd.f32 0.0, %v2522
    %2524 = vmatmul.f32.gmra.mxu0 %v2491
    %v2525 = vpop.f32.mrf.mxu0
    %v2526 = vadd.f32 0.0, %v2525
    %2527 = vmatmul.f32.gmra.mxu0 %v2494
    %v2528 = vpop.f32.mrf.mxu0
    %v2529 = vadd.f32 0.0, %v2528
    %2530 = vdwg.mxu0
    %v2531 = vadd.f32 %v2262, %v2514
    %v2532 = vadd.f32 %v2265, %v2517
    %v2533 = vadd.f32 %v2268, %v2520
    %v2534 = vadd.f32 %v2271, %v2523
    %v2535 = vadd.f32 %v2274, %v2526
    %v2536 = vadd.f32 %v2277, %v2529
    %v2537 = vld [vmem:[%s1 + $0x1b0] sm:$0xff]
    %v2538 = vld [vmem:[%s1 + $0x1b8] sm:$0xff]
    %v2539 = vld [vmem:[%s1 + $0x1c0] sm:$0xff]
    %v2540 = vld [vmem:[%s1 + $0x1c8] sm:$0xff]
    %v2541 = vld [vmem:[%s1 + $0x230] sm:$0xff]
    %v2542 = vld [vmem:[%s1 + $0x238] sm:$0xff]
    %v2543 = vld [vmem:[%s1 + $0x240] sm:$0xff]
    %v2544 = vld [vmem:[%s1 + $0x248] sm:$0xff]
    %v2545 = vld [vmem:[%s1 + $0x299] sm:$0x1]
    %v2546 = vperm.slane %v2545, 0
    %2547 = vmatpush.msra.mxu0 0.0
    %2548 = vmatpush.msra.mxu0 0.0
    %2549 = vmatpush.msra.mxu0 0.0
    %2550 = vmatpush.msra.mxu0 0.0
    %2551 = vmatpush.msra.mxu0 0.0
    %2552 = vmatpush.msra.mxu0 0.0
    %2553 = vmatpush.msra.mxu0 0.0
    %2554 = vmatpush.msra.mxu0 0.0
    %2555 = vmatpush.msra.mxu0 0.0
    %2556 = vmatpush.msra.mxu0 0.0
    %2557 = vmatpush.msra.mxu0 0.0
    %2558 = vmatpush.msra.mxu0 0.0
    %2559 = vmatpush.msra.mxu0 %v2540
    %2560 = vmatpush.msra.mxu0 %v2539
    %2561 = vmatpush.msra.mxu0 %v2538
    %2562 = vmatpush.msra.mxu0 %v2537
    %2563 = vmatmul.f32.gmra.mxu0 %v1768
    %v2564 = vpop.f32.mrf.mxu0
    %v2565 = vadd.f32 %v2546, %v2564
    %2566 = vmatmul.f32.gmra.mxu0 %v1771
    %v2567 = vpop.f32.mrf.mxu0
    %v2568 = vadd.f32 %v2546, %v2567
    %2569 = vmatmul.f32.gmra.mxu0 %v1774
    %v2570 = vpop.f32.mrf.mxu0
    %v2571 = vadd.f32 %v2546, %v2570
    %2572 = vmatmul.f32.gmra.mxu0 %v1777
    %v2573 = vpop.f32.mrf.mxu0
    %v2574 = vadd.f32 %v2546, %v2573
    %2575 = vmatmul.f32.gmra.mxu0 %v1780
    %v2576 = vpop.f32.mrf.mxu0
    %v2577 = vadd.f32 %v2546, %v2576
    %2578 = vmatmul.f32.gmra.mxu0 %v1783
    %v2579 = vpop.f32.mrf.mxu0
    %v2580 = vadd.f32 %v2546, %v2579
    %2581 = vdwg.mxu0
    %v2583 = vsel %vm71, %v2565, 0
    %v2586 = vsel %vm71, %v2568, 0
    %v2589 = vsel %vm71, %v2571, 0
    %v2592 = vsel %vm71, %v2574, 0
    %v2595 = vsel %vm71, %v2577, 0
    %v2598 = vsel %vm71, %v2580, 0
    %2600 = vmatpush.xpose.msra.mxu0 0.0
    %2601 = vmatpush.xpose.msra.mxu0 0.0
    %2602 = vmatpush.xpose.msra.mxu0 0.0
    %2603 = vmatpush.xpose.msra.mxu0 0.0
    %2604 = vmatpush.xpose.msra.mxu0 0.0
    %2605 = vmatpush.xpose.msra.mxu0 0.0
    %2606 = vmatpush.xpose.msra.mxu0 0.0
    %2607 = vmatpush.xpose.msra.mxu0 0.0
    %2608 = vmatpush.xpose.msra.mxu0 0.0
    %2609 = vmatpush.xpose.msra.mxu0 0.0
    %2610 = vmatpush.xpose.msra.mxu0 %v1783
    %2611 = vmatpush.xpose.msra.mxu0 %v1780
    %2612 = vmatpush.xpose.msra.mxu0 %v1777
    %2613 = vmatpush.xpose.msra.mxu0 %v1774
    %2614 = vmatpush.xpose.msra.mxu0 %v1771
    %2615 = vmatpush.xpose.msra.mxu0 %v1768
    %2616 = vmatmul.f32.gmra.mxu0 %v2583
    %v2617 = vpop.f32.mrf.mxu0
    %v2618 = vadd.f32 %v63, %v2617
    %2619 = vmatmul.f32.gmra.mxu0 %v2586
    %v2620 = vpop.f32.mrf.mxu0
    %v2621 = vadd.f32 %v64, %v2620
    %2622 = vmatmul.f32.gmra.mxu0 %v2589
    %v2623 = vpop.f32.mrf.mxu0
    %v2624 = vadd.f32 %v65, %v2623
    %2625 = vmatmul.f32.gmra.mxu0 %v2592
    %v2626 = vpop.f32.mrf.mxu0
    %v2627 = vadd.f32 %v66, %v2626
    %2628 = vmatmul.f32.gmra.mxu0 %v2595
    %v2629 = vpop.f32.mrf.mxu0
    %v2630 = vadd.f32 %v67, %v2629
    %2631 = vmatmul.f32.gmra.mxu0 %v2598
    %v2632 = vpop.f32.mrf.mxu0
    %v2633 = vadd.f32 %v68, %v2632
    %2634 = vdwg.mxu0
    %v2635 = vsel %vm341, %v2618, -inf
    %2636 = vmax.xlane.f32.xlu0 %v2635
    %v2637 = vpop.xlane.xlu0 %2636
    %v2638 = vsel %vm341, %v2621, -inf
    %2639 = vmax.xlane.f32.xlu0 %v2638
    %v2640 = vpop.xlane.xlu0 %2639
    %v2641 = vsel %vm341, %v2624, -inf
    %2642 = vmax.xlane.f32.xlu0 %v2641
    %v2643 = vpop.xlane.xlu0 %2642
    %v2644 = vsel %vm341, %v2627, -inf
    %2645 = vmax.xlane.f32.xlu0 %v2644
    %v2646 = vpop.xlane.xlu0 %2645
    %v2647 = vsel %vm341, %v2630, -inf
    %2648 = vmax.xlane.f32.xlu0 %v2647
    %v2649 = vpop.xlane.xlu0 %2648
    %v2650 = vsel %vm341, %v2633, -inf
    %2651 = vmax.xlane.f32.xlu0 %v2650
    %v2652 = vpop.xlane.xlu0 %2651
    %v2653 = vsub.f32 %v2618, %v2637
    %v2654 = vsub.f32 %v2621, %v2640
    %v2655 = vsub.f32 %v2624, %v2643
    %v2656 = vsub.f32 %v2627, %v2646
    %v2657 = vsub.f32 %v2630, %v2649
    %v2658 = vsub.f32 %v2633, %v2652
    %v2659 = vmul.f32 %v2653, 1.442695
    %v2660 = vpow.pop %v2659
    %v2661 = vmul.f32 %v2654, 1.442695
    %v2662 = vpow.pop %v2661
    %v2663 = vmul.f32 %v2655, 1.442695
    %v2664 = vpow.pop %v2663
    %v2665 = vmul.f32 %v2656, 1.442695
    %v2666 = vpow.pop %v2665
    %v2667 = vmul.f32 %v2657, 1.442695
    %v2668 = vpow.pop %v2667
    %v2669 = vmul.f32 %v2658, 1.442695
    %v2670 = vpow.pop %v2669
    %v2671 = vsel %vm341, %v2660, 0.0
    %2672 = vadd.xlane.f32.xlu0 %v2671
    %v2673 = vpop.xlane.xlu0 %2672
    %v2674 = vsel %vm341, %v2662, 0.0
    %2675 = vadd.xlane.f32.xlu0 %v2674
    %v2676 = vpop.xlane.xlu0 %2675
    %v2677 = vsel %vm341, %v2664, 0.0
    %2678 = vadd.xlane.f32.xlu0 %v2677
    %v2679 = vpop.xlane.xlu0 %2678
    %v2680 = vsel %vm341, %v2666, 0.0
    %2681 = vadd.xlane.f32.xlu0 %v2680
    %v2682 = vpop.xlane.xlu0 %2681
    %v2683 = vsel %vm341, %v2668, 0.0
    %2684 = vadd.xlane.f32.xlu0 %v2683
    %v2685 = vpop.xlane.xlu0 %2684
    %v2686 = vsel %vm341, %v2670, 0.0
    %2687 = vadd.xlane.f32.xlu0 %v2686
    %v2688 = vpop.xlane.xlu0 %2687
    %v2689 = vrcp.pop %v2673
    %v2690 = vrcp.pop %v2676
    %v2691 = vrcp.pop %v2679
    %v2692 = vrcp.pop %v2682
    %v2693 = vrcp.pop %v2685
    %v2694 = vrcp.pop %v2688
    %v2695 = vmul.f32 %v2660, %v2689
    %v2696 = vmul.f32 %v2662, %v2690
    %v2697 = vmul.f32 %v2664, %v2691
    %v2698 = vmul.f32 %v2666, %v2692
    %v2699 = vmul.f32 %v2668, %v2693
    %v2700 = vmul.f32 %v2670, %v2694
    %2701 = vmatpush.msra.mxu0 0.0
    %2702 = vmatpush.msra.mxu0 0.0
    %2703 = vmatpush.msra.mxu0 0.0
    %2704 = vmatpush.msra.mxu0 0.0
    %2705 = vmatpush.msra.mxu0 0.0
    %2706 = vmatpush.msra.mxu0 0.0
    %2707 = vmatpush.msra.mxu0 0.0
    %2708 = vmatpush.msra.mxu0 0.0
    %2709 = vmatpush.msra.mxu0 0.0
    %2710 = vmatpush.msra.mxu0 0.0
    %2711 = vmatpush.msra.mxu0 0.0
    %2712 = vmatpush.msra.mxu0 0.0
    %2713 = vmatpush.msra.mxu0 %v2544
    %2714 = vmatpush.msra.mxu0 %v2543
    %2715 = vmatpush.msra.mxu0 %v2542
    %2716 = vmatpush.msra.mxu0 %v2541
    %2717 = vmatmul.f32.gmra.mxu0 %v1768
    %v2718 = vpop.f32.mrf.mxu0
    %v2719 = vadd.f32 0.0, %v2718
    %2720 = vmatmul.f32.gmra.mxu0 %v1771
    %v2721 = vpop.f32.mrf.mxu0
    %v2722 = vadd.f32 0.0, %v2721
    %2723 = vmatmul.f32.gmra.mxu0 %v1774
    %v2724 = vpop.f32.mrf.mxu0
    %v2725 = vadd.f32 0.0, %v2724
    %2726 = vmatmul.f32.gmra.mxu0 %v1777
    %v2727 = vpop.f32.mrf.mxu0
    %v2728 = vadd.f32 0.0, %v2727
    %2729 = vmatmul.f32.gmra.mxu0 %v1780
    %v2730 = vpop.f32.mrf.mxu0
    %v2731 = vadd.f32 0.0, %v2730
    %2732 = vmatmul.f32.gmra.mxu0 %v1783
    %v2733 = vpop.f32.mrf.mxu0
    %v2734 = vadd.f32 0.0, %v2733
    %2735 = vdwg.mxu0
    %v2737 = vsel %vm341, %v2695, 0
    %v2740 = vsel %vm341, %v2696, 0
    %v2743 = vsel %vm341, %v2697, 0
    %v2746 = vsel %vm341, %v2698, 0
    %v2749 = vsel %vm341, %v2699, 0
    %v2752 = vsel %vm341, %v2700, 0
    %2754 = vmatpush.msra.mxu0 0.0
    %2755 = vmatpush.msra.mxu0 0.0
    %2756 = vmatpush.msra.mxu0 0.0
    %2757 = vmatpush.msra.mxu0 0.0
    %2758 = vmatpush.msra.mxu0 0.0
    %2759 = vmatpush.msra.mxu0 0.0
    %2760 = vmatpush.msra.mxu0 0.0
    %2761 = vmatpush.msra.mxu0 0.0
    %2762 = vmatpush.msra.mxu0 0.0
    %2763 = vmatpush.msra.mxu0 0.0
    %2764 = vmatpush.msra.mxu0 %v2734
    %2765 = vmatpush.msra.mxu0 %v2731
    %2766 = vmatpush.msra.mxu0 %v2728
    %2767 = vmatpush.msra.mxu0 %v2725
    %2768 = vmatpush.msra.mxu0 %v2722
    %2769 = vmatpush.msra.mxu0 %v2719
    %2770 = vmatmul.f32.gmra.mxu0 %v2737
    %v2771 = vpop.f32.mrf.mxu0
    %v2772 = vadd.f32 0.0, %v2771
    %2773 = vmatmul.f32.gmra.mxu0 %v2740
    %v2774 = vpop.f32.mrf.mxu0
    %v2775 = vadd.f32 0.0, %v2774
    %2776 = vmatmul.f32.gmra.mxu0 %v2743
    %v2777 = vpop.f32.mrf.mxu0
    %v2778 = vadd.f32 0.0, %v2777
    %2779 = vmatmul.f32.gmra.mxu0 %v2746
    %v2780 = vpop.f32.mrf.mxu0
    %v2781 = vadd.f32 0.0, %v2780
    %2782 = vmatmul.f32.gmra.mxu0 %v2749
    %v2783 = vpop.f32.mrf.mxu0
    %v2784 = vadd.f32 0.0, %v2783
    %2785 = vmatmul.f32.gmra.mxu0 %v2752
    %v2786 = vpop.f32.mrf.mxu0
    %v2787 = vadd.f32 0.0, %v2786
    %2788 = vdwg.mxu0
    %v2789 = vadd.f32 %v2531, %v2772
    %v2790 = vadd.f32 %v2532, %v2775
    %v2791 = vadd.f32 %v2533, %v2778
    %v2792 = vadd.f32 %v2534, %v2781
    %v2793 = vadd.f32 %v2535, %v2784
    %v2794 = vadd.f32 %v2536, %v2787
    %v2795 = vld [vmem:[%s1 + $0x294] sm:$0x1]
    %v2796 = vadd.f32 %v1751, %v2789
    %v2797 = vadd.f32 %v1752, %v2790
    %v2798 = vadd.f32 %v1753, %v2791
    %v2799 = vadd.f32 %v1754, %v2792
    %v2800 = vadd.f32 %v1755, %v2793
    %v2801 = vadd.f32 %v1756, %v2794
    %v2802 = vperm.slane %v2795, 0
    %v2803 = vadd.f32 %v2796, %v2802
    %v2804 = vadd.f32 %v2797, %v2802
    %v2805 = vadd.f32 %v2798, %v2802
    %v2806 = vadd.f32 %v2799, %v2802
    %v2807 = vadd.f32 %v2800, %v2802
    %v2808 = vadd.f32 %v2801, %v2802
    %v2809 = vld [vmem:[%s1 + $0x292] sm:$0x1]
    %v2810 = vld [vmem:[%s1 + $0x293] sm:$0x1]
    %v2811 = vsel %vm71, %v2803, 0.0
    %2812 = vadd.xlane.f32.xlu0 %v2811
    %v2813 = vpop.xlane.xlu0 %2812
    %v2814 = vsel %vm71, %v2804, 0.0
    %2815 = vadd.xlane.f32.xlu0 %v2814
    %v2816 = vpop.xlane.xlu0 %2815
    %v2817 = vsel %vm71, %v2805, 0.0
    %2818 = vadd.xlane.f32.xlu0 %v2817
    %v2819 = vpop.xlane.xlu0 %2818
    %v2820 = vsel %vm71, %v2806, 0.0
    %2821 = vadd.xlane.f32.xlu0 %v2820
    %v2822 = vpop.xlane.xlu0 %2821
    %v2823 = vsel %vm71, %v2807, 0.0
    %2824 = vadd.xlane.f32.xlu0 %v2823
    %v2825 = vpop.xlane.xlu0 %2824
    %v2826 = vsel %vm71, %v2808, 0.0
    %2827 = vadd.xlane.f32.xlu0 %v2826
    %v2828 = vpop.xlane.xlu0 %2827
    %v2829 = vmul.f32 %v2813, %v96
    %v2830 = vmul.f32 %v2816, %v96
    %v2831 = vmul.f32 %v2819, %v96
    %v2832 = vmul.f32 %v2822, %v96
    %v2833 = vmul.f32 %v2825, %v96
    %v2834 = vmul.f32 %v2828, %v96
    %v2835 = vsub.f32 %v2803, %v2829
    %v2836 = vsub.f32 %v2804, %v2830
    %v2837 = vsub.f32 %v2805, %v2831
    %v2838 = vsub.f32 %v2806, %v2832
    %v2839 = vsub.f32 %v2807, %v2833
    %v2840 = vsub.f32 %v2808, %v2834
    %v2841 = vmul.f32 %v2835, %v2835
    %v2842 = vmul.f32 %v2836, %v2836
    %v2843 = vmul.f32 %v2837, %v2837
    %v2844 = vmul.f32 %v2838, %v2838
    %v2845 = vmul.f32 %v2839, %v2839
    %v2846 = vmul.f32 %v2840, %v2840
    %v2847 = vsel %vm71, %v2841, 0.0
    %2848 = vadd.xlane.f32.xlu0 %v2847
    %v2849 = vpop.xlane.xlu0 %2848
    %v2850 = vsel %vm71, %v2842, 0.0
    %2851 = vadd.xlane.f32.xlu0 %v2850
    %v2852 = vpop.xlane.xlu0 %2851
    %v2853 = vsel %vm71, %v2843, 0.0
    %2854 = vadd.xlane.f32.xlu0 %v2853
    %v2855 = vpop.xlane.xlu0 %2854
    %v2856 = vsel %vm71, %v2844, 0.0
    %2857 = vadd.xlane.f32.xlu0 %v2856
    %v2858 = vpop.xlane.xlu0 %2857
    %v2859 = vsel %vm71, %v2845, 0.0
    %2860 = vadd.xlane.f32.xlu0 %v2859
    %v2861 = vpop.xlane.xlu0 %2860
    %v2862 = vsel %vm71, %v2846, 0.0
    %2863 = vadd.xlane.f32.xlu0 %v2862
    %v2864 = vpop.xlane.xlu0 %2863
    %v2865 = vmul.f32 %v2849, %v96
    %v2866 = vmul.f32 %v2852, %v96
    %v2867 = vmul.f32 %v2855, %v96
    %v2868 = vmul.f32 %v2858, %v96
    %v2869 = vmul.f32 %v2861, %v96
    %v2870 = vmul.f32 %v2864, %v96
    %v2871 = vadd.f32 %v2865, 1e-05
    %v2872 = vadd.f32 %v2866, 1e-05
    %v2873 = vadd.f32 %v2867, 1e-05
    %v2874 = vadd.f32 %v2868, 1e-05
    %v2875 = vadd.f32 %v2869, 1e-05
    %v2876 = vadd.f32 %v2870, 1e-05
    %v2877 = vrsqrt.pop %v2871
    %v2878 = vmul.f32 %v2877, %v2871
    %v2879 = vmul.f32 %v2878, %v2877
    %v2880 = vmul.f32 0.5, %v2879
    %v2881 = vsub.f32 1.5, %v2880
    %v2882 = vmul.f32 %v2877, %v2881
    %vm2883 = vweird.f32 %v2871
    %vm2884 = vweird.f32 %v2877
    %vm2885 = vmor %vm2883, %vm2884
    %v2886 = vsel %vm2885, %v2877, %v2882
    %v2887 = vrsqrt.pop %v2872
    %v2888 = vmul.f32 %v2887, %v2872
    %v2889 = vmul.f32 %v2888, %v2887
    %v2890 = vmul.f32 0.5, %v2889
    %v2891 = vsub.f32 1.5, %v2890
    %v2892 = vmul.f32 %v2887, %v2891
    %vm2893 = vweird.f32 %v2872
    %vm2894 = vweird.f32 %v2887
    %vm2895 = vmor %vm2893, %vm2894
    %v2896 = vsel %vm2895, %v2887, %v2892
    %v2897 = vrsqrt.pop %v2873
    %v2898 = vmul.f32 %v2897, %v2873
    %v2899 = vmul.f32 %v2898, %v2897
    %v2900 = vmul.f32 0.5, %v2899
    %v2901 = vsub.f32 1.5, %v2900
    %v2902 = vmul.f32 %v2897, %v2901
    %vm2903 = vweird.f32 %v2873
    %vm2904 = vweird.f32 %v2897
    %vm2905 = vmor %vm2903, %vm2904
    %v2906 = vsel %vm2905, %v2897, %v2902
    %v2907 = vrsqrt.pop %v2874
    %v2908 = vmul.f32 %v2907, %v2874
    %v2909 = vmul.f32 %v2908, %v2907
    %v2910 = vmul.f32 0.5, %v2909
    %v2911 = vsub.f32 1.5, %v2910
    %v2912 = vmul.f32 %v2907, %v2911
    %vm2913 = vweird.f32 %v2874
    %vm2914 = vweird.f32 %v2907
    %vm2915 = vmor %vm2913, %vm2914
    %v2916 = vsel %vm2915, %v2907, %v2912
    %v2917 = vrsqrt.pop %v2875
    %v2918 = vmul.f32 %v2917, %v2875
    %v2919 = vmul.f32 %v2918, %v2917
    %v2920 = vmul.f32 0.5, %v2919
    %v2921 = vsub.f32 1.5, %v2920
    %v2922 = vmul.f32 %v2917, %v2921
    %vm2923 = vweird.f32 %v2875
    %vm2924 = vweird.f32 %v2917
    %vm2925 = vmor %vm2923, %vm2924
    %v2926 = vsel %vm2925, %v2917, %v2922
    %v2927 = vrsqrt.pop %v2876
    %v2928 = vmul.f32 %v2927, %v2876
    %v2929 = vmul.f32 %v2928, %v2927
    %v2930 = vmul.f32 0.5, %v2929
    %v2931 = vsub.f32 1.5, %v2930
    %v2932 = vmul.f32 %v2927, %v2931
    %vm2933 = vweird.f32 %v2876
    %vm2934 = vweird.f32 %v2927
    %vm2935 = vmor %vm2933, %vm2934
    %v2936 = vsel %vm2935, %v2927, %v2932
    %v2937 = vmul.f32 %v2835, %v2886
    %v2938 = vmul.f32 %v2836, %v2896
    %v2939 = vmul.f32 %v2837, %v2906
    %v2940 = vmul.f32 %v2838, %v2916
    %v2941 = vmul.f32 %v2839, %v2926
    %v2942 = vmul.f32 %v2840, %v2936
    %v2943 = vperm.slane %v2809, 0
    %v2944 = vmul.f32 %v2937, %v2943
    %v2945 = vmul.f32 %v2938, %v2943
    %v2946 = vmul.f32 %v2939, %v2943
    %v2947 = vmul.f32 %v2940, %v2943
    %v2948 = vmul.f32 %v2941, %v2943
    %v2949 = vmul.f32 %v2942, %v2943
    %v2950 = vperm.slane %v2810, 0
    %v2951 = vadd.f32 %v2944, %v2950
    %v2952 = vadd.f32 %v2945, %v2950
    %v2953 = vadd.f32 %v2946, %v2950
    %v2954 = vadd.f32 %v2947, %v2950
    %v2955 = vadd.f32 %v2948, %v2950
    %v2956 = vadd.f32 %v2949, %v2950
    %v2957 = vld [vmem:[%s2 + $0x28] sm:$0xff]
    %v2958 = vld [vmem:[%s2 + $0x30] sm:$0xff]
    %v2959 = vld [vmem:[%s2 + $0x38] sm:$0xff]
    %v2960 = vld [vmem:[%s2 + $0x40] sm:$0xff]
    %v2961 = vld [vmem:[%s2 + $0x48] sm:$0x1]
    %v2962 = vperm.slane %v2961, 0
    %v2964 = vsel %vm71, %v2951, 0
    %v2967 = vsel %vm71, %v2952, 0
    %v2970 = vsel %vm71, %v2953, 0
    %v2973 = vsel %vm71, %v2954, 0
    %v2976 = vsel %vm71, %v2955, 0
    %v2979 = vsel %vm71, %v2956, 0
    %2981 = vmatpush.msra.mxu0 0.0
    %2982 = vmatpush.msra.mxu0 0.0
    %2983 = vmatpush.msra.mxu0 0.0
    %2984 = vmatpush.msra.mxu0 0.0
    %2985 = vmatpush.msra.mxu0 0.0
    %2986 = vmatpush.msra.mxu0 0.0
    %2987 = vmatpush.msra.mxu0 0.0
    %2988 = vmatpush.msra.mxu0 0.0
    %2989 = vmatpush.msra.mxu0 0.0
    %2990 = vmatpush.msra.mxu0 0.0
    %2991 = vmatpush.msra.mxu0 0.0
    %2992 = vmatpush.msra.mxu0 0.0
    %2993 = vmatpush.msra.mxu0 %v2960
    %2994 = vmatpush.msra.mxu0 %v2959
    %2995 = vmatpush.msra.mxu0 %v2958
    %2996 = vmatpush.msra.mxu0 %v2957
    %2997 = vmatmul.f32.gmra.mxu0 %v2964
    %v2998 = vpop.f32.mrf.mxu0
    %v2999 = vadd.f32 %v2962, %v2998
    %3000 = vmatmul.f32.gmra.mxu0 %v2967
    %v3001 = vpop.f32.mrf.mxu0
    %v3002 = vadd.f32 %v2962, %v3001
    %3003 = vmatmul.f32.gmra.mxu0 %v2970
    %v3004 = vpop.f32.mrf.mxu0
    %v3005 = vadd.f32 %v2962, %v3004
    %3006 = vmatmul.f32.gmra.mxu0 %v2973
    %v3007 = vpop.f32.mrf.mxu0
    %v3008 = vadd.f32 %v2962, %v3007
    %3009 = vmatmul.f32.gmra.mxu0 %v2976
    %v3010 = vpop.f32.mrf.mxu0
    %v3011 = vadd.f32 %v2962, %v3010
    %3012 = vmatmul.f32.gmra.mxu0 %v2979
    %v3013 = vpop.f32.mrf.mxu0
    %v3014 = vadd.f32 %v2962, %v3013
    %3015 = vdwg.mxu0
    %v3016 = vmul.f32 %v2999, 0.5
    %v3017 = vmul.f32 %v3002, 0.5
    %v3018 = vmul.f32 %v3005, 0.5
    %v3019 = vmul.f32 %v3008, 0.5
    %v3020 = vmul.f32 %v3011, 0.5
    %v3021 = vmul.f32 %v3014, 0.5
    %v3022 = vmul.f32 %v2999, 0.044715
    %v3023 = vmul.f32 %v3002, 0.044715
    %v3024 = vmul.f32 %v3005, 0.044715
    %v3025 = vmul.f32 %v3008, 0.044715
    %v3026 = vmul.f32 %v3011, 0.044715
    %v3027 = vmul.f32 %v3014, 0.044715
    %v3028 = vmul.f32 %v3022, %v2999
    %v3029 = vmul.f32 %v3023, %v3002
    %v3030 = vmul.f32 %v3024, %v3005
    %v3031 = vmul.f32 %v3025, %v3008
    %v3032 = vmul.f32 %v3026, %v3011
    %v3033 = vmul.f32 %v3027, %v3014
    %v3034 = vmul.f32 %v3028, %v2999
    %v3035 = vmul.f32 %v3029, %v3002
    %v3036 = vmul.f32 %v3030, %v3005
    %v3037 = vmul.f32 %v3031, %v3008
    %v3038 = vmul.f32 %v3032, %v3011
    %v3039 = vmul.f32 %v3033, %v3014
    %v3040 = vadd.f32 %v2999, %v3034
    %v3041 = vadd.f32 %v3002, %v3035
    %v3042 = vadd.f32 %v3005, %v3036
    %v3043 = vadd.f32 %v3008, %v3037
    %v3044 = vadd.f32 %v3011, %v3038
    %v3045 = vadd.f32 %v3014, %v3039
    %v3046 = vmul.f32 %v3040, 0.7978846
    %v3047 = vmul.f32 %v3041, 0.7978846
    %v3048 = vmul.f32 %v3042, 0.7978846
    %v3049 = vmul.f32 %v3043, 0.7978846
    %v3050 = vmul.f32 %v3044, 0.7978846
    %v3051 = vmul.f32 %v3045, 0.7978846
    %v3052 = vtanh.pop %v3046
    %v3053 = vtanh.pop %v3047
    %v3054 = vtanh.pop %v3048
    %v3055 = vtanh.pop %v3049
    %v3056 = vtanh.pop %v3050
    %v3057 = vtanh.pop %v3051
    %v3058 = vadd.f32 %v3052, 1.0
    %v3059 = vadd.f32 %v3053, 1.0
    %v3060 = vadd.f32 %v3054, 1.0
    %v3061 = vadd.f32 %v3055, 1.0
    %v3062 = vadd.f32 %v3056, 1.0
    %v3063 = vadd.f32 %v3057, 1.0
    %v3064 = vmul.f32 %v3016, %v3058
    %v3065 = vmul.f32 %v3017, %v3059
    %v3066 = vmul.f32 %v3018, %v3060
    %v3067 = vmul.f32 %v3019, %v3061
    %v3068 = vmul.f32 %v3020, %v3062
    %v3069 = vmul.f32 %v3021, %v3063
    %v3070 = vld [vmem:[%s1 + $0x250] sm:$0xff]
    %v3071 = vld [vmem:[%s1 + $0x258] sm:$0xff]
    %v3072 = vld [vmem:[%s1 + $0x260] sm:$0xff]
    %v3073 = vld [vmem:[%s1 + $0x268] sm:$0xff]
    %v3074 = vld [vmem:[%s1 + $0x270] sm:$0xff]
    %v3075 = vld [vmem:[%s1 + $0x278] sm:$0xff]
    %v3076 = vld [vmem:[%s1 + $0x280] sm:$0xff]
    %v3077 = vld [vmem:[%s1 + $0x288] sm:$0xff]
    %v3078 = vld [vmem:[%s1 + $0x295] sm:$0x1]
    %v3079 = vperm.slane %v3078, 0
    %v3081 = vsel %vm1549, %v3064, 0
    %v3084 = vsel %vm1549, %v3065, 0
    %v3087 = vsel %vm1549, %v3066, 0
    %v3090 = vsel %vm1549, %v3067, 0
    %v3093 = vsel %vm1549, %v3068, 0
    %v3096 = vsel %vm1549, %v3069, 0
    %3098 = vmatpush.msra.mxu0 0.0
    %3099 = vmatpush.msra.mxu0 0.0
    %3100 = vmatpush.msra.mxu0 0.0
    %3101 = vmatpush.msra.mxu0 0.0
    %3102 = vmatpush.msra.mxu0 0.0
    %3103 = vmatpush.msra.mxu0 0.0
    %3104 = vmatpush.msra.mxu0 0.0
    %3105 = vmatpush.msra.mxu0 0.0
    %3106 = vmatpush.msra.mxu0 %v3077
    %3107 = vmatpush.msra.mxu0 %v3076
    %3108 = vmatpush.msra.mxu0 %v3075
    %3109 = vmatpush.msra.mxu0 %v3074
    %3110 = vmatpush.msra.mxu0 %v3073
    %3111 = vmatpush.msra.mxu0 %v3072
    %3112 = vmatpush.msra.mxu0 %v3071
    %3113 = vmatpush.msra.mxu0 %v3070
    %3114 = vmatmul.f32.gmra.mxu0 %v3081
    %v3115 = vpop.f32.mrf.mxu0
    %v3116 = vadd.f32 %v3079, %v3115
    %3117 = vmatmul.f32.gmra.mxu0 %v3084
    %v3118 = vpop.f32.mrf.mxu0
    %v3119 = vadd.f32 %v3079, %v3118
    %3120 = vmatmul.f32.gmra.mxu0 %v3087
    %v3121 = vpop.f32.mrf.mxu0
    %v3122 = vadd.f32 %v3079, %v3121
    %3123 = vmatmul.f32.gmra.mxu0 %v3090
    %v3124 = vpop.f32.mrf.mxu0
    %v3125 = vadd.f32 %v3079, %v3124
    %3126 = vmatmul.f32.gmra.mxu0 %v3093
    %v3127 = vpop.f32.mrf.mxu0
    %v3128 = vadd.f32 %v3079, %v3127
    %3129 = vmatmul.f32.gmra.mxu0 %v3096
    %v3130 = vpop.f32.mrf.mxu0
    %v3131 = vadd.f32 %v3079, %v3130
    %3132 = vdwg.mxu0
    %v3133 = vadd.f32 %v2803, %v3116
    %v3134 = vadd.f32 %v2804, %v3119
    %v3135 = vadd.f32 %v2805, %v3122
    %v3136 = vadd.f32 %v2806, %v3125
    %v3137 = vadd.f32 %v2807, %v3128
    %v3138 = vadd.f32 %v2808, %v3131
    %v3139 = vld [vmem:[%s0 + $0x30] sm:$0xff]
    %3141 = vrot.lane.b32.xlu0 %v3134, 32
    %v3142 = vpop.permute.xlu0 %3141
    %3145 = vrot.lane.b32.xlu0 %v3135, 64
    %v3146 = vpop.permute.xlu0 %3145
    %3149 = vrot.lane.b32.xlu0 %v3136, 96
    %v3150 = vpop.permute.xlu0 %3149
    %3153 = vrot.lane.b32.xlu0 %v3138, 32
    %v3154 = vpop.permute.xlu0 %3153
    %3157 = vrot.lane.b32.xlu0 %v3139, 64
    %v3158 = vpop.permute.xlu0 %3157
    %v3160 = vsel %vm71, %v3133, %v3142
    %v3161 = vsel %vm1549, %v3160, %v3146
    %vm3162 = vcmask 785408
    %v3163 = vsel %vm3162, %v3161, %v3150
    %v3164 = vsel %vm71, %v3137, %v3154
    %v3165 = vsel %vm1549, %v3164, %v3158
    %v3166 = vpack.c.bf16 %v3163, %v3163
    %v3167 = vpack.c.bf16 %v3165, %v3165
    %v3168 = vld [vmem:[#allocation2] sm:$0xff]
    %v3169 = vld [vmem:[#allocation2 + $0x8] sm:$0xff]
    %v3170 = vld [vmem:[#allocation2 + $0x1c] sm:$0xff]
    %v3171 = vld [vmem:[#allocation2 + $0x24] sm:$0xff]
    %v3172 = vld [vmem:[#allocation2 + $0x38] sm:$0xff]
    %v3173 = vld [vmem:[#allocation2 + $0x40] sm:$0xff]
    %v3174 = vld [vmem:[#allocation2 + $0x54] sm:$0xff]
    %v3175 = vld [vmem:[#allocation2 + $0x5c] sm:$0xff]
    %v3176 = vld [vmem:[#allocation2 + $0x70] sm:$0xff]
    %v3177 = vld [vmem:[#allocation2 + $0x78] sm:$0xff]
    %v3178 = vld [vmem:[#allocation2 + $0x8c] sm:$0xff]
    %v3179 = vld [vmem:[#allocation2 + $0x94] sm:$0xff]
    %v3180 = vld [vmem:[#allocation2 + $0xa8] sm:$0xff]
    %v3181 = vld [vmem:[#allocation2 + $0xb0] sm:$0xff]
    %v3182 = vld [vmem:[#allocation2 + $0xc4] sm:$0xff]
    %v3183 = vld [vmem:[#allocation2 + $0xcc] sm:$0xff]
    %v3184 = vld [vmem:[#allocation2 + $0xe0] sm:$0xff]
    %v3185 = vld [vmem:[#allocation2 + $0xe8] sm:$0xff]
    %v3186 = vld [vmem:[#allocation2 + $0xfc] sm:$0xff]
    %v3187 = vld [vmem:[#allocation2 + $0x104] sm:$0xff]
    %v3188 = vld [vmem:[#allocation2 + $0x118] sm:$0xff]
    %v3189 = vld [vmem:[#allocation2 + $0x120] sm:$0xff]
    %v3190 = vld [vmem:[#allocation2 + $0x134] sm:$0xff]
    %v3191 = vld [vmem:[#allocation2 + $0x13c] sm:$0xff]
    %v3192 = vld [vmem:[#allocation2 + $0x150] sm:$0xff]
    %v3193 = vld [vmem:[#allocation2 + $0x158] sm:$0xff]
    %v3194 = vld [vmem:[#allocation2 + $0x16c] sm:$0xff]
    %v3195 = vld [vmem:[#allocation2 + $0x174] sm:$0xff]
    %v3196 = vld [vmem:[#allocation2 + $0x188] sm:$0xff]
    %v3197 = vld [vmem:[#allocation2 + $0x190] sm:$0xff]
    %v3198 = vld [vmem:[#allocation2 + $0x1a4] sm:$0xff]
    %v3199 = vld [vmem:[#allocation2 + $0x1ac] sm:$0xff]
    %v3200 = vld [vmem:[#allocation2 + $0x1c0] sm:$0xff]
    %v3201 = vld [vmem:[#allocation2 + $0x1c8] sm:$0xff]
    %v3202 = vld [vmem:[#allocation2 + $0x1dc] sm:$0xff]
    %v3203 = vld [vmem:[#allocation2 + $0x1e4] sm:$0xff]
    %v3204 = vld [vmem:[#allocation2 + $0x1f8] sm:$0xff]
    %v3205 = vld [vmem:[#allocation2 + $0x200] sm:$0xff]
    %v3206 = vld [vmem:[#allocation2 + $0x214] sm:$0xff]
    %v3207 = vld [vmem:[#allocation2 + $0x21c] sm:$0xff]
    %v3208 = vld [vmem:[#allocation2 + $0x230] sm:$0xff]
    %v3209 = vld [vmem:[#allocation2 + $0x238] sm:$0xff]
    %v3210 = vld [vmem:[#allocation2 + $0x24c] sm:$0xff]
    %v3211 = vld [vmem:[#allocation2 + $0x254] sm:$0xff]
    %v3212 = vld [vmem:[#allocation2 + $0x268] sm:$0xff]
    %v3213 = vld [vmem:[#allocation2 + $0x270] sm:$0xff]
    %v3214 = vld [vmem:[#allocation2 + $0x284] sm:$0xff]
    %v3215 = vld [vmem:[#allocation2 + $0x28c] sm:$0xff]
    %v3216 = vld [vmem:[#allocation2 + $0x2a0] sm:$0xff]
    %v3217 = vld [vmem:[#allocation2 + $0x2a8] sm:$0xff]
    %v3218 = vld [vmem:[#allocation2 + $0x2bc] sm:$0xff]
    %v3219 = vld [vmem:[#allocation2 + $0x2c4] sm:$0xff]
    %v3220 = vld [vmem:[#allocation2 + $0x2d8] sm:$0xff]
    %v3221 = vld [vmem:[#allocation2 + $0x2e0] sm:$0xff]
    %v3222 = vld [vmem:[#allocation2 + $0x2f4] sm:$0xff]
    %v3223 = vld [vmem:[#allocation2 + $0x2fc] sm:$0xff]
    %v3224 = vld [vmem:[#allocation2 + $0xa2c] sm:$0x11]
    %v3225 = vld [vmem:[#allocation2 + $0xa34] sm:$0x11]
    %v3226 = vunpack.c.l.bf16 %v3224
    %v3227 = vunpack.c.h.bf16 %v3224
    %v3228 = vunpack.c.l.bf16 %v3225
    %v3229 = vunpack.c.h.bf16 %v3225
    %v3230 = vperm.slane %v3226, 0
    %v3231 = vperm.slane %v3227, 0
    %v3232 = vperm.slane %v3228, 0
    %v3233 = vperm.slane %v3229, 0
    %v3290 = vunpack.c.l.b16 %v3168
    %v3291 = vunpack.c.h.b16 %v3168
    %v3292 = vunpack.c.l.b16 %v3169
    %v3293 = vunpack.c.h.b16 %v3169
    %v3294 = vunpack.c.l.b16 %v3170
    %v3295 = vunpack.c.h.b16 %v3170
    %v3296 = vunpack.c.l.b16 %v3171
    %v3297 = vunpack.c.h.b16 %v3171
    %v3298 = vunpack.c.l.b16 %v3172
    %v3299 = vunpack.c.h.b16 %v3172
    %v3300 = vunpack.c.l.b16 %v3173
    %v3301 = vunpack.c.h.b16 %v3173
    %v3302 = vunpack.c.l.b16 %v3174
    %v3303 = vunpack.c.h.b16 %v3174
    %v3304 = vunpack.c.l.b16 %v3175
    %v3305 = vunpack.c.h.b16 %v3175
    %v3306 = vunpack.c.l.b16 %v3176
    %v3307 = vunpack.c.h.b16 %v3176
    %v3308 = vunpack.c.l.b16 %v3177
    %v3309 = vunpack.c.h.b16 %v3177
    %v3310 = vunpack.c.l.b16 %v3178
    %v3311 = vunpack.c.h.b16 %v3178
    %v3312 = vunpack.c.l.b16 %v3179
    %v3313 = vunpack.c.h.b16 %v3179
    %v3314 = vunpack.c.l.b16 %v3180
    %v3315 = vunpack.c.h.b16 %v3180
    %v3316 = vunpack.c.l.b16 %v3181
    %v3317 = vunpack.c.h.b16 %v3181
    %v3318 = vunpack.c.l.b16 %v3182
    %v3319 = vunpack.c.h.b16 %v3182
    %v3320 = vunpack.c.l.b16 %v3183
    %v3321 = vunpack.c.h.b16 %v3183
    %v3322 = vunpack.c.l.b16 %v3184
    %v3323 = vunpack.c.h.b16 %v3184
    %v3324 = vunpack.c.l.b16 %v3185
    %v3325 = vunpack.c.h.b16 %v3185
    %v3326 = vunpack.c.l.b16 %v3186
    %v3327 = vunpack.c.h.b16 %v3186
    %v3328 = vunpack.c.l.b16 %v3187
    %v3329 = vunpack.c.h.b16 %v3187
    %v3330 = vunpack.c.l.b16 %v3188
    %v3331 = vunpack.c.h.b16 %v3188
    %v3332 = vunpack.c.l.b16 %v3189
    %v3333 = vunpack.c.h.b16 %v3189
    %v3334 = vunpack.c.l.b16 %v3190
    %v3335 = vunpack.c.h.b16 %v3190
    %v3336 = vunpack.c.l.b16 %v3191
    %v3337 = vunpack.c.h.b16 %v3191
    %v3338 = vunpack.c.l.b16 %v3192
    %v3339 = vunpack.c.h.b16 %v3192
    %v3340 = vunpack.c.l.b16 %v3193
    %v3341 = vunpack.c.h.b16 %v3193
    %v3342 = vunpack.c.l.b16 %v3194
    %v3343 = vunpack.c.h.b16 %v3194
    %v3344 = vunpack.c.l.b16 %v3195
    %v3345 = vunpack.c.h.b16 %v3195
    %v3346 = vunpack.c.l.b16 %v3196
    %v3347 = vunpack.c.h.b16 %v3196
    %v3348 = vunpack.c.l.b16 %v3197
    %v3349 = vunpack.c.h.b16 %v3197
    %v3350 = vunpack.c.l.b16 %v3198
    %v3351 = vunpack.c.h.b16 %v3198
    %v3352 = vunpack.c.l.b16 %v3199
    %v3353 = vunpack.c.h.b16 %v3199
    %v3354 = vunpack.c.l.b16 %v3200
    %v3355 = vunpack.c.h.b16 %v3200
    %v3356 = vunpack.c.l.b16 %v3201
    %v3357 = vunpack.c.h.b16 %v3201
    %v3358 = vunpack.c.l.b16 %v3202
    %v3359 = vunpack.c.h.b16 %v3202
    %v3360 = vunpack.c.l.b16 %v3203
    %v3361 = vunpack.c.h.b16 %v3203
    %v3362 = vunpack.c.l.b16 %v3204
    %v3363 = vunpack.c.h.b16 %v3204
    %v3364 = vunpack.c.l.b16 %v3205
    %v3365 = vunpack.c.h.b16 %v3205
    %v3366 = vunpack.c.l.b16 %v3206
    %v3367 = vunpack.c.h.b16 %v3206
    %v3368 = vunpack.c.l.b16 %v3207
    %v3369 = vunpack.c.h.b16 %v3207
    %v3370 = vunpack.c.l.b16 %v3208
    %v3371 = vunpack.c.h.b16 %v3208
    %v3372 = vunpack.c.l.b16 %v3209
    %v3373 = vunpack.c.h.b16 %v3209
    %v3374 = vunpack.c.l.b16 %v3210
    %v3375 = vunpack.c.h.b16 %v3210
    %v3376 = vunpack.c.l.b16 %v3211
    %v3377 = vunpack.c.h.b16 %v3211
    %v3378 = vunpack.c.l.b16 %v3212
    %v3379 = vunpack.c.h.b16 %v3212
    %v3380 = vunpack.c.l.b16 %v3213
    %v3381 = vunpack.c.h.b16 %v3213
    %v3382 = vunpack.c.l.b16 %v3214
    %v3383 = vunpack.c.h.b16 %v3214
    %v3384 = vunpack.c.l.b16 %v3215
    %v3385 = vunpack.c.h.b16 %v3215
    %v3386 = vunpack.c.l.b16 %v3216
    %v3387 = vunpack.c.h.b16 %v3216
    %v3388 = vunpack.c.l.b16 %v3217
    %v3389 = vunpack.c.h.b16 %v3217
    %v3390 = vunpack.c.l.b16 %v3218
    %v3391 = vunpack.c.h.b16 %v3218
    %v3392 = vunpack.c.l.b16 %v3219
    %v3393 = vunpack.c.h.b16 %v3219
    %v3394 = vunpack.c.l.b16 %v3220
    %v3395 = vunpack.c.h.b16 %v3220
    %v3396 = vunpack.c.l.b16 %v3221
    %v3397 = vunpack.c.h.b16 %v3221
    %v3398 = vunpack.c.l.b16 %v3222
    %v3399 = vunpack.c.h.b16 %v3222
    %v3400 = vunpack.c.l.b16 %v3223
    %v3401 = vunpack.c.h.b16 %v3223
    %v3402 = vpack.c.b16 %v3294, %v3290
    %v3403 = vpack.c.b16 %v3295, %v3291
    %v3404 = vpack.c.b16 %v3296, %v3292
    %v3405 = vpack.c.b16 %v3297, %v3293
    %v3406 = vpack.c.b16 %v3302, %v3298
    %v3407 = vpack.c.b16 %v3303, %v3299
    %v3408 = vpack.c.b16 %v3304, %v3300
    %v3409 = vpack.c.b16 %v3305, %v3301
    %v3410 = vpack.c.b16 %v3310, %v3306
    %v3411 = vpack.c.b16 %v3311, %v3307
    %v3412 = vpack.c.b16 %v3312, %v3308
    %v3413 = vpack.c.b16 %v3313, %v3309
    %v3414 = vpack.c.b16 %v3318, %v3314
    %v3415 = vpack.c.b16 %v3319, %v3315
    %v3416 = vpack.c.b16 %v3320, %v3316
    %v3417 = vpack.c.b16 %v3321, %v3317
    %v3418 = vpack.c.b16 %v3326, %v3322
    %v3419 = vpack.c.b16 %v3327, %v3323
    %v3420 = vpack.c.b16 %v3328, %v3324
    %v3421 = vpack.c.b16 %v3329, %v3325
    %v3422 = vpack.c.b16 %v3334, %v3330
    %v3423 = vpack.c.b16 %v3335, %v3331
    %v3424 = vpack.c.b16 %v3336, %v3332
    %v3425 = vpack.c.b16 %v3337, %v3333
    %v3426 = vpack.c.b16 %v3342, %v3338
    %v3427 = vpack.c.b16 %v3343, %v3339
    %v3428 = vpack.c.b16 %v3344, %v3340
    %v3429 = vpack.c.b16 %v3345, %v3341
    %v3430 = vpack.c.b16 %v3350, %v3346
    %v3431 = vpack.c.b16 %v3351, %v3347
    %v3432 = vpack.c.b16 %v3352, %v3348
    %v3433 = vpack.c.b16 %v3353, %v3349
    %v3434 = vpack.c.b16 %v3358, %v3354
    %v3435 = vpack.c.b16 %v3359, %v3355
    %v3436 = vpack.c.b16 %v3360, %v3356
    %v3437 = vpack.c.b16 %v3361, %v3357
    %v3438 = vpack.c.b16 %v3366, %v3362
    %v3439 = vpack.c.b16 %v3367, %v3363
    %v3440 = vpack.c.b16 %v3368, %v3364
    %v3441 = vpack.c.b16 %v3369, %v3365
    %v3442 = vpack.c.b16 %v3374, %v3370
    %v3443 = vpack.c.b16 %v3375, %v3371
    %v3444 = vpack.c.b16 %v3376, %v3372
    %v3445 = vpack.c.b16 %v3377, %v3373
    %v3446 = vpack.c.b16 %v3382, %v3378
    %v3447 = vpack.c.b16 %v3383, %v3379
    %v3448 = vpack.c.b16 %v3384, %v3380
    %v3449 = vpack.c.b16 %v3385, %v3381
    %v3450 = vpack.c.b16 %v3390, %v3386
    %v3451 = vpack.c.b16 %v3391, %v3387
    %v3452 = vpack.c.b16 %v3392, %v3388
    %v3453 = vpack.c.b16 %v3393, %v3389
    %v3454 = vpack.c.b16 %v3398, %v3394
    %v3455 = vpack.c.b16 %v3399, %v3395
    %v3456 = vpack.c.b16 %v3400, %v3396
    %v3457 = vpack.c.b16 %v3401, %v3397
    %v3515 = vsel %vm3162, %v3167, 0
    %3517 = vmatpush.bf16.msra.mxu0 %v3430
    %3518 = vmatpush.bf16.msra.mxu0 %v3426
    %3519 = vmatpush.bf16.msra.mxu0 %v3422
    %3520 = vmatpush.bf16.msra.mxu0 %v3418
    %3521 = vmatpush.bf16.msra.mxu0 %v3414
    %3522 = vmatpush.bf16.msra.mxu0 %v3410
    %3523 = vmatpush.bf16.msra.mxu0 %v3406
    %3524 = vmatpush.bf16.msra.mxu0 %v3402
    %3525 = vmatmul.bf16.gmra.mxu0 %v3166
    %v3526 = vpop.f32.mrf.mxu0
    %v3527 = vadd.f32 %v3230, %v3526
    %v3528 = vpop.f32.mrf.mxu0
    %3529 = vdwg.mxu0
    %3530 = vmatpush.bf16.msra.mxu0 0
    %3531 = vmatpush.bf16.msra.mxu0 0
    %3532 = vmatpush.bf16.msra.mxu0 %v3454
    %3533 = vmatpush.bf16.msra.mxu0 %v3450
    %3534 = vmatpush.bf16.msra.mxu0 %v3446
    %3535 = vmatpush.bf16.msra.mxu0 %v3442
    %3536 = vmatpush.bf16.msra.mxu0 %v3438
    %3537 = vmatpush.bf16.msra.mxu0 %v3434
    %3538 = vmatmul.bf16.gmra.mxu0 %v3515
    %v3539 = vpop.f32.mrf.mxu0
    %v3540 = vadd.f32 %v3527, %v3539
    %v3541 = vpop.f32.mrf.mxu0
    %3542 = vdwg.mxu0
    %3543 = vmatpush.bf16.msra.mxu0 %v3431
    %3544 = vmatpush.bf16.msra.mxu0 %v3427
    %3545 = vmatpush.bf16.msra.mxu0 %v3423
    %3546 = vmatpush.bf16.msra.mxu0 %v3419
    %3547 = vmatpush.bf16.msra.mxu0 %v3415
    %3548 = vmatpush.bf16.msra.mxu0 %v3411
    %3549 = vmatpush.bf16.msra.mxu0 %v3407
    %3550 = vmatpush.bf16.msra.mxu0 %v3403
    %3551 = vmatmul.bf16.gmra.mxu0 %v3166
    %v3552 = vpop.f32.mrf.mxu0
    %v3553 = vadd.f32 %v3231, %v3552
    %v3554 = vpop.f32.mrf.mxu0
    %3555 = vdwg.mxu0
    %3556 = vmatpush.bf16.msra.mxu0 0
    %3557 = vmatpush.bf16.msra.mxu0 0
    %3558 = vmatpush.bf16.msra.mxu0 %v3455
    %3559 = vmatpush.bf16.msra.mxu0 %v3451
    %3560 = vmatpush.bf16.msra.mxu0 %v3447
    %3561 = vmatpush.bf16.msra.mxu0 %v3443
    %3562 = vmatpush.bf16.msra.mxu0 %v3439
    %3563 = vmatpush.bf16.msra.mxu0 %v3435
    %3564 = vmatmul.bf16.gmra.mxu0 %v3515
    %v3565 = vpop.f32.mrf.mxu0
    %v3566 = vadd.f32 %v3553, %v3565
    %v3567 = vpop.f32.mrf.mxu0
    %3568 = vdwg.mxu0
    %3569 = vmatpush.bf16.msra.mxu0 %v3432
    %3570 = vmatpush.bf16.msra.mxu0 %v3428
    %3571 = vmatpush.bf16.msra.mxu0 %v3424
    %3572 = vmatpush.bf16.msra.mxu0 %v3420
    %3573 = vmatpush.bf16.msra.mxu0 %v3416
    %3574 = vmatpush.bf16.msra.mxu0 %v3412
    %3575 = vmatpush.bf16.msra.mxu0 %v3408
    %3576 = vmatpush.bf16.msra.mxu0 %v3404
    %3577 = vmatmul.bf16.gmra.mxu0 %v3166
    %v3578 = vpop.f32.mrf.mxu0
    %v3579 = vadd.f32 %v3232, %v3578
    %v3580 = vpop.f32.mrf.mxu0
    %3581 = vdwg.mxu0
    %3582 = vmatpush.bf16.msra.mxu0 0
    %3583 = vmatpush.bf16.msra.mxu0 0
    %3584 = vmatpush.bf16.msra.mxu0 %v3456
    %3585 = vmatpush.bf16.msra.mxu0 %v3452
    %3586 = vmatpush.bf16.msra.mxu0 %v3448
    %3587 = vmatpush.bf16.msra.mxu0 %v3444
    %3588 = vmatpush.bf16.msra.mxu0 %v3440
    %3589 = vmatpush.bf16.msra.mxu0 %v3436
    %3590 = vmatmul.bf16.gmra.mxu0 %v3515
    %v3591 = vpop.f32.mrf.mxu0
    %v3592 = vadd.f32 %v3579, %v3591
    %v3593 = vpop.f32.mrf.mxu0
    %3594 = vdwg.mxu0
    %3595 = vmatpush.bf16.msra.mxu0 %v3433
    %3596 = vmatpush.bf16.msra.mxu0 %v3429
    %3597 = vmatpush.bf16.msra.mxu0 %v3425
    %3598 = vmatpush.bf16.msra.mxu0 %v3421
    %3599 = vmatpush.bf16.msra.mxu0 %v3417
    %3600 = vmatpush.bf16.msra.mxu0 %v3413
    %3601 = vmatpush.bf16.msra.mxu0 %v3409
    %3602 = vmatpush.bf16.msra.mxu0 %v3405
    %3603 = vmatmul.bf16.gmra.mxu0 %v3166
    %v3604 = vpop.f32.mrf.mxu0
    %v3605 = vadd.f32 %v3233, %v3604
    %v3606 = vpop.f32.mrf.mxu0
    %3607 = vdwg.mxu0
    %3608 = vmatpush.bf16.msra.mxu0 0
    %3609 = vmatpush.bf16.msra.mxu0 0
    %3610 = vmatpush.bf16.msra.mxu0 %v3457
    %3611 = vmatpush.bf16.msra.mxu0 %v3453
    %3612 = vmatpush.bf16.msra.mxu0 %v3449
    %3613 = vmatpush.bf16.msra.mxu0 %v3445
    %3614 = vmatpush.bf16.msra.mxu0 %v3441
    %3615 = vmatpush.bf16.msra.mxu0 %v3437
    %3616 = vmatmul.bf16.gmra.mxu0 %v3515
    %v3617 = vpop.f32.mrf.mxu0
    %v3618 = vadd.f32 %v3605, %v3617
    %v3619 = vpop.f32.mrf.mxu0
    %3620 = vdwg.mxu0
    %vm3621 = vcmp.gt.f32.partialorder %v3540, 0.0
    %vm3622 = vcmp.gt.f32.partialorder %v3566, 0.0
    %vm3623 = vcmp.gt.f32.partialorder %v3592, 0.0
    %vm3624 = vcmp.gt.f32.partialorder %v3618, 0.0
    %v3625 = vmul.f32 %v3540, 1.442695
    %v3626 = vpow.pop %v3625
    %v3627 = vmul.f32 %v3566, 1.442695
    %v3628 = vpow.pop %v3627
    %v3629 = vmul.f32 %v3592, 1.442695
    %v3630 = vpow.pop %v3629
    %v3631 = vmul.f32 %v3618, 1.442695
    %v3632 = vpow.pop %v3631
    %v3633 = vsub.f32 %v3626, 1.0
    %v3634 = vsub.f32 %v3628, 1.0
    %v3635 = vsub.f32 %v3630, 1.0
    %v3636 = vsub.f32 %v3632, 1.0
    %v3637 = vmul.f32 %v3633, 1.6732632
    %v3638 = vmul.f32 %v3634, 1.6732632
    %v3639 = vmul.f32 %v3635, 1.6732632
    %v3640 = vmul.f32 %v3636, 1.6732632
    %v3641 = vsel %vm3621, %v3540, %v3637
    %v3642 = vsel %vm3622, %v3566, %v3638
    %v3643 = vsel %vm3623, %v3592, %v3639
    %v3644 = vsel %vm3624, %v3618, %v3640
    %v3645 = vmul.f32 %v3641, 1.050701
    %v3646 = vmul.f32 %v3642, 1.050701
    %v3647 = vmul.f32 %v3643, 1.050701
    %v3648 = vmul.f32 %v3644, 1.050701
    %v3649 = vld [vmem:[#allocation2 + $0x310] sm:$0xff]
    %v3650 = vld [vmem:[#allocation2 + $0x318] sm:$0xff]
    %v3651 = vld [vmem:[#allocation2 + $0x320] sm:$0xff]
    %v3652 = vld [vmem:[#allocation2 + $0x328] sm:$0xf]
    %v3653 = vld [vmem:[#allocation2 + $0x32c] sm:$0xff]
    %v3654 = vld [vmem:[#allocation2 + $0x334] sm:$0xff]
    %v3655 = vld [vmem:[#allocation2 + $0x33c] sm:$0xff]
    %v3656 = vld [vmem:[#allocation2 + $0x344] sm:$0xf]
    %v3657 = vld [vmem:[#allocation2 + $0x348] sm:$0xff]
    %v3658 = vld [vmem:[#allocation2 + $0x350] sm:$0xff]
    %v3659 = vld [vmem:[#allocation2 + $0x358] sm:$0xff]
    %v3660 = vld [vmem:[#allocation2 + $0x360] sm:$0xf]
    %v3661 = vld [vmem:[#allocation2 + $0x364] sm:$0xff]
    %v3662 = vld [vmem:[#allocation2 + $0x36c] sm:$0xff]
    %v3663 = vld [vmem:[#allocation2 + $0x374] sm:$0xff]
    %v3664 = vld [vmem:[#allocation2 + $0x37c] sm:$0xf]
    %v3665 = vld [vmem:[#allocation2 + $0x380] sm:$0xff]
    %v3666 = vld [vmem:[#allocation2 + $0x388] sm:$0xff]
    %v3667 = vld [vmem:[#allocation2 + $0x390] sm:$0xff]
    %v3668 = vld [vmem:[#allocation2 + $0x398] sm:$0xf]
    %v3669 = vld [vmem:[#allocation2 + $0x39c] sm:$0xff]
    %v3670 = vld [vmem:[#allocation2 + $0x3a4] sm:$0xff]
    %v3671 = vld [vmem:[#allocation2 + $0x3ac] sm:$0xff]
    %v3672 = vld [vmem:[#allocation2 + $0x3b4] sm:$0xf]
    %v3673 = vld [vmem:[#allocation2 + $0x3b8] sm:$0xff]
    %v3674 = vld [vmem:[#allocation2 + $0x3c0] sm:$0xff]
    %v3675 = vld [vmem:[#allocation2 + $0x3c8] sm:$0xff]
    %v3676 = vld [vmem:[#allocation2 + $0x3d0] sm:$0xf]
    %v3677 = vld [vmem:[#allocation2 + $0x3d4] sm:$0xff]
    %v3678 = vld [vmem:[#allocation2 + $0x3dc] sm:$0xff]
    %v3679 = vld [vmem:[#allocation2 + $0x3e4] sm:$0xff]
    %v3680 = vld [vmem:[#allocation2 + $0x3ec] sm:$0xf]
    %v3681 = vld [vmem:[#allocation2 + $0x3f0] sm:$0xff]
    %v3682 = vld [vmem:[#allocation2 + $0x3f8] sm:$0xff]
    %v3683 = vld [vmem:[#allocation2 + $0x400] sm:$0xff]
    %v3684 = vld [vmem:[#allocation2 + $0x408] sm:$0xf]
    %v3685 = vld [vmem:[#allocation2 + $0x40c] sm:$0xff]
    %v3686 = vld [vmem:[#allocation2 + $0x414] sm:$0xff]
    %v3687 = vld [vmem:[#allocation2 + $0x41c] sm:$0xff]
    %v3688 = vld [vmem:[#allocation2 + $0x424] sm:$0xf]
    %v3689 = vld [vmem:[#allocation2 + $0x428] sm:$0xff]
    %v3690 = vld [vmem:[#allocation2 + $0x430] sm:$0xff]
    %v3691 = vld [vmem:[#allocation2 + $0x438] sm:$0xff]
    %v3692 = vld [vmem:[#allocation2 + $0x440] sm:$0xf]
    %v3693 = vld [vmem:[#allocation2 + $0x444] sm:$0xff]
    %v3694 = vld [vmem:[#allocation2 + $0x44c] sm:$0xff]
    %v3695 = vld [vmem:[#allocation2 + $0x454] sm:$0xff]
    %v3696 = vld [vmem:[#allocation2 + $0x45c] sm:$0xf]
    %v3697 = vld [vmem:[#allocation2 + $0x460] sm:$0xff]
    %v3698 = vld [vmem:[#allocation2 + $0x468] sm:$0xff]
    %v3699 = vld [vmem:[#allocation2 + $0x470] sm:$0xff]
    %v3700 = vld [vmem:[#allocation2 + $0x478] sm:$0xf]
    %v3701 = vld [vmem:[#allocation2 + $0x47c] sm:$0xff]
    %v3702 = vld [vmem:[#allocation2 + $0x484] sm:$0xff]
    %v3703 = vld [vmem:[#allocation2 + $0x48c] sm:$0xff]
    %v3704 = vld [vmem:[#allocation2 + $0x494] sm:$0xf]
    %v3705 = vld [vmem:[#allocation2 + $0x498] sm:$0xff]
    %v3706 = vld [vmem:[#allocation2 + $0x4a0] sm:$0xff]
    %v3707 = vld [vmem:[#allocation2 + $0x4a8] sm:$0xff]
    %v3708 = vld [vmem:[#allocation2 + $0x4b0] sm:$0xf]
    %v3709 = vld [vmem:[#allocation2 + $0x4b4] sm:$0xff]
    %v3710 = vld [vmem:[#allocation2 + $0x4bc] sm:$0xff]
    %v3711 = vld [vmem:[#allocation2 + $0x4c4] sm:$0xff]
    %v3712 = vld [vmem:[#allocation2 + $0x4cc] sm:$0xf]
    %v3713 = vld [vmem:[#allocation2 + $0x4d0] sm:$0xff]
    %v3714 = vld [vmem:[#allocation2 + $0x4d8] sm:$0xff]
    %v3715 = vld [vmem:[#allocation2 + $0x4e0] sm:$0xff]
    %v3716 = vld [vmem:[#allocation2 + $0x4e8] sm:$0xf]
    %v3717 = vld [vmem:[#allocation2 + $0x4ec] sm:$0xff]
    %v3718 = vld [vmem:[#allocation2 + $0x4f4] sm:$0xff]
    %v3719 = vld [vmem:[#allocation2 + $0x4fc] sm:$0xff]
    %v3720 = vld [vmem:[#allocation2 + $0x504] sm:$0xf]
    %v3721 = vld [vmem:[#allocation2 + $0x508] sm:$0xff]
    %v3722 = vld [vmem:[#allocation2 + $0x510] sm:$0xff]
    %v3723 = vld [vmem:[#allocation2 + $0x518] sm:$0xff]
    %v3724 = vld [vmem:[#allocation2 + $0x520] sm:$0xf]
    %v3725 = vld [vmem:[#allocation2 + $0x524] sm:$0xff]
    %v3726 = vld [vmem:[#allocation2 + $0x52c] sm:$0xff]
    %v3727 = vld [vmem:[#allocation2 + $0x534] sm:$0xff]
    %v3728 = vld [vmem:[#allocation2 + $0x53c] sm:$0xf]
    %v3729 = vld [vmem:[#allocation2 + $0x540] sm:$0xff]
    %v3730 = vld [vmem:[#allocation2 + $0x548] sm:$0xff]
    %v3731 = vld [vmem:[#allocation2 + $0x550] sm:$0xff]
    %v3732 = vld [vmem:[#allocation2 + $0x558] sm:$0xf]
    %v3733 = vld [vmem:[#allocation2 + $0x55c] sm:$0xff]
    %v3734 = vld [vmem:[#allocation2 + $0x564] sm:$0xff]
    %v3735 = vld [vmem:[#allocation2 + $0x56c] sm:$0xff]
    %v3736 = vld [vmem:[#allocation2 + $0x574] sm:$0xf]
    %v3737 = vld [vmem:[#allocation2 + $0x578] sm:$0xff]
    %v3738 = vld [vmem:[#allocation2 + $0x580] sm:$0xff]
    %v3739 = vld [vmem:[#allocation2 + $0x588] sm:$0xff]
    %v3740 = vld [vmem:[#allocation2 + $0x590] sm:$0xf]
    %v3741 = vld [vmem:[#allocation2 + $0x594] sm:$0xff]
    %v3742 = vld [vmem:[#allocation2 + $0x59c] sm:$0xff]
    %v3743 = vld [vmem:[#allocation2 + $0x5a4] sm:$0xff]
    %v3744 = vld [vmem:[#allocation2 + $0x5ac] sm:$0xf]
    %v3745 = vld [vmem:[#allocation2 + $0x5b0] sm:$0xff]
    %v3746 = vld [vmem:[#allocation2 + $0x5b8] sm:$0xff]
    %v3747 = vld [vmem:[#allocation2 + $0x5c0] sm:$0xff]
    %v3748 = vld [vmem:[#allocation2 + $0x5c8] sm:$0xf]
    %v3749 = vld [vmem:[#allocation2 + $0x5cc] sm:$0xff]
    %v3750 = vld [vmem:[#allocation2 + $0x5d4] sm:$0xff]
    %v3751 = vld [vmem:[#allocation2 + $0x5dc] sm:$0xff]
    %v3752 = vld [vmem:[#allocation2 + $0x5e4] sm:$0xf]
    %v3753 = vld [vmem:[#allocation2 + $0x5e8] sm:$0xff]
    %v3754 = vld [vmem:[#allocation2 + $0x5f0] sm:$0xff]
    %v3755 = vld [vmem:[#allocation2 + $0x5f8] sm:$0xff]
    %v3756 = vld [vmem:[#allocation2 + $0x600] sm:$0xf]
    %v3757 = vld [vmem:[#allocation2 + $0x604] sm:$0xff]
    %v3758 = vld [vmem:[#allocation2 + $0x60c] sm:$0xff]
    %v3759 = vld [vmem:[#allocation2 + $0x614] sm:$0xff]
    %v3760 = vld [vmem:[#allocation2 + $0x61c] sm:$0xf]
    %v3761 = vld [vmem:[#allocation2 + $0x620] sm:$0xff]
    %v3762 = vld [vmem:[#allocation2 + $0x628] sm:$0xff]
    %v3763 = vld [vmem:[#allocation2 + $0x630] sm:$0xff]
    %v3764 = vld [vmem:[#allocation2 + $0x638] sm:$0xf]
    %v3765 = vld [vmem:[#allocation2 + $0x63c] sm:$0xff]
    %v3766 = vld [vmem:[#allocation2 + $0x644] sm:$0xff]
    %v3767 = vld [vmem:[#allocation2 + $0x64c] sm:$0xff]
    %v3768 = vld [vmem:[#allocation2 + $0x654] sm:$0xf]
    %v3769 = vld [vmem:[#allocation2 + $0x658] sm:$0xff]
    %v3770 = vld [vmem:[#allocation2 + $0x660] sm:$0xff]
    %v3771 = vld [vmem:[#allocation2 + $0x668] sm:$0xff]
    %v3772 = vld [vmem:[#allocation2 + $0x670] sm:$0xf]
    %v3773 = vld [vmem:[#allocation2 + $0x674] sm:$0xff]
    %v3774 = vld [vmem:[#allocation2 + $0x67c] sm:$0xff]
    %v3775 = vld [vmem:[#allocation2 + $0x684] sm:$0xff]
    %v3776 = vld [vmem:[#allocation2 + $0x68c] sm:$0xf]
    %v3777 = vld [vmem:[#allocation2 + $0x690] sm:$0xff]
    %v3778 = vld [vmem:[#allocation2 + $0x698] sm:$0xff]
    %v3779 = vld [vmem:[#allocation2 + $0x6a0] sm:$0xff]
    %v3780 = vld [vmem:[#allocation2 + $0x6a8] sm:$0xf]
    %v3781 = vld [vmem:[#allocation2 + $0x6ac] sm:$0xff]
    %v3782 = vld [vmem:[#allocation2 + $0x6b4] sm:$0xff]
    %v3783 = vld [vmem:[#allocation2 + $0x6bc] sm:$0xff]
    %v3784 = vld [vmem:[#allocation2 + $0x6c4] sm:$0xf]
    %v3785 = vld [vmem:[#allocation2 + $0x6c8] sm:$0xff]
    %v3786 = vld [vmem:[#allocation2 + $0x6d0] sm:$0xff]
    %v3787 = vld [vmem:[#allocation2 + $0x6d8] sm:$0xff]
    %v3788 = vld [vmem:[#allocation2 + $0x6e0] sm:$0xf]
    %v3789 = vld [vmem:[#allocation2 + $0x6e4] sm:$0xff]
    %v3790 = vld [vmem:[#allocation2 + $0x6ec] sm:$0xff]
    %v3791 = vld [vmem:[#allocation2 + $0x6f4] sm:$0xff]
    %v3792 = vld [vmem:[#allocation2 + $0x6fc] sm:$0xf]
    %v3793 = vld [vmem:[#allocation2 + $0x700] sm:$0xff]
    %v3794 = vld [vmem:[#allocation2 + $0x708] sm:$0xff]
    %v3795 = vld [vmem:[#allocation2 + $0x710] sm:$0xff]
    %v3796 = vld [vmem:[#allocation2 + $0x718] sm:$0xf]
    %v3797 = vld [vmem:[#allocation2 + $0x71c] sm:$0xff]
    %v3798 = vld [vmem:[#allocation2 + $0x724] sm:$0xff]
    %v3799 = vld [vmem:[#allocation2 + $0x72c] sm:$0xff]
    %v3800 = vld [vmem:[#allocation2 + $0x734] sm:$0xf]
    %v3801 = vld [vmem:[#allocation2 + $0x738] sm:$0xff]
    %v3802 = vld [vmem:[#allocation2 + $0x740] sm:$0xff]
    %v3803 = vld [vmem:[#allocation2 + $0x748] sm:$0xff]
    %v3804 = vld [vmem:[#allocation2 + $0x750] sm:$0xf]
    %v3805 = vld [vmem:[#allocation2 + $0x754] sm:$0xff]
    %v3806 = vld [vmem:[#allocation2 + $0x75c] sm:$0xff]
    %v3807 = vld [vmem:[#allocation2 + $0x764] sm:$0xff]
    %v3808 = vld [vmem:[#allocation2 + $0x76c] sm:$0xf]
    %v3809 = vld [vmem:[#allocation2 + $0x770] sm:$0xff]
    %v3810 = vld [vmem:[#allocation2 + $0x778] sm:$0xff]
    %v3811 = vld [vmem:[#allocation2 + $0x780] sm:$0xff]
    %v3812 = vld [vmem:[#allocation2 + $0x788] sm:$0xf]
    %v3813 = vld [vmem:[#allocation2 + $0x78c] sm:$0xff]
    %v3814 = vld [vmem:[#allocation2 + $0x794] sm:$0xff]
    %v3815 = vld [vmem:[#allocation2 + $0x79c] sm:$0xff]
    %v3816 = vld [vmem:[#allocation2 + $0x7a4] sm:$0xf]
    %v3817 = vld [vmem:[#allocation2 + $0x7a8] sm:$0xff]
    %v3818 = vld [vmem:[#allocation2 + $0x7b0] sm:$0xff]
    %v3819 = vld [vmem:[#allocation2 + $0x7b8] sm:$0xff]
    %v3820 = vld [vmem:[#allocation2 + $0x7c0] sm:$0xf]
    %v3821 = vld [vmem:[#allocation2 + $0x7c4] sm:$0xff]
    %v3822 = vld [vmem:[#allocation2 + $0x7cc] sm:$0xff]
    %v3823 = vld [vmem:[#allocation2 + $0x7d4] sm:$0xff]
    %v3824 = vld [vmem:[#allocation2 + $0x7dc] sm:$0xf]
    %v3825 = vld [vmem:[#allocation2 + $0x7e0] sm:$0xff]
    %v3826 = vld [vmem:[#allocation2 + $0x7e8] sm:$0xff]
    %v3827 = vld [vmem:[#allocation2 + $0x7f0] sm:$0xff]
    %v3828 = vld [vmem:[#allocation2 + $0x7f8] sm:$0xf]
    %v3829 = vld [vmem:[#allocation2 + $0x7fc] sm:$0xff]
    %v3830 = vld [vmem:[#allocation2 + $0x804] sm:$0xff]
    %v3831 = vld [vmem:[#allocation2 + $0x80c] sm:$0xff]
    %v3832 = vld [vmem:[#allocation2 + $0x814] sm:$0xf]
    %v3833 = vld [vmem:[#allocation2 + $0x818] sm:$0xff]
    %v3834 = vld [vmem:[#allocation2 + $0x820] sm:$0xff]
    %v3835 = vld [vmem:[#allocation2 + $0x828] sm:$0xff]
    %v3836 = vld [vmem:[#allocation2 + $0x830] sm:$0xf]
    %v3837 = vld [vmem:[#allocation2 + $0x834] sm:$0xff]
    %v3838 = vld [vmem:[#allocation2 + $0x83c] sm:$0xff]
    %v3839 = vld [vmem:[#allocation2 + $0x844] sm:$0xff]
    %v3840 = vld [vmem:[#allocation2 + $0x84c] sm:$0xf]
    %v3841 = vld [vmem:[#allocation2 + $0x850] sm:$0xff]
    %v3842 = vld [vmem:[#allocation2 + $0x858] sm:$0xff]
    %v3843 = vld [vmem:[#allocation2 + $0x860] sm:$0xff]
    %v3844 = vld [vmem:[#allocation2 + $0x868] sm:$0xf]
    %v3845 = vld [vmem:[#allocation2 + $0x86c] sm:$0xff]
    %v3846 = vld [vmem:[#allocation2 + $0x874] sm:$0xff]
    %v3847 = vld [vmem:[#allocation2 + $0x87c] sm:$0xff]
    %v3848 = vld [vmem:[#allocation2 + $0x884] sm:$0xf]
    %v3849 = vld [vmem:[#allocation2 + $0x888] sm:$0xff]
    %v3850 = vld [vmem:[#allocation2 + $0x890] sm:$0xff]
    %v3851 = vld [vmem:[#allocation2 + $0x898] sm:$0xff]
    %v3852 = vld [vmem:[#allocation2 + $0x8a0] sm:$0xf]
    %v3853 = vld [vmem:[#allocation2 + $0x8a4] sm:$0xff]
    %v3854 = vld [vmem:[#allocation2 + $0x8ac] sm:$0xff]
    %v3855 = vld [vmem:[#allocation2 + $0x8b4] sm:$0xff]
    %v3856 = vld [vmem:[#allocation2 + $0x8bc] sm:$0xf]
    %v3857 = vld [vmem:[#allocation2 + $0x8c0] sm:$0xff]
    %v3858 = vld [vmem:[#allocation2 + $0x8c8] sm:$0xff]
    %v3859 = vld [vmem:[#allocation2 + $0x8d0] sm:$0xff]
    %v3860 = vld [vmem:[#allocation2 + $0x8d8] sm:$0xf]
    %v3861 = vld [vmem:[#allocation2 + $0x8dc] sm:$0xff]
    %v3862 = vld [vmem:[#allocation2 + $0x8e4] sm:$0xff]
    %v3863 = vld [vmem:[#allocation2 + $0x8ec] sm:$0xff]
    %v3864 = vld [vmem:[#allocation2 + $0x8f4] sm:$0xf]
    %v3865 = vld [vmem:[#allocation2 + $0x8f8] sm:$0xff]
    %v3866 = vld [vmem:[#allocation2 + $0x900] sm:$0xff]
    %v3867 = vld [vmem:[#allocation2 + $0x908] sm:$0xff]
    %v3868 = vld [vmem:[#allocation2 + $0x910] sm:$0xf]
    %v3869 = vld [vmem:[#allocation2 + $0x914] sm:$0xff]
    %v3870 = vld [vmem:[#allocation2 + $0x91c] sm:$0xff]
    %v3871 = vld [vmem:[#allocation2 + $0x924] sm:$0xff]
    %v3872 = vld [vmem:[#allocation2 + $0x92c] sm:$0xf]
    %v3873 = vld [vmem:[#allocation2 + $0x930] sm:$0xff]
    %v3874 = vld [vmem:[#allocation2 + $0x938] sm:$0xff]
    %v3875 = vld [vmem:[#allocation2 + $0x940] sm:$0xff]
    %v3876 = vld [vmem:[#allocation2 + $0x948] sm:$0xf]
    %v3877 = vld [vmem:[#allocation2 + $0x94c] sm:$0xff]
    %v3878 = vld [vmem:[#allocation2 + $0x954] sm:$0xff]
    %v3879 = vld [vmem:[#allocation2 + $0x95c] sm:$0xff]
    %v3880 = vld [vmem:[#allocation2 + $0x964] sm:$0xf]
    %v3881 = vld [vmem:[#allocation2 + $0x968] sm:$0xff]
    %v3882 = vld [vmem:[#allocation2 + $0x970] sm:$0xff]
    %v3883 = vld [vmem:[#allocation2 + $0x978] sm:$0xff]
    %v3884 = vld [vmem:[#allocation2 + $0x980] sm:$0xf]
    %v3885 = vld [vmem:[#allocation2 + $0x984] sm:$0xff]
    %v3886 = vld [vmem:[#allocation2 + $0x98c] sm:$0xff]
    %v3887 = vld [vmem:[#allocation2 + $0x994] sm:$0xff]
    %v3888 = vld [vmem:[#allocation2 + $0x99c] sm:$0xf]
    %v3889 = vld [vmem:[#allocation2 + $0x9a0] sm:$0xff]
    %v3890 = vld [vmem:[#allocation2 + $0x9a8] sm:$0xff]
    %v3891 = vld [vmem:[#allocation2 + $0x9b0] sm:$0xff]
    %v3892 = vld [vmem:[#allocation2 + $0x9b8] sm:$0xf]
    %v3893 = vld [vmem:[#allocation2 + $0x9bc] sm:$0xff]
    %v3894 = vld [vmem:[#allocation2 + $0x9c4] sm:$0xff]
    %v3895 = vld [vmem:[#allocation2 + $0x9cc] sm:$0xff]
    %v3896 = vld [vmem:[#allocation2 + $0x9d4] sm:$0xf]
    %v3897 = vld [vmem:[#allocation2 + $0x9d8] sm:$0xff]
    %v3898 = vld [vmem:[#allocation2 + $0x9e0] sm:$0xff]
    %v3899 = vld [vmem:[#allocation2 + $0x9e8] sm:$0xff]
    %v3900 = vld [vmem:[#allocation2 + $0x9f0] sm:$0xf]
    %v3901 = vld [vmem:[#allocation2 + $0x9f4] sm:$0xff]
    %v3902 = vld [vmem:[#allocation2 + $0x9fc] sm:$0xff]
    %v3903 = vld [vmem:[#allocation2 + $0xa04] sm:$0xff]
    %v3904 = vld [vmem:[#allocation2 + $0xa0c] sm:$0xf]
    %v3905 = vld [vmem:[#allocation2 + $0xa2c] sm:$0x11]
    %v3906 = vld [vmem:[#allocation2 + $0xa34] sm:$0x11]
    %v3907 = vld [vmem:[#allocation2 + $0xa3c] sm:$0x11]
    %v3908 = vld [vmem:[#allocation2 + $0xa44] sm:$0x1]
    %v3909 = vunpack.c.l.bf16 %v3905
    %v3910 = vunpack.c.h.bf16 %v3905
    %v3911 = vunpack.c.l.bf16 %v3906
    %v3912 = vunpack.c.h.bf16 %v3906
    %v3913 = vunpack.c.l.bf16 %v3907
    %v3914 = vunpack.c.h.bf16 %v3907
    %v3915 = vunpack.c.l.bf16 %v3908
    %v3916 = vpack.c.bf16 %v3645, %v3645
    %v3917 = vpack.c.bf16 %v3646, %v3646
    %v3918 = vpack.c.bf16 %v3647, %v3647
    %v3919 = vpack.c.bf16 %v3648, %v3648
    %v3920 = vperm.slane %v3909, 1
    %v3921 = vperm.slane %v3910, 1
    %v3922 = vperm.slane %v3911, 1
    %v3923 = vperm.slane %v3912, 1
    %v3924 = vperm.slane %v3913, 1
    %v3925 = vperm.slane %v3914, 1
    %v3926 = vperm.slane %v3915, 1
    %v4183 = vunpack.c.l.b16 %v3649
    %v4184 = vunpack.c.h.b16 %v3649
    %v4185 = vunpack.c.l.b16 %v3650
    %v4186 = vunpack.c.h.b16 %v3650
    %v4187 = vunpack.c.l.b16 %v3651
    %v4188 = vunpack.c.h.b16 %v3651
    %v4189 = vunpack.c.l.b16 %v3652
    %v4190 = vunpack.c.l.b16 %v3653
    %v4191 = vunpack.c.h.b16 %v3653
    %v4192 = vunpack.c.l.b16 %v3654
    %v4193 = vunpack.c.h.b16 %v3654
    %v4194 = vunpack.c.l.b16 %v3655
    %v4195 = vunpack.c.h.b16 %v3655
    %v4196 = vunpack.c.l.b16 %v3656
    %v4197 = vunpack.c.l.b16 %v3657
    %v4198 = vunpack.c.h.b16 %v3657
    %v4199 = vunpack.c.l.b16 %v3658
    %v4200 = vunpack.c.h.b16 %v3658
    %v4201 = vunpack.c.l.b16 %v3659
    %v4202 = vunpack.c.h.b16 %v3659
    %v4203 = vunpack.c.l.b16 %v3660
    %v4204 = vunpack.c.l.b16 %v3661
    %v4205 = vunpack.c.h.b16 %v3661
    %v4206 = vunpack.c.l.b16 %v3662
    %v4207 = vunpack.c.h.b16 %v3662
    %v4208 = vunpack.c.l.b16 %v3663
    %v4209 = vunpack.c.h.b16 %v3663
    %v4210 = vunpack.c.l.b16 %v3664
    %v4211 = vunpack.c.l.b16 %v3665
    %v4212 = vunpack.c.h.b16 %v3665
    %v4213 = vunpack.c.l.b16 %v3666
    %v4214 = vunpack.c.h.b16 %v3666
    %v4215 = vunpack.c.l.b16 %v3667
    %v4216 = vunpack.c.h.b16 %v3667
    %v4217 = vunpack.c.l.b16 %v3668
    %v4218 = vunpack.c.l.b16 %v3669
    %v4219 = vunpack.c.h.b16 %v3669
    %v4220 = vunpack.c.l.b16 %v3670
    %v4221 = vunpack.c.h.b16 %v3670
    %v4222 = vunpack.c.l.b16 %v3671
    %v4223 = vunpack.c.h.b16 %v3671
    %v4224 = vunpack.c.l.b16 %v3672
    %v4225 = vunpack.c.l.b16 %v3673
    %v4226 = vunpack.c.h.b16 %v3673
    %v4227 = vunpack.c.l.b16 %v3674
    %v4228 = vunpack.c.h.b16 %v3674
    %v4229 = vunpack.c.l.b16 %v3675
    %v4230 = vunpack.c.h.b16 %v3675
    %v4231 = vunpack.c.l.b16 %v3676
    %v4232 = vunpack.c.l.b16 %v3677
    %v4233 = vunpack.c.h.b16 %v3677
    %v4234 = vunpack.c.l.b16 %v3678
    %v4235 = vunpack.c.h.b16 %v3678
    %v4236 = vunpack.c.l.b16 %v3679
    %v4237 = vunpack.c.h.b16 %v3679
    %v4238 = vunpack.c.l.b16 %v3680
    %v4239 = vunpack.c.l.b16 %v3681
    %v4240 = vunpack.c.h.b16 %v3681
    %v4241 = vunpack.c.l.b16 %v3682
    %v4242 = vunpack.c.h.b16 %v3682
    %v4243 = vunpack.c.l.b16 %v3683
    %v4244 = vunpack.c.h.b16 %v3683
    %v4245 = vunpack.c.l.b16 %v3684
    %v4246 = vunpack.c.l.b16 %v3685
    %v4247 = vunpack.c.h.b16 %v3685
    %v4248 = vunpack.c.l.b16 %v3686
    %v4249 = vunpack.c.h.b16 %v3686
    %v4250 = vunpack.c.l.b16 %v3687
    %v4251 = vunpack.c.h.b16 %v3687
    %v4252 = vunpack.c.l.b16 %v3688
    %v4253 = vunpack.c.l.b16 %v3689
    %v4254 = vunpack.c.h.b16 %v3689
    %v4255 = vunpack.c.l.b16 %v3690
    %v4256 = vunpack.c.h.b16 %v3690
    %v4257 = vunpack.c.l.b16 %v3691
    %v4258 = vunpack.c.h.b16 %v3691
    %v4259 = vunpack.c.l.b16 %v3692
    %v4260 = vunpack.c.l.b16 %v3693
    %v4261 = vunpack.c.h.b16 %v3693
    %v4262 = vunpack.c.l.b16 %v3694
    %v4263 = vunpack.c.h.b16 %v3694
    %v4264 = vunpack.c.l.b16 %v3695
    %v4265 = vunpack.c.h.b16 %v3695
    %v4266 = vunpack.c.l.b16 %v3696
    %v4267 = vunpack.c.l.b16 %v3697
    %v4268 = vunpack.c.h.b16 %v3697
    %v4269 = vunpack.c.l.b16 %v3698
    %v4270 = vunpack.c.h.b16 %v3698
    %v4271 = vunpack.c.l.b16 %v3699
    %v4272 = vunpack.c.h.b16 %v3699
    %v4273 = vunpack.c.l.b16 %v3700
    %v4274 = vunpack.c.l.b16 %v3701
    %v4275 = vunpack.c.h.b16 %v3701
    %v4276 = vunpack.c.l.b16 %v3702
    %v4277 = vunpack.c.h.b16 %v3702
    %v4278 = vunpack.c.l.b16 %v3703
    %v4279 = vunpack.c.h.b16 %v3703
    %v4280 = vunpack.c.l.b16 %v3704
    %v4281 = vunpack.c.l.b16 %v3705
    %v4282 = vunpack.c.h.b16 %v3705
    %v4283 = vunpack.c.l.b16 %v3706
    %v4284 = vunpack.c.h.b16 %v3706
    %v4285 = vunpack.c.l.b16 %v3707
    %v4286 = vunpack.c.h.b16 %v3707
    %v4287 = vunpack.c.l.b16 %v3708
    %v4288 = vunpack.c.l.b16 %v3709
    %v4289 = vunpack.c.h.b16 %v3709
    %v4290 = vunpack.c.l.b16 %v3710
    %v4291 = vunpack.c.h.b16 %v3710
    %v4292 = vunpack.c.l.b16 %v3711
    %v4293 = vunpack.c.h.b16 %v3711
    %v4294 = vunpack.c.l.b16 %v3712
    %v4295 = vunpack.c.l.b16 %v3713
    %v4296 = vunpack.c.h.b16 %v3713
    %v4297 = vunpack.c.l.b16 %v3714
    %v4298 = vunpack.c.h.b16 %v3714
    %v4299 = vunpack.c.l.b16 %v3715
    %v4300 = vunpack.c.h.b16 %v3715
    %v4301 = vunpack.c.l.b16 %v3716
    %v4302 = vunpack.c.l.b16 %v3717
    %v4303 = vunpack.c.h.b16 %v3717
    %v4304 = vunpack.c.l.b16 %v3718
    %v4305 = vunpack.c.h.b16 %v3718
    %v4306 = vunpack.c.l.b16 %v3719
    %v4307 = vunpack.c.h.b16 %v3719
    %v4308 = vunpack.c.l.b16 %v3720
    %v4309 = vunpack.c.l.b16 %v3721
    %v4310 = vunpack.c.h.b16 %v3721
    %v4311 = vunpack.c.l.b16 %v3722
    %v4312 = vunpack.c.h.b16 %v3722
    %v4313 = vunpack.c.l.b16 %v3723
    %v4314 = vunpack.c.h.b16 %v3723
    %v4315 = vunpack.c.l.b16 %v3724
    %v4316 = vunpack.c.l.b16 %v3725
    %v4317 = vunpack.c.h.b16 %v3725
    %v4318 = vunpack.c.l.b16 %v3726
    %v4319 = vunpack.c.h.b16 %v3726
    %v4320 = vunpack.c.l.b16 %v3727
    %v4321 = vunpack.c.h.b16 %v3727
    %v4322 = vunpack.c.l.b16 %v3728
    %v4323 = vunpack.c.l.b16 %v3729
    %v4324 = vunpack.c.h.b16 %v3729
    %v4325 = vunpack.c.l.b16 %v3730
    %v4326 = vunpack.c.h.b16 %v3730
    %v4327 = vunpack.c.l.b16 %v3731
    %v4328 = vunpack.c.h.b16 %v3731
    %v4329 = vunpack.c.l.b16 %v3732
    %v4330 = vunpack.c.l.b16 %v3733
    %v4331 = vunpack.c.h.b16 %v3733
    %v4332 = vunpack.c.l.b16 %v3734
    %v4333 = vunpack.c.h.b16 %v3734
    %v4334 = vunpack.c.l.b16 %v3735
    %v4335 = vunpack.c.h.b16 %v3735
    %v4336 = vunpack.c.l.b16 %v3736
    %v4337 = vunpack.c.l.b16 %v3737
    %v4338 = vunpack.c.h.b16 %v3737
    %v4339 = vunpack.c.l.b16 %v3738
    %v4340 = vunpack.c.h.b16 %v3738
    %v4341 = vunpack.c.l.b16 %v3739
    %v4342 = vunpack.c.h.b16 %v3739
    %v4343 = vunpack.c.l.b16 %v3740
    %v4344 = vunpack.c.l.b16 %v3741
    %v4345 = vunpack.c.h.b16 %v3741
    %v4346 = vunpack.c.l.b16 %v3742
    %v4347 = vunpack.c.h.b16 %v3742
    %v4348 = vunpack.c.l.b16 %v3743
    %v4349 = vunpack.c.h.b16 %v3743
    %v4350 = vunpack.c.l.b16 %v3744
    %v4351 = vunpack.c.l.b16 %v3745
    %v4352 = vunpack.c.h.b16 %v3745
    %v4353 = vunpack.c.l.b16 %v3746
    %v4354 = vunpack.c.h.b16 %v3746
    %v4355 = vunpack.c.l.b16 %v3747
    %v4356 = vunpack.c.h.b16 %v3747
    %v4357 = vunpack.c.l.b16 %v3748
    %v4358 = vunpack.c.l.b16 %v3749
    %v4359 = vunpack.c.h.b16 %v3749
    %v4360 = vunpack.c.l.b16 %v3750
    %v4361 = vunpack.c.h.b16 %v3750
    %v4362 = vunpack.c.l.b16 %v3751
    %v4363 = vunpack.c.h.b16 %v3751
    %v4364 = vunpack.c.l.b16 %v3752
    %v4365 = vunpack.c.l.b16 %v3753
    %v4366 = vunpack.c.h.b16 %v3753
    %v4367 = vunpack.c.l.b16 %v3754
    %v4368 = vunpack.c.h.b16 %v3754
    %v4369 = vunpack.c.l.b16 %v3755
    %v4370 = vunpack.c.h.b16 %v3755
    %v4371 = vunpack.c.l.b16 %v3756
    %v4372 = vunpack.c.l.b16 %v3757
    %v4373 = vunpack.c.h.b16 %v3757
    %v4374 = vunpack.c.l.b16 %v3758
    %v4375 = vunpack.c.h.b16 %v3758
    %v4376 = vunpack.c.l.b16 %v3759
    %v4377 = vunpack.c.h.b16 %v3759
    %v4378 = vunpack.c.l.b16 %v3760
    %v4379 = vunpack.c.l.b16 %v3761
    %v4380 = vunpack.c.h.b16 %v3761
    %v4381 = vunpack.c.l.b16 %v3762
    %v4382 = vunpack.c.h.b16 %v3762
    %v4383 = vunpack.c.l.b16 %v3763
    %v4384 = vunpack.c.h.b16 %v3763
    %v4385 = vunpack.c.l.b16 %v3764
    %v4386 = vunpack.c.l.b16 %v3765
    %v4387 = vunpack.c.h.b16 %v3765
    %v4388 = vunpack.c.l.b16 %v3766
    %v4389 = vunpack.c.h.b16 %v3766
    %v4390 = vunpack.c.l.b16 %v3767
    %v4391 = vunpack.c.h.b16 %v3767
    %v4392 = vunpack.c.l.b16 %v3768
    %v4393 = vunpack.c.l.b16 %v3769
    %v4394 = vunpack.c.h.b16 %v3769
    %v4395 = vunpack.c.l.b16 %v3770
    %v4396 = vunpack.c.h.b16 %v3770
    %v4397 = vunpack.c.l.b16 %v3771
    %v4398 = vunpack.c.h.b16 %v3771
    %v4399 = vunpack.c.l.b16 %v3772
    %v4400 = vunpack.c.l.b16 %v3773
    %v4401 = vunpack.c.h.b16 %v3773
    %v4402 = vunpack.c.l.b16 %v3774
    %v4403 = vunpack.c.h.b16 %v3774
    %v4404 = vunpack.c.l.b16 %v3775
    %v4405 = vunpack.c.h.b16 %v3775
    %v4406 = vunpack.c.l.b16 %v3776
    %v4407 = vunpack.c.l.b16 %v3777
    %v4408 = vunpack.c.h.b16 %v3777
    %v4409 = vunpack.c.l.b16 %v3778
    %v4410 = vunpack.c.h.b16 %v3778
    %v4411 = vunpack.c.l.b16 %v3779
    %v4412 = vunpack.c.h.b16 %v3779
    %v4413 = vunpack.c.l.b16 %v3780
    %v4414 = vunpack.c.l.b16 %v3781
    %v4415 = vunpack.c.h.b16 %v3781
    %v4416 = vunpack.c.l.b16 %v3782
    %v4417 = vunpack.c.h.b16 %v3782
    %v4418 = vunpack.c.l.b16 %v3783
    %v4419 = vunpack.c.h.b16 %v3783
    %v4420 = vunpack.c.l.b16 %v3784
    %v4421 = vunpack.c.l.b16 %v3785
    %v4422 = vunpack.c.h.b16 %v3785
    %v4423 = vunpack.c.l.b16 %v3786
    %v4424 = vunpack.c.h.b16 %v3786
    %v4425 = vunpack.c.l.b16 %v3787
    %v4426 = vunpack.c.h.b16 %v3787
    %v4427 = vunpack.c.l.b16 %v3788
    %v4428 = vunpack.c.l.b16 %v3789
    %v4429 = vunpack.c.h.b16 %v3789
    %v4430 = vunpack.c.l.b16 %v3790
    %v4431 = vunpack.c.h.b16 %v3790
    %v4432 = vunpack.c.l.b16 %v3791
    %v4433 = vunpack.c.h.b16 %v3791
    %v4434 = vunpack.c.l.b16 %v3792
    %v4435 = vunpack.c.l.b16 %v3793
    %v4436 = vunpack.c.h.b16 %v3793
    %v4437 = vunpack.c.l.b16 %v3794
    %v4438 = vunpack.c.h.b16 %v3794
    %v4439 = vunpack.c.l.b16 %v3795
    %v4440 = vunpack.c.h.b16 %v3795
    %v4441 = vunpack.c.l.b16 %v3796
    %v4442 = vunpack.c.l.b16 %v3797
    %v4443 = vunpack.c.h.b16 %v3797
    %v4444 = vunpack.c.l.b16 %v3798
    %v4445 = vunpack.c.h.b16 %v3798
    %v4446 = vunpack.c.l.b16 %v3799
    %v4447 = vunpack.c.h.b16 %v3799
    %v4448 = vunpack.c.l.b16 %v3800
    %v4449 = vunpack.c.l.b16 %v3801
    %v4450 = vunpack.c.h.b16 %v3801
    %v4451 = vunpack.c.l.b16 %v3802
    %v4452 = vunpack.c.h.b16 %v3802
    %v4453 = vunpack.c.l.b16 %v3803
    %v4454 = vunpack.c.h.b16 %v3803
    %v4455 = vunpack.c.l.b16 %v3804
    %v4456 = vunpack.c.l.b16 %v3805
    %v4457 = vunpack.c.h.b16 %v3805
    %v4458 = vunpack.c.l.b16 %v3806
    %v4459 = vunpack.c.h.b16 %v3806
    %v4460 = vunpack.c.l.b16 %v3807
    %v4461 = vunpack.c.h.b16 %v3807
    %v4462 = vunpack.c.l.b16 %v3808
    %v4463 = vunpack.c.l.b16 %v3809
    %v4464 = vunpack.c.h.b16 %v3809
    %v4465 = vunpack.c.l.b16 %v3810
    %v4466 = vunpack.c.h.b16 %v3810
    %v4467 = vunpack.c.l.b16 %v3811
    %v4468 = vunpack.c.h.b16 %v3811
    %v4469 = vunpack.c.l.b16 %v3812
    %v4470 = vunpack.c.l.b16 %v3813
    %v4471 = vunpack.c.h.b16 %v3813
    %v4472 = vunpack.c.l.b16 %v3814
    %v4473 = vunpack.c.h.b16 %v3814
    %v4474 = vunpack.c.l.b16 %v3815
    %v4475 = vunpack.c.h.b16 %v3815
    %v4476 = vunpack.c.l.b16 %v3816
    %v4477 = vunpack.c.l.b16 %v3817
    %v4478 = vunpack.c.h.b16 %v3817
    %v4479 = vunpack.c.l.b16 %v3818
    %v4480 = vunpack.c.h.b16 %v3818
    %v4481 = vunpack.c.l.b16 %v3819
    %v4482 = vunpack.c.h.b16 %v3819
    %v4483 = vunpack.c.l.b16 %v3820
    %v4484 = vunpack.c.l.b16 %v3821
    %v4485 = vunpack.c.h.b16 %v3821
    %v4486 = vunpack.c.l.b16 %v3822
    %v4487 = vunpack.c.h.b16 %v3822
    %v4488 = vunpack.c.l.b16 %v3823
    %v4489 = vunpack.c.h.b16 %v3823
    %v4490 = vunpack.c.l.b16 %v3824
    %v4491 = vunpack.c.l.b16 %v3825
    %v4492 = vunpack.c.h.b16 %v3825
    %v4493 = vunpack.c.l.b16 %v3826
    %v4494 = vunpack.c.h.b16 %v3826
    %v4495 = vunpack.c.l.b16 %v3827
    %v4496 = vunpack.c.h.b16 %v3827
    %v4497 = vunpack.c.l.b16 %v3828
    %v4498 = vunpack.c.l.b16 %v3829
    %v4499 = vunpack.c.h.b16 %v3829
    %v4500 = vunpack.c.l.b16 %v3830
    %v4501 = vunpack.c.h.b16 %v3830
    %v4502 = vunpack.c.l.b16 %v3831
    %v4503 = vunpack.c.h.b16 %v3831
    %v4504 = vunpack.c.l.b16 %v3832
    %v4505 = vunpack.c.l.b16 %v3833
    %v4506 = vunpack.c.h.b16 %v3833
    %v4507 = vunpack.c.l.b16 %v3834
    %v4508 = vunpack.c.h.b16 %v3834
    %v4509 = vunpack.c.l.b16 %v3835
    %v4510 = vunpack.c.h.b16 %v3835
    %v4511 = vunpack.c.l.b16 %v3836
    %v4512 = vunpack.c.l.b16 %v3837
    %v4513 = vunpack.c.h.b16 %v3837
    %v4514 = vunpack.c.l.b16 %v3838
    %v4515 = vunpack.c.h.b16 %v3838
    %v4516 = vunpack.c.l.b16 %v3839
    %v4517 = vunpack.c.h.b16 %v3839
    %v4518 = vunpack.c.l.b16 %v3840
    %v4519 = vunpack.c.l.b16 %v3841
    %v4520 = vunpack.c.h.b16 %v3841
    %v4521 = vunpack.c.l.b16 %v3842
    %v4522 = vunpack.c.h.b16 %v3842
    %v4523 = vunpack.c.l.b16 %v3843
    %v4524 = vunpack.c.h.b16 %v3843
    %v4525 = vunpack.c.l.b16 %v3844
    %v4526 = vunpack.c.l.b16 %v3845
    %v4527 = vunpack.c.h.b16 %v3845
    %v4528 = vunpack.c.l.b16 %v3846
    %v4529 = vunpack.c.h.b16 %v3846
    %v4530 = vunpack.c.l.b16 %v3847
    %v4531 = vunpack.c.h.b16 %v3847
    %v4532 = vunpack.c.l.b16 %v3848
    %v4533 = vunpack.c.l.b16 %v3849
    %v4534 = vunpack.c.h.b16 %v3849
    %v4535 = vunpack.c.l.b16 %v3850
    %v4536 = vunpack.c.h.b16 %v3850
    %v4537 = vunpack.c.l.b16 %v3851
    %v4538 = vunpack.c.h.b16 %v3851
    %v4539 = vunpack.c.l.b16 %v3852
    %v4540 = vunpack.c.l.b16 %v3853
    %v4541 = vunpack.c.h.b16 %v3853
    %v4542 = vunpack.c.l.b16 %v3854
    %v4543 = vunpack.c.h.b16 %v3854
    %v4544 = vunpack.c.l.b16 %v3855
    %v4545 = vunpack.c.h.b16 %v3855
    %v4546 = vunpack.c.l.b16 %v3856
    %v4547 = vunpack.c.l.b16 %v3857
    %v4548 = vunpack.c.h.b16 %v3857
    %v4549 = vunpack.c.l.b16 %v3858
    %v4550 = vunpack.c.h.b16 %v3858
    %v4551 = vunpack.c.l.b16 %v3859
    %v4552 = vunpack.c.h.b16 %v3859
    %v4553 = vunpack.c.l.b16 %v3860
    %v4554 = vunpack.c.l.b16 %v3861
    %v4555 = vunpack.c.h.b16 %v3861
    %v4556 = vunpack.c.l.b16 %v3862
    %v4557 = vunpack.c.h.b16 %v3862
    %v4558 = vunpack.c.l.b16 %v3863
    %v4559 = vunpack.c.h.b16 %v3863
    %v4560 = vunpack.c.l.b16 %v3864
    %v4561 = vunpack.c.l.b16 %v3865
    %v4562 = vunpack.c.h.b16 %v3865
    %v4563 = vunpack.c.l.b16 %v3866
    %v4564 = vunpack.c.h.b16 %v3866
    %v4565 = vunpack.c.l.b16 %v3867
    %v4566 = vunpack.c.h.b16 %v3867
    %v4567 = vunpack.c.l.b16 %v3868
    %v4568 = vunpack.c.l.b16 %v3869
    %v4569 = vunpack.c.h.b16 %v3869
    %v4570 = vunpack.c.l.b16 %v3870
    %v4571 = vunpack.c.h.b16 %v3870
    %v4572 = vunpack.c.l.b16 %v3871
    %v4573 = vunpack.c.h.b16 %v3871
    %v4574 = vunpack.c.l.b16 %v3872
    %v4575 = vunpack.c.l.b16 %v3873
    %v4576 = vunpack.c.h.b16 %v3873
    %v4577 = vunpack.c.l.b16 %v3874
    %v4578 = vunpack.c.h.b16 %v3874
    %v4579 = vunpack.c.l.b16 %v3875
    %v4580 = vunpack.c.h.b16 %v3875
    %v4581 = vunpack.c.l.b16 %v3876
    %v4582 = vunpack.c.l.b16 %v3877
    %v4583 = vunpack.c.h.b16 %v3877
    %v4584 = vunpack.c.l.b16 %v3878
    %v4585 = vunpack.c.h.b16 %v3878
    %v4586 = vunpack.c.l.b16 %v3879
    %v4587 = vunpack.c.h.b16 %v3879
    %v4588 = vunpack.c.l.b16 %v3880
    %v4589 = vunpack.c.l.b16 %v3881
    %v4590 = vunpack.c.h.b16 %v3881
    %v4591 = vunpack.c.l.b16 %v3882
    %v4592 = vunpack.c.h.b16 %v3882
    %v4593 = vunpack.c.l.b16 %v3883
    %v4594 = vunpack.c.h.b16 %v3883
    %v4595 = vunpack.c.l.b16 %v3884
    %v4596 = vunpack.c.l.b16 %v3885
    %v4597 = vunpack.c.h.b16 %v3885
    %v4598 = vunpack.c.l.b16 %v3886
    %v4599 = vunpack.c.h.b16 %v3886
    %v4600 = vunpack.c.l.b16 %v3887
    %v4601 = vunpack.c.h.b16 %v3887
    %v4602 = vunpack.c.l.b16 %v3888
    %v4603 = vunpack.c.l.b16 %v3889
    %v4604 = vunpack.c.h.b16 %v3889
    %v4605 = vunpack.c.l.b16 %v3890
    %v4606 = vunpack.c.h.b16 %v3890
    %v4607 = vunpack.c.l.b16 %v3891
    %v4608 = vunpack.c.h.b16 %v3891
    %v4609 = vunpack.c.l.b16 %v3892
    %v4610 = vunpack.c.l.b16 %v3893
    %v4611 = vunpack.c.h.b16 %v3893
    %v4612 = vunpack.c.l.b16 %v3894
    %v4613 = vunpack.c.h.b16 %v3894
    %v4614 = vunpack.c.l.b16 %v3895
    %v4615 = vunpack.c.h.b16 %v3895
    %v4616 = vunpack.c.l.b16 %v3896
    %v4617 = vunpack.c.l.b16 %v3897
    %v4618 = vunpack.c.h.b16 %v3897
    %v4619 = vunpack.c.l.b16 %v3898
    %v4620 = vunpack.c.h.b16 %v3898
    %v4621 = vunpack.c.l.b16 %v3899
    %v4622 = vunpack.c.h.b16 %v3899
    %v4623 = vunpack.c.l.b16 %v3900
    %v4624 = vunpack.c.l.b16 %v3901
    %v4625 = vunpack.c.h.b16 %v3901
    %v4626 = vunpack.c.l.b16 %v3902
    %v4627 = vunpack.c.h.b16 %v3902
    %v4628 = vunpack.c.l.b16 %v3903
    %v4629 = vunpack.c.h.b16 %v3903
    %v4630 = vunpack.c.l.b16 %v3904
    %v4631 = vpack.c.b16 %v4190, %v4183
    %v4632 = vpack.c.b16 %v4191, %v4184
    %v4633 = vpack.c.b16 %v4192, %v4185
    %v4634 = vpack.c.b16 %v4193, %v4186
    %v4635 = vpack.c.b16 %v4194, %v4187
    %v4636 = vpack.c.b16 %v4195, %v4188
    %v4637 = vpack.c.b16 %v4196, %v4189
    %v4638 = vpack.c.b16 %v4204, %v4197
    %v4639 = vpack.c.b16 %v4205, %v4198
    %v4640 = vpack.c.b16 %v4206, %v4199
    %v4641 = vpack.c.b16 %v4207, %v4200
    %v4642 = vpack.c.b16 %v4208, %v4201
    %v4643 = vpack.c.b16 %v4209, %v4202
    %v4644 = vpack.c.b16 %v4210, %v4203
    %v4645 = vpack.c.b16 %v4218, %v4211
    %v4646 = vpack.c.b16 %v4219, %v4212
    %v4647 = vpack.c.b16 %v4220, %v4213
    %v4648 = vpack.c.b16 %v4221, %v4214
    %v4649 = vpack.c.b16 %v4222, %v4215
    %v4650 = vpack.c.b16 %v4223, %v4216
    %v4651 = vpack.c.b16 %v4224, %v4217
    %v4652 = vpack.c.b16 %v4232, %v4225
    %v4653 = vpack.c.b16 %v4233, %v4226
    %v4654 = vpack.c.b16 %v4234, %v4227
    %v4655 = vpack.c.b16 %v4235, %v4228
    %v4656 = vpack.c.b16 %v4236, %v4229
    %v4657 = vpack.c.b16 %v4237, %v4230
    %v4658 = vpack.c.b16 %v4238, %v4231
    %v4659 = vpack.c.b16 %v4246, %v4239
    %v4660 = vpack.c.b16 %v4247, %v4240
    %v4661 = vpack.c.b16 %v4248, %v4241
    %v4662 = vpack.c.b16 %v4249, %v4242
    %v4663 = vpack.c.b16 %v4250, %v4243
    %v4664 = vpack.c.b16 %v4251, %v4244
    %v4665 = vpack.c.b16 %v4252, %v4245
    %v4666 = vpack.c.b16 %v4260, %v4253
    %v4667 = vpack.c.b16 %v4261, %v4254
    %v4668 = vpack.c.b16 %v4262, %v4255
    %v4669 = vpack.c.b16 %v4263, %v4256
    %v4670 = vpack.c.b16 %v4264, %v4257
    %v4671 = vpack.c.b16 %v4265, %v4258
    %v4672 = vpack.c.b16 %v4266, %v4259
    %v4673 = vpack.c.b16 %v4274, %v4267
    %v4674 = vpack.c.b16 %v4275, %v4268
    %v4675 = vpack.c.b16 %v4276, %v4269
    %v4676 = vpack.c.b16 %v4277, %v4270
    %v4677 = vpack.c.b16 %v4278, %v4271
    %v4678 = vpack.c.b16 %v4279, %v4272
    %v4679 = vpack.c.b16 %v4280, %v4273
    %v4680 = vpack.c.b16 %v4288, %v4281
    %v4681 = vpack.c.b16 %v4289, %v4282
    %v4682 = vpack.c.b16 %v4290, %v4283
    %v4683 = vpack.c.b16 %v4291, %v4284
    %v4684 = vpack.c.b16 %v4292, %v4285
    %v4685 = vpack.c.b16 %v4293, %v4286
    %v4686 = vpack.c.b16 %v4294, %v4287
    %v4687 = vpack.c.b16 %v4302, %v4295
    %v4688 = vpack.c.b16 %v4303, %v4296
    %v4689 = vpack.c.b16 %v4304, %v4297
    %v4690 = vpack.c.b16 %v4305, %v4298
    %v4691 = vpack.c.b16 %v4306, %v4299
    %v4692 = vpack.c.b16 %v4307, %v4300
    %v4693 = vpack.c.b16 %v4308, %v4301
    %v4694 = vpack.c.b16 %v4316, %v4309
    %v4695 = vpack.c.b16 %v4317, %v4310
    %v4696 = vpack.c.b16 %v4318, %v4311
    %v4697 = vpack.c.b16 %v4319, %v4312
    %v4698 = vpack.c.b16 %v4320, %v4313
    %v4699 = vpack.c.b16 %v4321, %v4314
    %v4700 = vpack.c.b16 %v4322, %v4315
    %v4701 = vpack.c.b16 %v4330, %v4323
    %v4702 = vpack.c.b16 %v4331, %v4324
    %v4703 = vpack.c.b16 %v4332, %v4325
    %v4704 = vpack.c.b16 %v4333, %v4326
    %v4705 = vpack.c.b16 %v4334, %v4327
    %v4706 = vpack.c.b16 %v4335, %v4328
    %v4707 = vpack.c.b16 %v4336, %v4329
    %v4708 = vpack.c.b16 %v4344, %v4337
    %v4709 = vpack.c.b16 %v4345, %v4338
    %v4710 = vpack.c.b16 %v4346, %v4339
    %v4711 = vpack.c.b16 %v4347, %v4340
    %v4712 = vpack.c.b16 %v4348, %v4341
    %v4713 = vpack.c.b16 %v4349, %v4342
    %v4714 = vpack.c.b16 %v4350, %v4343
    %v4715 = vpack.c.b16 %v4358, %v4351
    %v4716 = vpack.c.b16 %v4359, %v4352
    %v4717 = vpack.c.b16 %v4360, %v4353
    %v4718 = vpack.c.b16 %v4361, %v4354
    %v4719 = vpack.c.b16 %v4362, %v4355
    %v4720 = vpack.c.b16 %v4363, %v4356
    %v4721 = vpack.c.b16 %v4364, %v4357
    %v4722 = vpack.c.b16 %v4372, %v4365
    %v4723 = vpack.c.b16 %v4373, %v4366
    %v4724 = vpack.c.b16 %v4374, %v4367
    %v4725 = vpack.c.b16 %v4375, %v4368
    %v4726 = vpack.c.b16 %v4376, %v4369
    %v4727 = vpack.c.b16 %v4377, %v4370
    %v4728 = vpack.c.b16 %v4378, %v4371
    %v4729 = vpack.c.b16 %v4386, %v4379
    %v4730 = vpack.c.b16 %v4387, %v4380
    %v4731 = vpack.c.b16 %v4388, %v4381
    %v4732 = vpack.c.b16 %v4389, %v4382
    %v4733 = vpack.c.b16 %v4390, %v4383
    %v4734 = vpack.c.b16 %v4391, %v4384
    %v4735 = vpack.c.b16 %v4392, %v4385
    %v4736 = vpack.c.b16 %v4400, %v4393
    %v4737 = vpack.c.b16 %v4401, %v4394
    %v4738 = vpack.c.b16 %v4402, %v4395
    %v4739 = vpack.c.b16 %v4403, %v4396
    %v4740 = vpack.c.b16 %v4404, %v4397
    %v4741 = vpack.c.b16 %v4405, %v4398
    %v4742 = vpack.c.b16 %v4406, %v4399
    %v4743 = vpack.c.b16 %v4414, %v4407
    %v4744 = vpack.c.b16 %v4415, %v4408
    %v4745 = vpack.c.b16 %v4416, %v4409
    %v4746 = vpack.c.b16 %v4417, %v4410
    %v4747 = vpack.c.b16 %v4418, %v4411
    %v4748 = vpack.c.b16 %v4419, %v4412
    %v4749 = vpack.c.b16 %v4420, %v4413
    %v4750 = vpack.c.b16 %v4428, %v4421
    %v4751 = vpack.c.b16 %v4429, %v4422
    %v4752 = vpack.c.b16 %v4430, %v4423
    %v4753 = vpack.c.b16 %v4431, %v4424
    %v4754 = vpack.c.b16 %v4432, %v4425
    %v4755 = vpack.c.b16 %v4433, %v4426
    %v4756 = vpack.c.b16 %v4434, %v4427
    %v4757 = vpack.c.b16 %v4442, %v4435
    %v4758 = vpack.c.b16 %v4443, %v4436
    %v4759 = vpack.c.b16 %v4444, %v4437
    %v4760 = vpack.c.b16 %v4445, %v4438
    %v4761 = vpack.c.b16 %v4446, %v4439
    %v4762 = vpack.c.b16 %v4447, %v4440
    %v4763 = vpack.c.b16 %v4448, %v4441
    %v4764 = vpack.c.b16 %v4456, %v4449
    %v4765 = vpack.c.b16 %v4457, %v4450
    %v4766 = vpack.c.b16 %v4458, %v4451
    %v4767 = vpack.c.b16 %v4459, %v4452
    %v4768 = vpack.c.b16 %v4460, %v4453
    %v4769 = vpack.c.b16 %v4461, %v4454
    %v4770 = vpack.c.b16 %v4462, %v4455
    %v4771 = vpack.c.b16 %v4470, %v4463
    %v4772 = vpack.c.b16 %v4471, %v4464
    %v4773 = vpack.c.b16 %v4472, %v4465
    %v4774 = vpack.c.b16 %v4473, %v4466
    %v4775 = vpack.c.b16 %v4474, %v4467
    %v4776 = vpack.c.b16 %v4475, %v4468
    %v4777 = vpack.c.b16 %v4476, %v4469
    %v4778 = vpack.c.b16 %v4484, %v4477
    %v4779 = vpack.c.b16 %v4485, %v4478
    %v4780 = vpack.c.b16 %v4486, %v4479
    %v4781 = vpack.c.b16 %v4487, %v4480
    %v4782 = vpack.c.b16 %v4488, %v4481
    %v4783 = vpack.c.b16 %v4489, %v4482
    %v4784 = vpack.c.b16 %v4490, %v4483
    %v4785 = vpack.c.b16 %v4498, %v4491
    %v4786 = vpack.c.b16 %v4499, %v4492
    %v4787 = vpack.c.b16 %v4500, %v4493
    %v4788 = vpack.c.b16 %v4501, %v4494
    %v4789 = vpack.c.b16 %v4502, %v4495
    %v4790 = vpack.c.b16 %v4503, %v4496
    %v4791 = vpack.c.b16 %v4504, %v4497
    %v4792 = vpack.c.b16 %v4512, %v4505
    %v4793 = vpack.c.b16 %v4513, %v4506
    %v4794 = vpack.c.b16 %v4514, %v4507
    %v4795 = vpack.c.b16 %v4515, %v4508
    %v4796 = vpack.c.b16 %v4516, %v4509
    %v4797 = vpack.c.b16 %v4517, %v4510
    %v4798 = vpack.c.b16 %v4518, %v4511
    %v4799 = vpack.c.b16 %v4526, %v4519
    %v4800 = vpack.c.b16 %v4527, %v4520
    %v4801 = vpack.c.b16 %v4528, %v4521
    %v4802 = vpack.c.b16 %v4529, %v4522
    %v4803 = vpack.c.b16 %v4530, %v4523
    %v4804 = vpack.c.b16 %v4531, %v4524
    %v4805 = vpack.c.b16 %v4532, %v4525
    %v4806 = vpack.c.b16 %v4540, %v4533
    %v4807 = vpack.c.b16 %v4541, %v4534
    %v4808 = vpack.c.b16 %v4542, %v4535
    %v4809 = vpack.c.b16 %v4543, %v4536
    %v4810 = vpack.c.b16 %v4544, %v4537
    %v4811 = vpack.c.b16 %v4545, %v4538
    %v4812 = vpack.c.b16 %v4546, %v4539
    %v4813 = vpack.c.b16 %v4554, %v4547
    %v4814 = vpack.c.b16 %v4555, %v4548
    %v4815 = vpack.c.b16 %v4556, %v4549
    %v4816 = vpack.c.b16 %v4557, %v4550
    %v4817 = vpack.c.b16 %v4558, %v4551
    %v4818 = vpack.c.b16 %v4559, %v4552
    %v4819 = vpack.c.b16 %v4560, %v4553
    %v4820 = vpack.c.b16 %v4568, %v4561
    %v4821 = vpack.c.b16 %v4569, %v4562
    %v4822 = vpack.c.b16 %v4570, %v4563
    %v4823 = vpack.c.b16 %v4571, %v4564
    %v4824 = vpack.c.b16 %v4572, %v4565
    %v4825 = vpack.c.b16 %v4573, %v4566
    %v4826 = vpack.c.b16 %v4574, %v4567
    %v4827 = vpack.c.b16 %v4582, %v4575
    %v4828 = vpack.c.b16 %v4583, %v4576
    %v4829 = vpack.c.b16 %v4584, %v4577
    %v4830 = vpack.c.b16 %v4585, %v4578
    %v4831 = vpack.c.b16 %v4586, %v4579
    %v4832 = vpack.c.b16 %v4587, %v4580
    %v4833 = vpack.c.b16 %v4588, %v4581
    %v4834 = vpack.c.b16 %v4596, %v4589
    %v4835 = vpack.c.b16 %v4597, %v4590
    %v4836 = vpack.c.b16 %v4598, %v4591
    %v4837 = vpack.c.b16 %v4599, %v4592
    %v4838 = vpack.c.b16 %v4600, %v4593
    %v4839 = vpack.c.b16 %v4601, %v4594
    %v4840 = vpack.c.b16 %v4602, %v4595
    %v4841 = vpack.c.b16 %v4610, %v4603
    %v4842 = vpack.c.b16 %v4611, %v4604
    %v4843 = vpack.c.b16 %v4612, %v4605
    %v4844 = vpack.c.b16 %v4613, %v4606
    %v4845 = vpack.c.b16 %v4614, %v4607
    %v4846 = vpack.c.b16 %v4615, %v4608
    %v4847 = vpack.c.b16 %v4616, %v4609
    %v4848 = vpack.c.b16 %v4624, %v4617
    %v4849 = vpack.c.b16 %v4625, %v4618
    %v4850 = vpack.c.b16 %v4626, %v4619
    %v4851 = vpack.c.b16 %v4627, %v4620
    %v4852 = vpack.c.b16 %v4628, %v4621
    %v4853 = vpack.c.b16 %v4629, %v4622
    %v4854 = vpack.c.b16 %v4630, %v4623
    %5079 = vmatpush.bf16.msra.mxu0 %v4680
    %5080 = vmatpush.bf16.msra.mxu0 %v4673
    %5081 = vmatpush.bf16.msra.mxu0 %v4666
    %5082 = vmatpush.bf16.msra.mxu0 %v4659
    %5083 = vmatpush.bf16.msra.mxu0 %v4652
    %5084 = vmatpush.bf16.msra.mxu0 %v4645
    %5085 = vmatpush.bf16.msra.mxu0 %v4638
    %5086 = vmatpush.bf16.msra.mxu0 %v4631
    %5087 = vmatmul.bf16.gmra.mxu0 %v3916
    %v5088 = vpop.f32.mrf.mxu0
    %v5089 = vadd.f32 %v3920, %v5088
    %v5090 = vpop.f32.mrf.mxu0
    %5091 = vdwg.mxu0
    %5092 = vmatpush.bf16.msra.mxu0 %v4736
    %5093 = vmatpush.bf16.msra.mxu0 %v4729
    %5094 = vmatpush.bf16.msra.mxu0 %v4722
    %5095 = vmatpush.bf16.msra.mxu0 %v4715
    %5096 = vmatpush.bf16.msra.mxu0 %v4708
    %5097 = vmatpush.bf16.msra.mxu0 %v4701
    %5098 = vmatpush.bf16.msra.mxu0 %v4694
    %5099 = vmatpush.bf16.msra.mxu0 %v4687
    %5100 = vmatmul.bf16.gmra.mxu0 %v3917
    %v5101 = vpop.f32.mrf.mxu0
    %v5102 = vadd.f32 %v5089, %v5101
    %v5103 = vpop.f32.mrf.mxu0
    %5104 = vdwg.mxu0
    %5105 = vmatpush.bf16.msra.mxu0 %v4792
    %5106 = vmatpush.bf16.msra.mxu0 %v4785
    %5107 = vmatpush.bf16.msra.mxu0 %v4778
    %5108 = vmatpush.bf16.msra.mxu0 %v4771
    %5109 = vmatpush.bf16.msra.mxu0 %v4764
    %5110 = vmatpush.bf16.msra.mxu0 %v4757
    %5111 = vmatpush.bf16.msra.mxu0 %v4750
    %5112 = vmatpush.bf16.msra.mxu0 %v4743
    %5113 = vmatmul.bf16.gmra.mxu0 %v3918
    %v5114 = vpop.f32.mrf.mxu0
    %v5115 = vadd.f32 %v5102, %v5114
    %v5116 = vpop.f32.mrf.mxu0
    %5117 = vdwg.mxu0
    %5118 = vmatpush.bf16.msra.mxu0 %v4848
    %5119 = vmatpush.bf16.msra.mxu0 %v4841
    %5120 = vmatpush.bf16.msra.mxu0 %v4834
    %5121 = vmatpush.bf16.msra.mxu0 %v4827
    %5122 = vmatpush.bf16.msra.mxu0 %v4820
    %5123 = vmatpush.bf16.msra.mxu0 %v4813
    %5124 = vmatpush.bf16.msra.mxu0 %v4806
    %5125 = vmatpush.bf16.msra.mxu0 %v4799
    %5126 = vmatmul.bf16.gmra.mxu0 %v3919
    %v5127 = vpop.f32.mrf.mxu0
    %v5128 = vadd.f32 %v5115, %v5127
    %v5129 = vpop.f32.mrf.mxu0
    %5130 = vdwg.mxu0
    %5131 = vmatpush.bf16.msra.mxu0 %v4681
    %5132 = vmatpush.bf16.msra.mxu0 %v4674
    %5133 = vmatpush.bf16.msra.mxu0 %v4667
    %5134 = vmatpush.bf16.msra.mxu0 %v4660
    %5135 = vmatpush.bf16.msra.mxu0 %v4653
    %5136 = vmatpush.bf16.msra.mxu0 %v4646
    %5137 = vmatpush.bf16.msra.mxu0 %v4639
    %5138 = vmatpush.bf16.msra.mxu0 %v4632
    %5139 = vmatmul.bf16.gmra.mxu0 %v3916
    %v5140 = vpop.f32.mrf.mxu0
    %v5141 = vadd.f32 %v3921, %v5140
    %v5142 = vpop.f32.mrf.mxu0
    %5143 = vdwg.mxu0
    %5144 = vmatpush.bf16.msra.mxu0 %v4737
    %5145 = vmatpush.bf16.msra.mxu0 %v4730
    %5146 = vmatpush.bf16.msra.mxu0 %v4723
    %5147 = vmatpush.bf16.msra.mxu0 %v4716
    %5148 = vmatpush.bf16.msra.mxu0 %v4709
    %5149 = vmatpush.bf16.msra.mxu0 %v4702
    %5150 = vmatpush.bf16.msra.mxu0 %v4695
    %5151 = vmatpush.bf16.msra.mxu0 %v4688
    %5152 = vmatmul.bf16.gmra.mxu0 %v3917
    %v5153 = vpop.f32.mrf.mxu0
    %v5154 = vadd.f32 %v5141, %v5153
    %v5155 = vpop.f32.mrf.mxu0
    %5156 = vdwg.mxu0
    %5157 = vmatpush.bf16.msra.mxu0 %v4793
    %5158 = vmatpush.bf16.msra.mxu0 %v4786
    %5159 = vmatpush.bf16.msra.mxu0 %v4779
    %5160 = vmatpush.bf16.msra.mxu0 %v4772
    %5161 = vmatpush.bf16.msra.mxu0 %v4765
    %5162 = vmatpush.bf16.msra.mxu0 %v4758
    %5163 = vmatpush.bf16.msra.mxu0 %v4751
    %5164 = vmatpush.bf16.msra.mxu0 %v4744
    %5165 = vmatmul.bf16.gmra.mxu0 %v3918
    %v5166 = vpop.f32.mrf.mxu0
    %v5167 = vadd.f32 %v5154, %v5166
    %v5168 = vpop.f32.mrf.mxu0
    %5169 = vdwg.mxu0
    %5170 = vmatpush.bf16.msra.mxu0 %v4849
    %5171 = vmatpush.bf16.msra.mxu0 %v4842
    %5172 = vmatpush.bf16.msra.mxu0 %v4835
    %5173 = vmatpush.bf16.msra.mxu0 %v4828
    %5174 = vmatpush.bf16.msra.mxu0 %v4821
    %5175 = vmatpush.bf16.msra.mxu0 %v4814
    %5176 = vmatpush.bf16.msra.mxu0 %v4807
    %5177 = vmatpush.bf16.msra.mxu0 %v4800
    %5178 = vmatmul.bf16.gmra.mxu0 %v3919
    %v5179 = vpop.f32.mrf.mxu0
    %v5180 = vadd.f32 %v5167, %v5179
    %v5181 = vpop.f32.mrf.mxu0
    %5182 = vdwg.mxu0
    %5183 = vmatpush.bf16.msra.mxu0 %v4682
    %5184 = vmatpush.bf16.msra.mxu0 %v4675
    %5185 = vmatpush.bf16.msra.mxu0 %v4668
    %5186 = vmatpush.bf16.msra.mxu0 %v4661
    %5187 = vmatpush.bf16.msra.mxu0 %v4654
    %5188 = vmatpush.bf16.msra.mxu0 %v4647
    %5189 = vmatpush.bf16.msra.mxu0 %v4640
    %5190 = vmatpush.bf16.msra.mxu0 %v4633
    %5191 = vmatmul.bf16.gmra.mxu0 %v3916
    %v5192 = vpop.f32.mrf.mxu0
    %v5193 = vadd.f32 %v3922, %v5192
    %v5194 = vpop.f32.mrf.mxu0
    %5195 = vdwg.mxu0
    %5196 = vmatpush.bf16.msra.mxu0 %v4738
    %5197 = vmatpush.bf16.msra.mxu0 %v4731
    %5198 = vmatpush.bf16.msra.mxu0 %v4724
    %5199 = vmatpush.bf16.msra.mxu0 %v4717
    %5200 = vmatpush.bf16.msra.mxu0 %v4710
    %5201 = vmatpush.bf16.msra.mxu0 %v4703
    %5202 = vmatpush.bf16.msra.mxu0 %v4696
    %5203 = vmatpush.bf16.msra.mxu0 %v4689
    %5204 = vmatmul.bf16.gmra.mxu0 %v3917
    %v5205 = vpop.f32.mrf.mxu0
    %v5206 = vadd.f32 %v5193, %v5205
    %v5207 = vpop.f32.mrf.mxu0
    %5208 = vdwg.mxu0
    %5209 = vmatpush.bf16.msra.mxu0 %v4794
    %5210 = vmatpush.bf16.msra.mxu0 %v4787
    %5211 = vmatpush.bf16.msra.mxu0 %v4780
    %5212 = vmatpush.bf16.msra.mxu0 %v4773
    %5213 = vmatpush.bf16.msra.mxu0 %v4766
    %5214 = vmatpush.bf16.msra.mxu0 %v4759
    %5215 = vmatpush.bf16.msra.mxu0 %v4752
    %5216 = vmatpush.bf16.msra.mxu0 %v4745
    %5217 = vmatmul.bf16.gmra.mxu0 %v3918
    %v5218 = vpop.f32.mrf.mxu0
    %v5219 = vadd.f32 %v5206, %v5218
    %v5220 = vpop.f32.mrf.mxu0
    %5221 = vdwg.mxu0
    %5222 = vmatpush.bf16.msra.mxu0 %v4850
    %5223 = vmatpush.bf16.msra.mxu0 %v4843
    %5224 = vmatpush.bf16.msra.mxu0 %v4836
    %5225 = vmatpush.bf16.msra.mxu0 %v4829
    %5226 = vmatpush.bf16.msra.mxu0 %v4822
    %5227 = vmatpush.bf16.msra.mxu0 %v4815
    %5228 = vmatpush.bf16.msra.mxu0 %v4808
    %5229 = vmatpush.bf16.msra.mxu0 %v4801
    %5230 = vmatmul.bf16.gmra.mxu0 %v3919
    %v5231 = vpop.f32.mrf.mxu0
    %v5232 = vadd.f32 %v5219, %v5231
    %v5233 = vpop.f32.mrf.mxu0
    %5234 = vdwg.mxu0
    %5235 = vmatpush.bf16.msra.mxu0 %v4683
    %5236 = vmatpush.bf16.msra.mxu0 %v4676
    %5237 = vmatpush.bf16.msra.mxu0 %v4669
    %5238 = vmatpush.bf16.msra.mxu0 %v4662
    %5239 = vmatpush.bf16.msra.mxu0 %v4655
    %5240 = vmatpush.bf16.msra.mxu0 %v4648
    %5241 = vmatpush.bf16.msra.mxu0 %v4641
    %5242 = vmatpush.bf16.msra.mxu0 %v4634
    %5243 = vmatmul.bf16.gmra.mxu0 %v3916
    %v5244 = vpop.f32.mrf.mxu0
    %v5245 = vadd.f32 %v3923, %v5244
    %v5246 = vpop.f32.mrf.mxu0
    %5247 = vdwg.mxu0
    %5248 = vmatpush.bf16.msra.mxu0 %v4739
    %5249 = vmatpush.bf16.msra.mxu0 %v4732
    %5250 = vmatpush.bf16.msra.mxu0 %v4725
    %5251 = vmatpush.bf16.msra.mxu0 %v4718
    %5252 = vmatpush.bf16.msra.mxu0 %v4711
    %5253 = vmatpush.bf16.msra.mxu0 %v4704
    %5254 = vmatpush.bf16.msra.mxu0 %v4697
    %5255 = vmatpush.bf16.msra.mxu0 %v4690
    %5256 = vmatmul.bf16.gmra.mxu0 %v3917
    %v5257 = vpop.f32.mrf.mxu0
    %v5258 = vadd.f32 %v5245, %v5257
    %v5259 = vpop.f32.mrf.mxu0
    %5260 = vdwg.mxu0
    %5261 = vmatpush.bf16.msra.mxu0 %v4795
    %5262 = vmatpush.bf16.msra.mxu0 %v4788
    %5263 = vmatpush.bf16.msra.mxu0 %v4781
    %5264 = vmatpush.bf16.msra.mxu0 %v4774
    %5265 = vmatpush.bf16.msra.mxu0 %v4767
    %5266 = vmatpush.bf16.msra.mxu0 %v4760
    %5267 = vmatpush.bf16.msra.mxu0 %v4753
    %5268 = vmatpush.bf16.msra.mxu0 %v4746
    %5269 = vmatmul.bf16.gmra.mxu0 %v3918
    %v5270 = vpop.f32.mrf.mxu0
    %v5271 = vadd.f32 %v5258, %v5270
    %v5272 = vpop.f32.mrf.mxu0
    %5273 = vdwg.mxu0
    %5274 = vmatpush.bf16.msra.mxu0 %v4851
    %5275 = vmatpush.bf16.msra.mxu0 %v4844
    %5276 = vmatpush.bf16.msra.mxu0 %v4837
    %5277 = vmatpush.bf16.msra.mxu0 %v4830
    %5278 = vmatpush.bf16.msra.mxu0 %v4823
    %5279 = vmatpush.bf16.msra.mxu0 %v4816
    %5280 = vmatpush.bf16.msra.mxu0 %v4809
    %5281 = vmatpush.bf16.msra.mxu0 %v4802
    %5282 = vmatmul.bf16.gmra.mxu0 %v3919
    %v5283 = vpop.f32.mrf.mxu0
    %v5284 = vadd.f32 %v5271, %v5283
    %v5285 = vpop.f32.mrf.mxu0
    %5286 = vdwg.mxu0
    %5287 = vmatpush.bf16.msra.mxu0 %v4684
    %5288 = vmatpush.bf16.msra.mxu0 %v4677
    %5289 = vmatpush.bf16.msra.mxu0 %v4670
    %5290 = vmatpush.bf16.msra.mxu0 %v4663
    %5291 = vmatpush.bf16.msra.mxu0 %v4656
    %5292 = vmatpush.bf16.msra.mxu0 %v4649
    %5293 = vmatpush.bf16.msra.mxu0 %v4642
    %5294 = vmatpush.bf16.msra.mxu0 %v4635
    %5295 = vmatmul.bf16.gmra.mxu0 %v3916
    %v5296 = vpop.f32.mrf.mxu0
    %v5297 = vadd.f32 %v3924, %v5296
    %v5298 = vpop.f32.mrf.mxu0
    %5299 = vdwg.mxu0
    %5300 = vmatpush.bf16.msra.mxu0 %v4740
    %5301 = vmatpush.bf16.msra.mxu0 %v4733
    %5302 = vmatpush.bf16.msra.mxu0 %v4726
    %5303 = vmatpush.bf16.msra.mxu0 %v4719
    %5304 = vmatpush.bf16.msra.mxu0 %v4712
    %5305 = vmatpush.bf16.msra.mxu0 %v4705
    %5306 = vmatpush.bf16.msra.mxu0 %v4698
    %5307 = vmatpush.bf16.msra.mxu0 %v4691
    %5308 = vmatmul.bf16.gmra.mxu0 %v3917
    %v5309 = vpop.f32.mrf.mxu0
    %v5310 = vadd.f32 %v5297, %v5309
    %v5311 = vpop.f32.mrf.mxu0
    %5312 = vdwg.mxu0
    %5313 = vmatpush.bf16.msra.mxu0 %v4796
    %5314 = vmatpush.bf16.msra.mxu0 %v4789
    %5315 = vmatpush.bf16.msra.mxu0 %v4782
    %5316 = vmatpush.bf16.msra.mxu0 %v4775
    %5317 = vmatpush.bf16.msra.mxu0 %v4768
    %5318 = vmatpush.bf16.msra.mxu0 %v4761
    %5319 = vmatpush.bf16.msra.mxu0 %v4754
    %5320 = vmatpush.bf16.msra.mxu0 %v4747
    %5321 = vmatmul.bf16.gmra.mxu0 %v3918
    %v5322 = vpop.f32.mrf.mxu0
    %v5323 = vadd.f32 %v5310, %v5322
    %v5324 = vpop.f32.mrf.mxu0
    %5325 = vdwg.mxu0
    %5326 = vmatpush.bf16.msra.mxu0 %v4852
    %5327 = vmatpush.bf16.msra.mxu0 %v4845
    %5328 = vmatpush.bf16.msra.mxu0 %v4838
    %5329 = vmatpush.bf16.msra.mxu0 %v4831
    %5330 = vmatpush.bf16.msra.mxu0 %v4824
    %5331 = vmatpush.bf16.msra.mxu0 %v4817
    %5332 = vmatpush.bf16.msra.mxu0 %v4810
    %5333 = vmatpush.bf16.msra.mxu0 %v4803
    %5334 = vmatmul.bf16.gmra.mxu0 %v3919
    %v5335 = vpop.f32.mrf.mxu0
    %v5336 = vadd.f32 %v5323, %v5335
    %v5337 = vpop.f32.mrf.mxu0
    %5338 = vdwg.mxu0
    %5339 = vmatpush.bf16.msra.mxu0 %v4685
    %5340 = vmatpush.bf16.msra.mxu0 %v4678
    %5341 = vmatpush.bf16.msra.mxu0 %v4671
    %5342 = vmatpush.bf16.msra.mxu0 %v4664
    %5343 = vmatpush.bf16.msra.mxu0 %v4657
    %5344 = vmatpush.bf16.msra.mxu0 %v4650
    %5345 = vmatpush.bf16.msra.mxu0 %v4643
    %5346 = vmatpush.bf16.msra.mxu0 %v4636
    %5347 = vmatmul.bf16.gmra.mxu0 %v3916
    %v5348 = vpop.f32.mrf.mxu0
    %v5349 = vadd.f32 %v3925, %v5348
    %v5350 = vpop.f32.mrf.mxu0
    %5351 = vdwg.mxu0
    %5352 = vmatpush.bf16.msra.mxu0 %v4741
    %5353 = vmatpush.bf16.msra.mxu0 %v4734
    %5354 = vmatpush.bf16.msra.mxu0 %v4727
    %5355 = vmatpush.bf16.msra.mxu0 %v4720
    %5356 = vmatpush.bf16.msra.mxu0 %v4713
    %5357 = vmatpush.bf16.msra.mxu0 %v4706
    %5358 = vmatpush.bf16.msra.mxu0 %v4699
    %5359 = vmatpush.bf16.msra.mxu0 %v4692
    %5360 = vmatmul.bf16.gmra.mxu0 %v3917
    %v5361 = vpop.f32.mrf.mxu0
    %v5362 = vadd.f32 %v5349, %v5361
    %v5363 = vpop.f32.mrf.mxu0
    %5364 = vdwg.mxu0
    %5365 = vmatpush.bf16.msra.mxu0 %v4797
    %5366 = vmatpush.bf16.msra.mxu0 %v4790
    %5367 = vmatpush.bf16.msra.mxu0 %v4783
    %5368 = vmatpush.bf16.msra.mxu0 %v4776
    %5369 = vmatpush.bf16.msra.mxu0 %v4769
    %5370 = vmatpush.bf16.msra.mxu0 %v4762
    %5371 = vmatpush.bf16.msra.mxu0 %v4755
    %5372 = vmatpush.bf16.msra.mxu0 %v4748
    %5373 = vmatmul.bf16.gmra.mxu0 %v3918
    %v5374 = vpop.f32.mrf.mxu0
    %v5375 = vadd.f32 %v5362, %v5374
    %v5376 = vpop.f32.mrf.mxu0
    %5377 = vdwg.mxu0
    %5378 = vmatpush.bf16.msra.mxu0 %v4853
    %5379 = vmatpush.bf16.msra.mxu0 %v4846
    %5380 = vmatpush.bf16.msra.mxu0 %v4839
    %5381 = vmatpush.bf16.msra.mxu0 %v4832
    %5382 = vmatpush.bf16.msra.mxu0 %v4825
    %5383 = vmatpush.bf16.msra.mxu0 %v4818
    %5384 = vmatpush.bf16.msra.mxu0 %v4811
    %5385 = vmatpush.bf16.msra.mxu0 %v4804
    %5386 = vmatmul.bf16.gmra.mxu0 %v3919
    %v5387 = vpop.f32.mrf.mxu0
    %v5388 = vadd.f32 %v5375, %v5387
    %v5389 = vpop.f32.mrf.mxu0
    %5390 = vdwg.mxu0
    %5391 = vmatpush.bf16.msra.mxu0 %v4686
    %5392 = vmatpush.bf16.msra.mxu0 %v4679
    %5393 = vmatpush.bf16.msra.mxu0 %v4672
    %5394 = vmatpush.bf16.msra.mxu0 %v4665
    %5395 = vmatpush.bf16.msra.mxu0 %v4658
    %5396 = vmatpush.bf16.msra.mxu0 %v4651
    %5397 = vmatpush.bf16.msra.mxu0 %v4644
    %5398 = vmatpush.bf16.msra.mxu0 %v4637
    %5399 = vmatmul.bf16.gmra.mxu0 %v3916
    %v5400 = vpop.f32.mrf.mxu0
    %v5401 = vadd.f32 %v3926, %v5400
    %v5402 = vpop.f32.mrf.mxu0
    %5403 = vdwg.mxu0
    %5404 = vmatpush.bf16.msra.mxu0 %v4742
    %5405 = vmatpush.bf16.msra.mxu0 %v4735
    %5406 = vmatpush.bf16.msra.mxu0 %v4728
    %5407 = vmatpush.bf16.msra.mxu0 %v4721
    %5408 = vmatpush.bf16.msra.mxu0 %v4714
    %5409 = vmatpush.bf16.msra.mxu0 %v4707
    %5410 = vmatpush.bf16.msra.mxu0 %v4700
    %5411 = vmatpush.bf16.msra.mxu0 %v4693
    %5412 = vmatmul.bf16.gmra.mxu0 %v3917
    %v5413 = vpop.f32.mrf.mxu0
    %v5414 = vadd.f32 %v5401, %v5413
    %v5415 = vpop.f32.mrf.mxu0
    %5416 = vdwg.mxu0
    %5417 = vmatpush.bf16.msra.mxu0 %v4798
    %5418 = vmatpush.bf16.msra.mxu0 %v4791
    %5419 = vmatpush.bf16.msra.mxu0 %v4784
    %5420 = vmatpush.bf16.msra.mxu0 %v4777
    %5421 = vmatpush.bf16.msra.mxu0 %v4770
    %5422 = vmatpush.bf16.msra.mxu0 %v4763
    %5423 = vmatpush.bf16.msra.mxu0 %v4756
    %5424 = vmatpush.bf16.msra.mxu0 %v4749
    %5425 = vmatmul.bf16.gmra.mxu0 %v3918
    %v5426 = vpop.f32.mrf.mxu0
    %v5427 = vadd.f32 %v5414, %v5426
    %v5428 = vpop.f32.mrf.mxu0
    %5429 = vdwg.mxu0
    %5430 = vmatpush.bf16.msra.mxu0 %v4854
    %5431 = vmatpush.bf16.msra.mxu0 %v4847
    %5432 = vmatpush.bf16.msra.mxu0 %v4840
    %5433 = vmatpush.bf16.msra.mxu0 %v4833
    %5434 = vmatpush.bf16.msra.mxu0 %v4826
    %5435 = vmatpush.bf16.msra.mxu0 %v4819
    %5436 = vmatpush.bf16.msra.mxu0 %v4812
    %5437 = vmatpush.bf16.msra.mxu0 %v4805
    %5438 = vmatmul.bf16.gmra.mxu0 %v3919
    %v5439 = vpop.f32.mrf.mxu0
    %v5440 = vadd.f32 %v5427, %v5439
    %v5441 = vpop.f32.mrf.mxu0
    %5442 = vdwg.mxu0
    %vm5443 = vcmp.gt.f32.partialorder %v5128, 0.0
    %vm5444 = vcmp.gt.f32.partialorder %v5180, 0.0
    %vm5445 = vcmp.gt.f32.partialorder %v5232, 0.0
    %vm5446 = vcmp.gt.f32.partialorder %v5284, 0.0
    %vm5447 = vcmp.gt.f32.partialorder %v5336, 0.0
    %vm5448 = vcmp.gt.f32.partialorder %v5388, 0.0
    %vm5449 = vcmp.gt.f32.partialorder %v5440, 0.0
    %v5450 = vmul.f32 %v5128, 1.442695
    %v5451 = vpow.pop %v5450
    %v5452 = vmul.f32 %v5180, 1.442695
    %v5453 = vpow.pop %v5452
    %v5454 = vmul.f32 %v5232, 1.442695
    %v5455 = vpow.pop %v5454
    %v5456 = vmul.f32 %v5284, 1.442695
    %v5457 = vpow.pop %v5456
    %v5458 = vmul.f32 %v5336, 1.442695
    %v5459 = vpow.pop %v5458
    %v5460 = vmul.f32 %v5388, 1.442695
    %v5461 = vpow.pop %v5460
    %v5462 = vmul.f32 %v5440, 1.442695
    %v5463 = vpow.pop %v5462
    %v5464 = vsub.f32 %v5451, 1.0
    %v5465 = vsub.f32 %v5453, 1.0
    %v5466 = vsub.f32 %v5455, 1.0
    %v5467 = vsub.f32 %v5457, 1.0
    %v5468 = vsub.f32 %v5459, 1.0
    %v5469 = vsub.f32 %v5461, 1.0
    %v5470 = vsub.f32 %v5463, 1.0
    %v5471 = vmul.f32 %v5464, 1.6732632
    %v5472 = vmul.f32 %v5465, 1.6732632
    %v5473 = vmul.f32 %v5466, 1.6732632
    %v5474 = vmul.f32 %v5467, 1.6732632
    %v5475 = vmul.f32 %v5468, 1.6732632
    %v5476 = vmul.f32 %v5469, 1.6732632
    %v5477 = vmul.f32 %v5470, 1.6732632
    %v5478 = vsel %vm5443, %v5128, %v5471
    %v5479 = vsel %vm5444, %v5180, %v5472
    %v5480 = vsel %vm5445, %v5232, %v5473
    %v5481 = vsel %vm5446, %v5284, %v5474
    %v5482 = vsel %vm5447, %v5336, %v5475
    %v5483 = vsel %vm5448, %v5388, %v5476
    %v5484 = vsel %vm5449, %v5440, %v5477
    %v5485 = vmul.f32 %v5478, 1.050701
    %v5486 = vmul.f32 %v5479, 1.050701
    %v5487 = vmul.f32 %v5480, 1.050701
    %v5488 = vmul.f32 %v5481, 1.050701
    %v5489 = vmul.f32 %v5482, 1.050701
    %v5490 = vmul.f32 %v5483, 1.050701
    %v5491 = vmul.f32 %v5484, 1.050701
    %v5492 = vld [vmem:[#allocation2 + $0xa10] sm:$0xff]
    %v5493 = vld [vmem:[#allocation2 + $0xa18] sm:$0xff]
    %v5494 = vld [vmem:[#allocation2 + $0xa20] sm:$0xff]
    %v5495 = vld [vmem:[#allocation2 + $0xa28] sm:$0xf]
    %v5496 = vld [vmem:[#allocation2 + $0xa2c] sm:$0x2]
    %v5497 = vunpack.c.l.bf16 %v5496
    %v5498 = vpack.c.bf16 %v5485, %v5485
    %v5499 = vpack.c.bf16 %v5486, %v5486
    %v5500 = vpack.c.bf16 %v5487, %v5487
    %v5501 = vpack.c.bf16 %v5488, %v5488
    %v5502 = vpack.c.bf16 %v5489, %v5489
    %v5503 = vpack.c.bf16 %v5490, %v5490
    %v5504 = vpack.c.bf16 %v5491, %v5491
    %v5505 = vperm.slane %v5497, 2
    %v5510 = vunpack.c.l.b16 %v5492
    %v5511 = vunpack.c.h.b16 %v5492
    %v5512 = vunpack.c.l.b16 %v5493
    %v5513 = vunpack.c.h.b16 %v5493
    %v5514 = vunpack.c.l.b16 %v5494
    %v5515 = vunpack.c.h.b16 %v5494
    %v5516 = vunpack.c.l.b16 %v5495
    %v5517 = vpack.c.b16 %v5510, %v5510
    %v5518 = vpack.c.b16 %v5511, %v5511
    %v5519 = vpack.c.b16 %v5512, %v5512
    %v5520 = vpack.c.b16 %v5513, %v5513
    %v5521 = vpack.c.b16 %v5514, %v5514
    %v5522 = vpack.c.b16 %v5515, %v5515
    %v5523 = vpack.c.b16 %v5516, %v5516
    %5531 = vmatpush.bf16.xpose.msra.mxu0 0
    %5532 = vmatpush.bf16.xpose.msra.mxu0 0
    %5533 = vmatpush.bf16.xpose.msra.mxu0 0
    %5534 = vmatpush.bf16.xpose.msra.mxu0 0
    %5535 = vmatpush.bf16.xpose.msra.mxu0 0
    %5536 = vmatpush.bf16.xpose.msra.mxu0 0
    %5537 = vmatpush.bf16.xpose.msra.mxu0 0
    %5538 = vmatpush.bf16.xpose.msra.mxu0 %v5517
    %5539 = vmatmul.bf16.gmra.mxu0 %v5498
    %v5540 = vpop.f32.mrf.mxu0
    %v5541 = vadd.f32 %v5505, %v5540
    %v5542 = vpop.f32.mrf.mxu0
    %5543 = vdwg.mxu0
    %5544 = vmatpush.bf16.xpose.msra.mxu0 0
    %5545 = vmatpush.bf16.xpose.msra.mxu0 0
    %5546 = vmatpush.bf16.xpose.msra.mxu0 0
    %5547 = vmatpush.bf16.xpose.msra.mxu0 0
    %5548 = vmatpush.bf16.xpose.msra.mxu0 0
    %5549 = vmatpush.bf16.xpose.msra.mxu0 0
    %5550 = vmatpush.bf16.xpose.msra.mxu0 0
    %5551 = vmatpush.bf16.xpose.msra.mxu0 %v5518
    %5552 = vmatmul.bf16.gmra.mxu0 %v5499
    %v5553 = vpop.f32.mrf.mxu0
    %v5554 = vadd.f32 %v5541, %v5553
    %v5555 = vpop.f32.mrf.mxu0
    %5556 = vdwg.mxu0
    %5557 = vmatpush.bf16.xpose.msra.mxu0 0
    %5558 = vmatpush.bf16.xpose.msra.mxu0 0
    %5559 = vmatpush.bf16.xpose.msra.mxu0 0
    %5560 = vmatpush.bf16.xpose.msra.mxu0 0
    %5561 = vmatpush.bf16.xpose.msra.mxu0 0
    %5562 = vmatpush.bf16.xpose.msra.mxu0 0
    %5563 = vmatpush.bf16.xpose.msra.mxu0 0
    %5564 = vmatpush.bf16.xpose.msra.mxu0 %v5519
    %5565 = vmatmul.bf16.gmra.mxu0 %v5500
    %v5566 = vpop.f32.mrf.mxu0
    %v5567 = vadd.f32 %v5554, %v5566
    %v5568 = vpop.f32.mrf.mxu0
    %5569 = vdwg.mxu0
    %5570 = vmatpush.bf16.xpose.msra.mxu0 0
    %5571 = vmatpush.bf16.xpose.msra.mxu0 0
    %5572 = vmatpush.bf16.xpose.msra.mxu0 0
    %5573 = vmatpush.bf16.xpose.msra.mxu0 0
    %5574 = vmatpush.bf16.xpose.msra.mxu0 0
    %5575 = vmatpush.bf16.xpose.msra.mxu0 0
    %5576 = vmatpush.bf16.xpose.msra.mxu0 0
    %5577 = vmatpush.bf16.xpose.msra.mxu0 %v5520
    %5578 = vmatmul.bf16.gmra.mxu0 %v5501
    %v5579 = vpop.f32.mrf.mxu0
    %v5580 = vadd.f32 %v5567, %v5579
    %v5581 = vpop.f32.mrf.mxu0
    %5582 = vdwg.mxu0
    %5583 = vmatpush.bf16.xpose.msra.mxu0 0
    %5584 = vmatpush.bf16.xpose.msra.mxu0 0
    %5585 = vmatpush.bf16.xpose.msra.mxu0 0
    %5586 = vmatpush.bf16.xpose.msra.mxu0 0
    %5587 = vmatpush.bf16.xpose.msra.mxu0 0
    %5588 = vmatpush.bf16.xpose.msra.mxu0 0
    %5589 = vmatpush.bf16.xpose.msra.mxu0 0
    %5590 = vmatpush.bf16.xpose.msra.mxu0 %v5521
    %5591 = vmatmul.bf16.gmra.mxu0 %v5502
    %v5592 = vpop.f32.mrf.mxu0
    %v5593 = vadd.f32 %v5580, %v5592
    %v5594 = vpop.f32.mrf.mxu0
    %5595 = vdwg.mxu0
    %5596 = vmatpush.bf16.xpose.msra.mxu0 0
    %5597 = vmatpush.bf16.xpose.msra.mxu0 0
    %5598 = vmatpush.bf16.xpose.msra.mxu0 0
    %5599 = vmatpush.bf16.xpose.msra.mxu0 0
    %5600 = vmatpush.bf16.xpose.msra.mxu0 0
    %5601 = vmatpush.bf16.xpose.msra.mxu0 0
    %5602 = vmatpush.bf16.xpose.msra.mxu0 0
    %5603 = vmatpush.bf16.xpose.msra.mxu0 %v5522
    %5604 = vmatmul.bf16.gmra.mxu0 %v5503
    %v5605 = vpop.f32.mrf.mxu0
    %v5606 = vadd.f32 %v5593, %v5605
    %v5607 = vpop.f32.mrf.mxu0
    %5608 = vdwg.mxu0
    %5609 = vmatpush.bf16.xpose.msra.mxu0 0
    %5610 = vmatpush.bf16.xpose.msra.mxu0 0
    %5611 = vmatpush.bf16.xpose.msra.mxu0 0
    %5612 = vmatpush.bf16.xpose.msra.mxu0 0
    %5613 = vmatpush.bf16.xpose.msra.mxu0 0
    %5614 = vmatpush.bf16.xpose.msra.mxu0 0
    %5615 = vmatpush.bf16.xpose.msra.mxu0 0
    %5616 = vmatpush.bf16.xpose.msra.mxu0 %v5523
    %5617 = vmatmul.bf16.gmra.mxu0 %v5504
    %v5618 = vpop.f32.mrf.mxu0
    %v5619 = vadd.f32 %v5606, %v5618
    %v5620 = vpop.f32.mrf.mxu0
    %5621 = vdwg.mxu0
    %vm5622 = vcmask 64512
    %5623 = vst.msk [vmem:[#allocation5] sm:$0xff] %vm5622, %v5619
    // Predicated region
    $region22: #{tpu_custom_call.1} parent=1 // pred_check
      _
    $region23: #{tpu_custom_call.1} parent=1 // pred_check_branch
      %5625 = sbr.rel (0) target = $region25
    $region24: #{tpu_custom_call.1} parent=1 // pred_region
      %5627 = vsyncadd [#allocation4], 0
      %s5629 = sshll.u32 [#allocation5], 4
      %s5630 = int_to_ptr.vmem [resolvable:$true] %s5629
      %s5631 = sshll.u32 %s4, 4
      %s5632 = int_to_ptr.hbm [resolvable:$true] %s5631
      %5634 = dma.vmem_to_hbm [thread:$0]  %s5630, 128, %s5632, [#allocation4]
    $region25: #{tpu_custom_call.1} parent=1 // pred_fallthru
      _
    // Predicated region
    $region26: #{tpu_custom_call.1} parent=1 // pred_check
      _
    $region27: #{tpu_custom_call.1} parent=1 // pred_check_branch
      %5636 = sbr.rel (0) target = $region29
    $region28: #{tpu_custom_call.1} parent=1 // pred_region
      %5638 = dma.done [#allocation4], 128
    $region29: #{tpu_custom_call.1} parent=1 // pred_fallthru
      _
    %5639 = vsyncpa [#allocation3], 1
    %5640 = vsyncpa [#allocation4], 1

</llo_original>
